<compile_context>
chip_gen: v7x
topology: tpu7x:2x2x1
jax: 0.10.0
libtpu: 0.0.40
codegen_flags: <defaults>
</compile_context>

<pallas_src>
import jax
import jax.numpy as jnp
from jax.experimental import pallas as pl
from jax.experimental.pallas import tpu as pltpu


def conv1x1_kernel(x_ref, w_ref, o_ref):
    # x_ref: (M_pad, C_in) bf16   -- all rows, all input channels
    # w_ref: (C_in, TN)   bf16   -- one output-channel tile
    # o_ref: (M_pad, TN)  f32
    o_ref[...] = jnp.dot(
        x_ref[...], w_ref[...], preferred_element_type=jnp.float32
    ).astype(o_ref.dtype)


def prepare_weight(weight_oihw):
    """One-time parameter layout: (C_out, C_in, 1, 1) -> (C_in, C_out) bf16."""
    C_out, C_in = weight_oihw.shape[0], weight_oihw.shape[1]
    w_mat = jnp.transpose(weight_oihw.reshape(C_out, C_in), (1, 0))
    return w_mat.astype(jnp.bfloat16)


def _default_num_tiles():
    # 2 output-channel tiles on v7x (2 TensorCores/chip), 1 otherwise.
    try:
        kind = jax.devices()[0].device_kind.lower()
        if "v7" in kind:
            return 2
    except Exception:
        pass
    return 1


def conv2d_1x1(x_nchw, w_mat_bf16, *, num_tiles=None):
    """1x1 conv, stride 1, no bias.

    x_nchw:     (N, C_in, H, W) f32
    w_mat_bf16: (C_in, C_out)   bf16 (pre-laid-out via prepare_weight)
    returns:    (N, C_out, H, W) f32
    """
    N, C_in, H, W = x_nchw.shape
    K, C_out = w_mat_bf16.shape
    assert K == C_in

    if num_tiles is None:
        num_tiles = _default_num_tiles()
    assert C_out % num_tiles == 0
    tn = C_out // num_tiles
    assert tn % 128 == 0, "output-channel tile must stay lane-aligned"

    M = N * H * W
    M_pad = ((M + 7) // 8) * 8  # multiple of 8 sublanes -> unmasked stores

    # NCHW -> NHWC -> (M, C_in), cast to bf16, zero-pad rows to M_pad.
    x_mat = jnp.transpose(x_nchw, (0, 2, 3, 1)).reshape(M, C_in).astype(jnp.bfloat16)
    if M_pad != M:
        x_mat = jnp.pad(x_mat, ((0, M_pad - M), (0, 0)))

    cost = pl.CostEstimate(
        flops=2 * M_pad * C_in * C_out,
        transcendentals=0,
        bytes_accessed=(M_pad * C_in * 2          # x (bf16)
                        + C_in * C_out * 2        # w (bf16)
                        + M_pad * C_out * 4),     # out (f32)
    )

    out_mat = pl.pallas_call(
        conv1x1_kernel,
        out_shape=jax.ShapeDtypeStruct((M_pad, C_out), jnp.float32),
        grid_spec=pltpu.PrefetchScalarGridSpec(
            num_scalar_prefetch=0,
            grid=(num_tiles,),
            in_specs=[
                pl.BlockSpec((M_pad, C_in), lambda j: (0, 0)),  # full X rows
                pl.BlockSpec((C_in, tn), lambda j: (0, j)),     # one C_out tile
            ],
            out_specs=pl.BlockSpec((M_pad, tn), lambda j: (0, j)),
        ),
        compiler_params=pltpu.CompilerParams(
            dimension_semantics=("parallel",),
        ),
        cost_estimate=cost,
    )(x_mat, w_mat_bf16)

    # (M_pad, C_out) -> drop padding -> (N, H, W, C_out) -> NCHW
    out_mat = out_mat[:M]
    return jnp.transpose(out_mat.reshape(N, H, W, C_out), (0, 3, 1, 2))


if __name__ == "__main__":
    key = jax.random.PRNGKey(0)
    kx, kw = jax.random.split(key)

    # Shapes implied by the module: x715 = randn(1, 384, 7, 7); Conv2d(384, 2304, 1, bias=False)
    N, C_in, H, W = 1, 384, 7, 7
    C_out = 2304

    x = jax.random.normal(kx, (N, C_in, H, W), dtype=jnp.float32)
    weight = jax.random.normal(kw, (C_out, C_in, 1, 1), dtype=jnp.float32) * (1.0 / (C_in ** 0.5))

    # One-time weight layout/cast (init-time, not per call).
    w_mat = prepare_weight(weight)
    w_mat = jax.block_until_ready(w_mat)

    out = conv2d_1x1(x, w_mat)
    out = jax.block_until_ready(out)
    assert out.shape == (N, C_out, H, W)
    assert out.dtype == jnp.float32

    # Tight check: f32-accumulated matmul over the same bf16-rounded operands.
    xb = x.astype(jnp.bfloat16).astype(jnp.float32)
    wb = weight.astype(jnp.bfloat16).astype(jnp.float32).reshape(C_out, C_in)
    ref_bf16 = jnp.einsum("nchw,oc->nohw", xb, wb)
    assert jnp.allclose(out, ref_bf16, atol=2e-3, rtol=2e-3)

    # Loose check against the full-precision f32 reference (semantics preserved).
    ref_f32 = jnp.einsum("nchw,oc->nohw", x, weight.reshape(C_out, C_in))
    assert jnp.allclose(out, ref_f32, atol=5e-2, rtol=5e-2)

    print("KERNEL_OK")
</pallas_src>

<mosaic_0001>
module attributes {stable_mosaic.version = 11 : i64} {
  func.func @conv1x1_kernel(%arg0: i32, %arg1: memref<56x384xbf16, #tpu.memory_space<vmem>>, %arg2: memref<384x2304xbf16, #tpu.memory_space<vmem>>, %arg3: memref<56x2304xf32, #tpu.memory_space<vmem>>) attributes {dimension_semantics = [#tpu.dimension_semantics<parallel>], iteration_bounds = array<i64: 1>, scalar_prefetch = 0 : i64, scratch_operands = 0 : i64, tpu.core_type = #tpu.core_type<tc>, window_params = [{pipeline_mode = #tpu.pipeline_mode<synchronous>, transform_indices = @transform_0, window_bounds = array<i64: 56, 384>}, {transform_indices = @transform_1, window_bounds = array<i64: 384, 2304>}, {transform_indices = @transform_2, window_bounds = array<i64: 56, 2304>}]} {
    %c0 = arith.constant 0 : index
    %c0_0 = arith.constant 0 : index
    %0 = vector.load %arg1[%c0, %c0_0] : memref<56x384xbf16, #tpu.memory_space<vmem>>, vector<56x384xbf16>
    %c0_1 = arith.constant 0 : index
    %c0_2 = arith.constant 0 : index
    %1 = vector.load %arg2[%c0_1, %c0_2] : memref<384x2304xbf16, #tpu.memory_space<vmem>>, vector<384x2304xbf16>
    %cst = arith.constant dense<0.000000e+00> : vector<56x2304xf32>
    %2 = tpu.matmul %0, %1, %cst {dimension_numbers = #tpu.dot_dimension_numbers<[1], [0], [0], [1], [0, 0, 1, 1], [], []>} : vector<56x384xbf16>, vector<384x2304xbf16>, vector<56x2304xf32> -> vector<56x2304xf32>
    %c0_3 = arith.constant 0 : index
    %c0_4 = arith.constant 0 : index
    %3 = vector.load %arg3[%c0_3, %c0_4] : memref<56x2304xf32, #tpu.memory_space<vmem>>, vector<56x2304xf32>
    tpu.vector_store %arg3[%c0_3, %c0_4], %2 {strides = array<i32>} : memref<56x2304xf32, #tpu.memory_space<vmem>>, vector<56x2304xf32>,
    return
  }
  func.func @transform_0(%arg0: i32) -> (i32, i32) {
    %c0_i32 = arith.constant 0 : i32
    %c0_i32_0 = arith.constant 0 : i32
    %c0_i32_1 = arith.constant 0 : i32
    return %c0_i32, %c0_i32_0 : i32, i32
  }
  func.func @transform_1(%arg0: i32) -> (i32, i32) {
    %c0_i32 = arith.constant 0 : i32
    %c0_i32_0 = arith.constant 0 : i32
    return %c0_i32, %arg0 : i32, i32
  }
  func.func @transform_2(%arg0: i32) -> (i32, i32) {
    %c0_i32 = arith.constant 0 : i32
    %c0_i32_0 = arith.constant 0 : i32
    return %c0_i32, %arg0 : i32, i32
  }
}

</mosaic_0001>

<llo_original>
// kernel: tpu_custom_call.1
$region0: #{tpu_custom_call.1}
  #allocation0 [shape = 'u32[]', space=smem, size = 0x4, offset = 0x4, fixed_abs, tag = 'smem constant byte address 0x4 - core index']
  #allocation1 [shape = 'u32[144,128]{1,0:T(1,128)}', space=vmem, size = 0x12000, scoped, tag = 'internal scratch']
  %s0 = inlined_call_operand.hbm [shape: bf16[56,384], index: 0, kind: input, shape index: {}]
  %s1 = inlined_call_operand.hbm [shape: bf16[384,2304], index: 1, kind: input, shape index: {}]
  %s2 = inlined_call_operand.hbm [shape: f32[56,2304], index: 2, kind: output, shape index: {}]
  %s3 = sld [smem:[#allocation0]]
  $region26: #{tpu_custom_call.1} parent=0
    _
  %s5 = ssub.s32 1, %s3
  %s6 = scalar_select 0, %s5, %s3
  $region1: #{tpu_custom_call.1} parent=0
    #allocation2 [shape = 'u8[43008]{0}', space=vmem, size = 0xa800, scoped, tag = 'input window, operand 0, single buffered']
    #allocation3 [shape = 's32[1]{0}', space=sflag, size = 0x4, scoped, tag = 'scoped memory for tpu_custom_call.1']
    #allocation4 [shape = 's32[1]{0}', space=sflag, size = 0x4, scoped, tag = 'scoped memory for tpu_custom_call.1']
    #allocation5 [shape = 'u8[1769472]{0}', space=vmem, size = 0x1b0000, scoped, tag = 'input window, operand 1, single buffered']
    #allocation6 [shape = 's32[1]{0}', space=sflag, size = 0x4, scoped, tag = 'scoped memory for tpu_custom_call.1']
    #allocation7 [shape = 'u8[516096]{0}', space=vmem, size = 0x7e000, scoped, tag = 'output window, operand 0, single buffered']
    %7 = vsyncpa [#allocation3], 0
    %8 = vsyncpa [#allocation6], 0
    %9 = vsyncpa [#allocation4], 0
    // Predicated region
    $region2: #{tpu_custom_call.1} parent=1 // pred_check
      _
    $region3: #{tpu_custom_call.1} parent=1 // pred_check_branch
      %11 = sbr.rel (0) target = $region5
    $region4: #{tpu_custom_call.1} parent=1 // pred_region
      %s13 = ssub.s32 1344, 1344
      %14 = vsyncadd [#allocation3], %s13
      %s15 = sshll.u32 [#allocation2], 4
      %s16 = int_to_ptr.vmem [resolvable:$true] %s15
      %21 = dma.hbm_to_vmem [thread:$0]  %s0, 1344, %s16, [#allocation3], 192, 192, 12
    $region5: #{tpu_custom_call.1} parent=1 // pred_fallthru
      _
    // Predicated region
    $region6: #{tpu_custom_call.1} parent=1 // pred_check
      _
    $region7: #{tpu_custom_call.1} parent=1 // pred_check_branch
      %23 = sbr.rel (0) target = $region9
    $region8: #{tpu_custom_call.1} parent=1 // pred_region
      %s25 = ssub.s32 55296, 55296
      %26 = vsyncadd [#allocation6], %s25
      %s27 = sshll.u32 [#allocation5], 4
      %s28 = int_to_ptr.vmem [resolvable:$true] %s27
      %33 = dma.hbm_to_vmem [thread:$0]  %s1, 55296, %s28, [#allocation6], 1152, 1152, 72
    $region9: #{tpu_custom_call.1} parent=1 // pred_fallthru
      _
    // Predicated region
    $region10: #{tpu_custom_call.1} parent=1 // pred_check
      _
    $region11: #{tpu_custom_call.1} parent=1 // pred_check_branch
      %35 = sbr.rel (0) target = $region13
    $region12: #{tpu_custom_call.1} parent=1 // pred_region
      %36 = dma.done [#allocation3], 1344
    $region13: #{tpu_custom_call.1} parent=1 // pred_fallthru
      _
    // Predicated region
    $region14: #{tpu_custom_call.1} parent=1 // pred_check
      _
    $region15: #{tpu_custom_call.1} parent=1 // pred_check_branch
      %38 = sbr.rel (0) target = $region17
    $region16: #{tpu_custom_call.1} parent=1 // pred_region
      %39 = dma.done [#allocation6], 55296
    $region17: #{tpu_custom_call.1} parent=1 // pred_fallthru
      _
    %v41 = vld [vmem:[#allocation2] sm:$0xff]
    %v42 = vld [vmem:[#allocation2 + $0x8] sm:$0xf]
    %v43 = vld [vmem:[#allocation2 + $0xc] sm:$0xff]
    %v44 = vld [vmem:[#allocation2 + $0x14] sm:$0xf]
    %v45 = vld [vmem:[#allocation2 + $0x18] sm:$0xff]
    %v46 = vld [vmem:[#allocation2 + $0x20] sm:$0xf]
    %v47 = vld [vmem:[#allocation2 + $0x24] sm:$0xff]
    %v48 = vld [vmem:[#allocation2 + $0x2c] sm:$0xf]
    %v49 = vld [vmem:[#allocation2 + $0x30] sm:$0xff]
    %v50 = vld [vmem:[#allocation2 + $0x38] sm:$0xf]
    %v51 = vld [vmem:[#allocation2 + $0x3c] sm:$0xff]
    %v52 = vld [vmem:[#allocation2 + $0x44] sm:$0xf]
    %v53 = vld [vmem:[#allocation2 + $0x48] sm:$0xff]
    %v54 = vld [vmem:[#allocation2 + $0x50] sm:$0xf]
    %v55 = vld [vmem:[#allocation5] sm:$0xff]
    %v56 = vld [vmem:[#allocation5 + $0x8] sm:$0xff]
    %v57 = vld [vmem:[#allocation5 + $0x10] sm:$0xff]
    %v58 = vld [vmem:[#allocation5 + $0x18] sm:$0xff]
    %v59 = vld [vmem:[#allocation5 + $0x20] sm:$0xff]
    %v60 = vld [vmem:[#allocation5 + $0x28] sm:$0xff]
    %v61 = vld [vmem:[#allocation5 + $0x30] sm:$0xff]
    %v62 = vld [vmem:[#allocation5 + $0x38] sm:$0xff]
    %v63 = vld [vmem:[#allocation5 + $0x40] sm:$0xff]
    %v64 = vld [vmem:[#allocation5 + $0x48] sm:$0xff]
    %v65 = vld [vmem:[#allocation5 + $0x50] sm:$0xff]
    %v66 = vld [vmem:[#allocation5 + $0x58] sm:$0xff]
    %v67 = vld [vmem:[#allocation5 + $0x60] sm:$0xff]
    %v68 = vld [vmem:[#allocation5 + $0x68] sm:$0xff]
    %v69 = vld [vmem:[#allocation5 + $0x70] sm:$0xff]
    %v70 = vld [vmem:[#allocation5 + $0x78] sm:$0xff]
    %v71 = vld [vmem:[#allocation5 + $0x80] sm:$0xff]
    %v72 = vld [vmem:[#allocation5 + $0x88] sm:$0xff]
    %v73 = vld [vmem:[#allocation5 + $0x90] sm:$0xff]
    %v74 = vld [vmem:[#allocation5 + $0x98] sm:$0xff]
    %v75 = vld [vmem:[#allocation5 + $0xa0] sm:$0xff]
    %v76 = vld [vmem:[#allocation5 + $0xa8] sm:$0xff]
    %v77 = vld [vmem:[#allocation5 + $0xb0] sm:$0xff]
    %v78 = vld [vmem:[#allocation5 + $0xb8] sm:$0xff]
    %v79 = vld [vmem:[#allocation5 + $0xc0] sm:$0xff]
    %v80 = vld [vmem:[#allocation5 + $0xc8] sm:$0xff]
    %v81 = vld [vmem:[#allocation5 + $0xd0] sm:$0xff]
    %v82 = vld [vmem:[#allocation5 + $0xd8] sm:$0xff]
    %v83 = vld [vmem:[#allocation5 + $0xe0] sm:$0xff]
    %v84 = vld [vmem:[#allocation5 + $0xe8] sm:$0xff]
    %v85 = vld [vmem:[#allocation5 + $0xf0] sm:$0xff]
    %v86 = vld [vmem:[#allocation5 + $0xf8] sm:$0xff]
    %v87 = vld [vmem:[#allocation5 + $0x100] sm:$0xff]
    %v88 = vld [vmem:[#allocation5 + $0x108] sm:$0xff]
    %v89 = vld [vmem:[#allocation5 + $0x110] sm:$0xff]
    %v90 = vld [vmem:[#allocation5 + $0x118] sm:$0xff]
    %v91 = vld [vmem:[#allocation5 + $0x120] sm:$0xff]
    %v92 = vld [vmem:[#allocation5 + $0x128] sm:$0xff]
    %v93 = vld [vmem:[#allocation5 + $0x130] sm:$0xff]
    %v94 = vld [vmem:[#allocation5 + $0x138] sm:$0xff]
    %v95 = vld [vmem:[#allocation5 + $0x140] sm:$0xff]
    %v96 = vld [vmem:[#allocation5 + $0x148] sm:$0xff]
    %v97 = vld [vmem:[#allocation5 + $0x150] sm:$0xff]
    %v98 = vld [vmem:[#allocation5 + $0x158] sm:$0xff]
    %v99 = vld [vmem:[#allocation5 + $0x160] sm:$0xff]
    %v100 = vld [vmem:[#allocation5 + $0x168] sm:$0xff]
    %v101 = vld [vmem:[#allocation5 + $0x170] sm:$0xff]
    %v102 = vld [vmem:[#allocation5 + $0x178] sm:$0xff]
    %v103 = vld [vmem:[#allocation5 + $0x180] sm:$0xff]
    %v104 = vld [vmem:[#allocation5 + $0x188] sm:$0xff]
    %v105 = vld [vmem:[#allocation5 + $0x190] sm:$0xff]
    %v106 = vld [vmem:[#allocation5 + $0x198] sm:$0xff]
    %v107 = vld [vmem:[#allocation5 + $0x1a0] sm:$0xff]
    %v108 = vld [vmem:[#allocation5 + $0x1a8] sm:$0xff]
    %v109 = vld [vmem:[#allocation5 + $0x1b0] sm:$0xff]
    %v110 = vld [vmem:[#allocation5 + $0x1b8] sm:$0xff]
    %v111 = vld [vmem:[#allocation5 + $0x1c0] sm:$0xff]
    %v112 = vld [vmem:[#allocation5 + $0x1c8] sm:$0xff]
    %v113 = vld [vmem:[#allocation5 + $0x1d0] sm:$0xff]
    %v114 = vld [vmem:[#allocation5 + $0x1d8] sm:$0xff]
    %v115 = vld [vmem:[#allocation5 + $0x1e0] sm:$0xff]
    %v116 = vld [vmem:[#allocation5 + $0x1e8] sm:$0xff]
    %v117 = vld [vmem:[#allocation5 + $0x1f0] sm:$0xff]
    %v118 = vld [vmem:[#allocation5 + $0x1f8] sm:$0xff]
    %v119 = vld [vmem:[#allocation5 + $0x200] sm:$0xff]
    %v120 = vld [vmem:[#allocation5 + $0x208] sm:$0xff]
    %v121 = vld [vmem:[#allocation5 + $0x210] sm:$0xff]
    %v122 = vld [vmem:[#allocation5 + $0x218] sm:$0xff]
    %v123 = vld [vmem:[#allocation5 + $0x220] sm:$0xff]
    %v124 = vld [vmem:[#allocation5 + $0x228] sm:$0xff]
    %v125 = vld [vmem:[#allocation5 + $0x230] sm:$0xff]
    %v126 = vld [vmem:[#allocation5 + $0x238] sm:$0xff]
    %v127 = vld [vmem:[#allocation5 + $0x240] sm:$0xff]
    %v128 = vld [vmem:[#allocation5 + $0x248] sm:$0xff]
    %v129 = vld [vmem:[#allocation5 + $0x250] sm:$0xff]
    %v130 = vld [vmem:[#allocation5 + $0x258] sm:$0xff]
    %v131 = vld [vmem:[#allocation5 + $0x260] sm:$0xff]
    %v132 = vld [vmem:[#allocation5 + $0x268] sm:$0xff]
    %v133 = vld [vmem:[#allocation5 + $0x270] sm:$0xff]
    %v134 = vld [vmem:[#allocation5 + $0x278] sm:$0xff]
    %v135 = vld [vmem:[#allocation5 + $0x280] sm:$0xff]
    %v136 = vld [vmem:[#allocation5 + $0x288] sm:$0xff]
    %v137 = vld [vmem:[#allocation5 + $0x290] sm:$0xff]
    %v138 = vld [vmem:[#allocation5 + $0x298] sm:$0xff]
    %v139 = vld [vmem:[#allocation5 + $0x2a0] sm:$0xff]
    %v140 = vld [vmem:[#allocation5 + $0x2a8] sm:$0xff]
    %v141 = vld [vmem:[#allocation5 + $0x2b0] sm:$0xff]
    %v142 = vld [vmem:[#allocation5 + $0x2b8] sm:$0xff]
    %v143 = vld [vmem:[#allocation5 + $0x2c0] sm:$0xff]
    %v144 = vld [vmem:[#allocation5 + $0x2c8] sm:$0xff]
    %v145 = vld [vmem:[#allocation5 + $0x2d0] sm:$0xff]
    %v146 = vld [vmem:[#allocation5 + $0x2d8] sm:$0xff]
    %v147 = vld [vmem:[#allocation5 + $0x2e0] sm:$0xff]
    %v148 = vld [vmem:[#allocation5 + $0x2e8] sm:$0xff]
    %v149 = vld [vmem:[#allocation5 + $0x2f0] sm:$0xff]
    %v150 = vld [vmem:[#allocation5 + $0x2f8] sm:$0xff]
    %v151 = vld [vmem:[#allocation5 + $0x300] sm:$0xff]
    %v152 = vld [vmem:[#allocation5 + $0x308] sm:$0xff]
    %v153 = vld [vmem:[#allocation5 + $0x310] sm:$0xff]
    %v154 = vld [vmem:[#allocation5 + $0x318] sm:$0xff]
    %v155 = vld [vmem:[#allocation5 + $0x320] sm:$0xff]
    %v156 = vld [vmem:[#allocation5 + $0x328] sm:$0xff]
    %v157 = vld [vmem:[#allocation5 + $0x330] sm:$0xff]
    %v158 = vld [vmem:[#allocation5 + $0x338] sm:$0xff]
    %v159 = vld [vmem:[#allocation5 + $0x340] sm:$0xff]
    %v160 = vld [vmem:[#allocation5 + $0x348] sm:$0xff]
    %v161 = vld [vmem:[#allocation5 + $0x350] sm:$0xff]
    %v162 = vld [vmem:[#allocation5 + $0x358] sm:$0xff]
    %v163 = vld [vmem:[#allocation5 + $0x360] sm:$0xff]
    %v164 = vld [vmem:[#allocation5 + $0x368] sm:$0xff]
    %v165 = vld [vmem:[#allocation5 + $0x370] sm:$0xff]
    %v166 = vld [vmem:[#allocation5 + $0x378] sm:$0xff]
    %v167 = vld [vmem:[#allocation5 + $0x380] sm:$0xff]
    %v168 = vld [vmem:[#allocation5 + $0x388] sm:$0xff]
    %v169 = vld [vmem:[#allocation5 + $0x390] sm:$0xff]
    %v170 = vld [vmem:[#allocation5 + $0x398] sm:$0xff]
    %v171 = vld [vmem:[#allocation5 + $0x3a0] sm:$0xff]
    %v172 = vld [vmem:[#allocation5 + $0x3a8] sm:$0xff]
    %v173 = vld [vmem:[#allocation5 + $0x3b0] sm:$0xff]
    %v174 = vld [vmem:[#allocation5 + $0x3b8] sm:$0xff]
    %v175 = vld [vmem:[#allocation5 + $0x3c0] sm:$0xff]
    %v176 = vld [vmem:[#allocation5 + $0x3c8] sm:$0xff]
    %v177 = vld [vmem:[#allocation5 + $0x3d0] sm:$0xff]
    %v178 = vld [vmem:[#allocation5 + $0x3d8] sm:$0xff]
    %v179 = vld [vmem:[#allocation5 + $0x3e0] sm:$0xff]
    %v180 = vld [vmem:[#allocation5 + $0x3e8] sm:$0xff]
    %v181 = vld [vmem:[#allocation5 + $0x3f0] sm:$0xff]
    %v182 = vld [vmem:[#allocation5 + $0x3f8] sm:$0xff]
    %v183 = vld [vmem:[#allocation5 + $0x400] sm:$0xff]
    %v184 = vld [vmem:[#allocation5 + $0x408] sm:$0xff]
    %v185 = vld [vmem:[#allocation5 + $0x410] sm:$0xff]
    %v186 = vld [vmem:[#allocation5 + $0x418] sm:$0xff]
    %v187 = vld [vmem:[#allocation5 + $0x420] sm:$0xff]
    %v188 = vld [vmem:[#allocation5 + $0x428] sm:$0xff]
    %v189 = vld [vmem:[#allocation5 + $0x430] sm:$0xff]
    %v190 = vld [vmem:[#allocation5 + $0x438] sm:$0xff]
    %v191 = vld [vmem:[#allocation5 + $0x440] sm:$0xff]
    %v192 = vld [vmem:[#allocation5 + $0x448] sm:$0xff]
    %v193 = vld [vmem:[#allocation5 + $0x450] sm:$0xff]
    %v194 = vld [vmem:[#allocation5 + $0x458] sm:$0xff]
    %v195 = vld [vmem:[#allocation5 + $0x460] sm:$0xff]
    %v196 = vld [vmem:[#allocation5 + $0x468] sm:$0xff]
    %v197 = vld [vmem:[#allocation5 + $0x470] sm:$0xff]
    %v198 = vld [vmem:[#allocation5 + $0x478] sm:$0xff]
    %v199 = vld [vmem:[#allocation5 + $0x480] sm:$0xff]
    %v200 = vld [vmem:[#allocation5 + $0x488] sm:$0xff]
    %v201 = vld [vmem:[#allocation5 + $0x490] sm:$0xff]
    %v202 = vld [vmem:[#allocation5 + $0x498] sm:$0xff]
    %v203 = vld [vmem:[#allocation5 + $0x4a0] sm:$0xff]
    %v204 = vld [vmem:[#allocation5 + $0x4a8] sm:$0xff]
    %v205 = vld [vmem:[#allocation5 + $0x4b0] sm:$0xff]
    %v206 = vld [vmem:[#allocation5 + $0x4b8] sm:$0xff]
    %v207 = vld [vmem:[#allocation5 + $0x4c0] sm:$0xff]
    %v208 = vld [vmem:[#allocation5 + $0x4c8] sm:$0xff]
    %v209 = vld [vmem:[#allocation5 + $0x4d0] sm:$0xff]
    %v210 = vld [vmem:[#allocation5 + $0x4d8] sm:$0xff]
    %v211 = vld [vmem:[#allocation5 + $0x4e0] sm:$0xff]
    %v212 = vld [vmem:[#allocation5 + $0x4e8] sm:$0xff]
    %v213 = vld [vmem:[#allocation5 + $0x4f0] sm:$0xff]
    %v214 = vld [vmem:[#allocation5 + $0x4f8] sm:$0xff]
    %v215 = vld [vmem:[#allocation5 + $0x500] sm:$0xff]
    %v216 = vld [vmem:[#allocation5 + $0x508] sm:$0xff]
    %v217 = vld [vmem:[#allocation5 + $0x510] sm:$0xff]
    %v218 = vld [vmem:[#allocation5 + $0x518] sm:$0xff]
    %v219 = vld [vmem:[#allocation5 + $0x520] sm:$0xff]
    %v220 = vld [vmem:[#allocation5 + $0x528] sm:$0xff]
    %v221 = vld [vmem:[#allocation5 + $0x530] sm:$0xff]
    %v222 = vld [vmem:[#allocation5 + $0x538] sm:$0xff]
    %v223 = vld [vmem:[#allocation5 + $0x540] sm:$0xff]
    %v224 = vld [vmem:[#allocation5 + $0x548] sm:$0xff]
    %v225 = vld [vmem:[#allocation5 + $0x550] sm:$0xff]
    %v226 = vld [vmem:[#allocation5 + $0x558] sm:$0xff]
    %v227 = vld [vmem:[#allocation5 + $0x560] sm:$0xff]
    %v228 = vld [vmem:[#allocation5 + $0x568] sm:$0xff]
    %v229 = vld [vmem:[#allocation5 + $0x570] sm:$0xff]
    %v230 = vld [vmem:[#allocation5 + $0x578] sm:$0xff]
    %v231 = vld [vmem:[#allocation5 + $0x580] sm:$0xff]
    %v232 = vld [vmem:[#allocation5 + $0x588] sm:$0xff]
    %v233 = vld [vmem:[#allocation5 + $0x590] sm:$0xff]
    %v234 = vld [vmem:[#allocation5 + $0x598] sm:$0xff]
    %v235 = vld [vmem:[#allocation5 + $0x5a0] sm:$0xff]
    %v236 = vld [vmem:[#allocation5 + $0x5a8] sm:$0xff]
    %v237 = vld [vmem:[#allocation5 + $0x5b0] sm:$0xff]
    %v238 = vld [vmem:[#allocation5 + $0x5b8] sm:$0xff]
    %v239 = vld [vmem:[#allocation5 + $0x5c0] sm:$0xff]
    %v240 = vld [vmem:[#allocation5 + $0x5c8] sm:$0xff]
    %v241 = vld [vmem:[#allocation5 + $0x5d0] sm:$0xff]
    %v242 = vld [vmem:[#allocation5 + $0x5d8] sm:$0xff]
    %v243 = vld [vmem:[#allocation5 + $0x5e0] sm:$0xff]
    %v244 = vld [vmem:[#allocation5 + $0x5e8] sm:$0xff]
    %v245 = vld [vmem:[#allocation5 + $0x5f0] sm:$0xff]
    %v246 = vld [vmem:[#allocation5 + $0x5f8] sm:$0xff]
    %v247 = vld [vmem:[#allocation5 + $0x600] sm:$0xff]
    %v248 = vld [vmem:[#allocation5 + $0x608] sm:$0xff]
    %v249 = vld [vmem:[#allocation5 + $0x610] sm:$0xff]
    %v250 = vld [vmem:[#allocation5 + $0x618] sm:$0xff]
    %v251 = vld [vmem:[#allocation5 + $0x620] sm:$0xff]
    %v252 = vld [vmem:[#allocation5 + $0x628] sm:$0xff]
    %v253 = vld [vmem:[#allocation5 + $0x630] sm:$0xff]
    %v254 = vld [vmem:[#allocation5 + $0x638] sm:$0xff]
    %v255 = vld [vmem:[#allocation5 + $0x640] sm:$0xff]
    %v256 = vld [vmem:[#allocation5 + $0x648] sm:$0xff]
    %v257 = vld [vmem:[#allocation5 + $0x650] sm:$0xff]
    %v258 = vld [vmem:[#allocation5 + $0x658] sm:$0xff]
    %v259 = vld [vmem:[#allocation5 + $0x660] sm:$0xff]
    %v260 = vld [vmem:[#allocation5 + $0x668] sm:$0xff]
    %v261 = vld [vmem:[#allocation5 + $0x670] sm:$0xff]
    %v262 = vld [vmem:[#allocation5 + $0x678] sm:$0xff]
    %v263 = vld [vmem:[#allocation5 + $0x680] sm:$0xff]
    %v264 = vld [vmem:[#allocation5 + $0x688] sm:$0xff]
    %v265 = vld [vmem:[#allocation5 + $0x690] sm:$0xff]
    %v266 = vld [vmem:[#allocation5 + $0x698] sm:$0xff]
    %v267 = vld [vmem:[#allocation5 + $0x6a0] sm:$0xff]
    %v268 = vld [vmem:[#allocation5 + $0x6a8] sm:$0xff]
    %v269 = vld [vmem:[#allocation5 + $0x6b0] sm:$0xff]
    %v270 = vld [vmem:[#allocation5 + $0x6b8] sm:$0xff]
    %v271 = vld [vmem:[#allocation5 + $0x6c0] sm:$0xff]
    %v272 = vld [vmem:[#allocation5 + $0x6c8] sm:$0xff]
    %v273 = vld [vmem:[#allocation5 + $0x6d0] sm:$0xff]
    %v274 = vld [vmem:[#allocation5 + $0x6d8] sm:$0xff]
    %v275 = vld [vmem:[#allocation5 + $0x6e0] sm:$0xff]
    %v276 = vld [vmem:[#allocation5 + $0x6e8] sm:$0xff]
    %v277 = vld [vmem:[#allocation5 + $0x6f0] sm:$0xff]
    %v278 = vld [vmem:[#allocation5 + $0x6f8] sm:$0xff]
    %v279 = vld [vmem:[#allocation5 + $0x700] sm:$0xff]
    %v280 = vld [vmem:[#allocation5 + $0x708] sm:$0xff]
    %v281 = vld [vmem:[#allocation5 + $0x710] sm:$0xff]
    %v282 = vld [vmem:[#allocation5 + $0x718] sm:$0xff]
    %v283 = vld [vmem:[#allocation5 + $0x720] sm:$0xff]
    %v284 = vld [vmem:[#allocation5 + $0x728] sm:$0xff]
    %v285 = vld [vmem:[#allocation5 + $0x730] sm:$0xff]
    %v286 = vld [vmem:[#allocation5 + $0x738] sm:$0xff]
    %v287 = vld [vmem:[#allocation5 + $0x740] sm:$0xff]
    %v288 = vld [vmem:[#allocation5 + $0x748] sm:$0xff]
    %v289 = vld [vmem:[#allocation5 + $0x750] sm:$0xff]
    %v290 = vld [vmem:[#allocation5 + $0x758] sm:$0xff]
    %v291 = vld [vmem:[#allocation5 + $0x760] sm:$0xff]
    %v292 = vld [vmem:[#allocation5 + $0x768] sm:$0xff]
    %v293 = vld [vmem:[#allocation5 + $0x770] sm:$0xff]
    %v294 = vld [vmem:[#allocation5 + $0x778] sm:$0xff]
    %v295 = vld [vmem:[#allocation5 + $0x780] sm:$0xff]
    %v296 = vld [vmem:[#allocation5 + $0x788] sm:$0xff]
    %v297 = vld [vmem:[#allocation5 + $0x790] sm:$0xff]
    %v298 = vld [vmem:[#allocation5 + $0x798] sm:$0xff]
    %v299 = vld [vmem:[#allocation5 + $0x7a0] sm:$0xff]
    %v300 = vld [vmem:[#allocation5 + $0x7a8] sm:$0xff]
    %v301 = vld [vmem:[#allocation5 + $0x7b0] sm:$0xff]
    %v302 = vld [vmem:[#allocation5 + $0x7b8] sm:$0xff]
    %v303 = vld [vmem:[#allocation5 + $0x7c0] sm:$0xff]
    %v304 = vld [vmem:[#allocation5 + $0x7c8] sm:$0xff]
    %v305 = vld [vmem:[#allocation5 + $0x7d0] sm:$0xff]
    %v306 = vld [vmem:[#allocation5 + $0x7d8] sm:$0xff]
    %v307 = vld [vmem:[#allocation5 + $0x7e0] sm:$0xff]
    %v308 = vld [vmem:[#allocation5 + $0x7e8] sm:$0xff]
    %v309 = vld [vmem:[#allocation5 + $0x7f0] sm:$0xff]
    %v310 = vld [vmem:[#allocation5 + $0x7f8] sm:$0xff]
    %v311 = vld [vmem:[#allocation5 + $0x800] sm:$0xff]
    %v312 = vld [vmem:[#allocation5 + $0x808] sm:$0xff]
    %v313 = vld [vmem:[#allocation5 + $0x810] sm:$0xff]
    %v314 = vld [vmem:[#allocation5 + $0x818] sm:$0xff]
    %v315 = vld [vmem:[#allocation5 + $0x820] sm:$0xff]
    %v316 = vld [vmem:[#allocation5 + $0x828] sm:$0xff]
    %v317 = vld [vmem:[#allocation5 + $0x830] sm:$0xff]
    %v318 = vld [vmem:[#allocation5 + $0x838] sm:$0xff]
    %v319 = vld [vmem:[#allocation5 + $0x840] sm:$0xff]
    %v320 = vld [vmem:[#allocation5 + $0x848] sm:$0xff]
    %v321 = vld [vmem:[#allocation5 + $0x850] sm:$0xff]
    %v322 = vld [vmem:[#allocation5 + $0x858] sm:$0xff]
    %v323 = vld [vmem:[#allocation5 + $0x860] sm:$0xff]
    %v324 = vld [vmem:[#allocation5 + $0x868] sm:$0xff]
    %v325 = vld [vmem:[#allocation5 + $0x870] sm:$0xff]
    %v326 = vld [vmem:[#allocation5 + $0x878] sm:$0xff]
    %v327 = vld [vmem:[#allocation5 + $0x880] sm:$0xff]
    %v328 = vld [vmem:[#allocation5 + $0x888] sm:$0xff]
    %v329 = vld [vmem:[#allocation5 + $0x890] sm:$0xff]
    %v330 = vld [vmem:[#allocation5 + $0x898] sm:$0xff]
    %v331 = vld [vmem:[#allocation5 + $0x8a0] sm:$0xff]
    %v332 = vld [vmem:[#allocation5 + $0x8a8] sm:$0xff]
    %v333 = vld [vmem:[#allocation5 + $0x8b0] sm:$0xff]
    %v334 = vld [vmem:[#allocation5 + $0x8b8] sm:$0xff]
    %v335 = vld [vmem:[#allocation5 + $0x8c0] sm:$0xff]
    %v336 = vld [vmem:[#allocation5 + $0x8c8] sm:$0xff]
    %v337 = vld [vmem:[#allocation5 + $0x8d0] sm:$0xff]
    %v338 = vld [vmem:[#allocation5 + $0x8d8] sm:$0xff]
    %v339 = vld [vmem:[#allocation5 + $0x8e0] sm:$0xff]
    %v340 = vld [vmem:[#allocation5 + $0x8e8] sm:$0xff]
    %v341 = vld [vmem:[#allocation5 + $0x8f0] sm:$0xff]
    %v342 = vld [vmem:[#allocation5 + $0x8f8] sm:$0xff]
    %v343 = vld [vmem:[#allocation5 + $0x900] sm:$0xff]
    %v344 = vld [vmem:[#allocation5 + $0x908] sm:$0xff]
    %v345 = vld [vmem:[#allocation5 + $0x910] sm:$0xff]
    %v346 = vld [vmem:[#allocation5 + $0x918] sm:$0xff]
    %v347 = vld [vmem:[#allocation5 + $0x920] sm:$0xff]
    %v348 = vld [vmem:[#allocation5 + $0x928] sm:$0xff]
    %v349 = vld [vmem:[#allocation5 + $0x930] sm:$0xff]
    %v350 = vld [vmem:[#allocation5 + $0x938] sm:$0xff]
    %v351 = vld [vmem:[#allocation5 + $0x940] sm:$0xff]
    %v352 = vld [vmem:[#allocation5 + $0x948] sm:$0xff]
    %v353 = vld [vmem:[#allocation5 + $0x950] sm:$0xff]
    %v354 = vld [vmem:[#allocation5 + $0x958] sm:$0xff]
    %v355 = vld [vmem:[#allocation5 + $0x960] sm:$0xff]
    %v356 = vld [vmem:[#allocation5 + $0x968] sm:$0xff]
    %v357 = vld [vmem:[#allocation5 + $0x970] sm:$0xff]
    %v358 = vld [vmem:[#allocation5 + $0x978] sm:$0xff]
    %v359 = vld [vmem:[#allocation5 + $0x980] sm:$0xff]
    %v360 = vld [vmem:[#allocation5 + $0x988] sm:$0xff]
    %v361 = vld [vmem:[#allocation5 + $0x990] sm:$0xff]
    %v362 = vld [vmem:[#allocation5 + $0x998] sm:$0xff]
    %v363 = vld [vmem:[#allocation5 + $0x9a0] sm:$0xff]
    %v364 = vld [vmem:[#allocation5 + $0x9a8] sm:$0xff]
    %v365 = vld [vmem:[#allocation5 + $0x9b0] sm:$0xff]
    %v366 = vld [vmem:[#allocation5 + $0x9b8] sm:$0xff]
    %v367 = vld [vmem:[#allocation5 + $0x9c0] sm:$0xff]
    %v368 = vld [vmem:[#allocation5 + $0x9c8] sm:$0xff]
    %v369 = vld [vmem:[#allocation5 + $0x9d0] sm:$0xff]
    %v370 = vld [vmem:[#allocation5 + $0x9d8] sm:$0xff]
    %v371 = vld [vmem:[#allocation5 + $0x9e0] sm:$0xff]
    %v372 = vld [vmem:[#allocation5 + $0x9e8] sm:$0xff]
    %v373 = vld [vmem:[#allocation5 + $0x9f0] sm:$0xff]
    %v374 = vld [vmem:[#allocation5 + $0x9f8] sm:$0xff]
    %v375 = vld [vmem:[#allocation5 + $0xa00] sm:$0xff]
    %v376 = vld [vmem:[#allocation5 + $0xa08] sm:$0xff]
    %v377 = vld [vmem:[#allocation5 + $0xa10] sm:$0xff]
    %v378 = vld [vmem:[#allocation5 + $0xa18] sm:$0xff]
    %v379 = vld [vmem:[#allocation5 + $0xa20] sm:$0xff]
    %v380 = vld [vmem:[#allocation5 + $0xa28] sm:$0xff]
    %v381 = vld [vmem:[#allocation5 + $0xa30] sm:$0xff]
    %v382 = vld [vmem:[#allocation5 + $0xa38] sm:$0xff]
    %v383 = vld [vmem:[#allocation5 + $0xa40] sm:$0xff]
    %v384 = vld [vmem:[#allocation5 + $0xa48] sm:$0xff]
    %v385 = vld [vmem:[#allocation5 + $0xa50] sm:$0xff]
    %v386 = vld [vmem:[#allocation5 + $0xa58] sm:$0xff]
    %v387 = vld [vmem:[#allocation5 + $0xa60] sm:$0xff]
    %v388 = vld [vmem:[#allocation5 + $0xa68] sm:$0xff]
    %v389 = vld [vmem:[#allocation5 + $0xa70] sm:$0xff]
    %v390 = vld [vmem:[#allocation5 + $0xa78] sm:$0xff]
    %v391 = vld [vmem:[#allocation5 + $0xa80] sm:$0xff]
    %v392 = vld [vmem:[#allocation5 + $0xa88] sm:$0xff]
    %v393 = vld [vmem:[#allocation5 + $0xa90] sm:$0xff]
    %v394 = vld [vmem:[#allocation5 + $0xa98] sm:$0xff]
    %v395 = vld [vmem:[#allocation5 + $0xaa0] sm:$0xff]
    %v396 = vld [vmem:[#allocation5 + $0xaa8] sm:$0xff]
    %v397 = vld [vmem:[#allocation5 + $0xab0] sm:$0xff]
    %v398 = vld [vmem:[#allocation5 + $0xab8] sm:$0xff]
    %v399 = vld [vmem:[#allocation5 + $0xac0] sm:$0xff]
    %v400 = vld [vmem:[#allocation5 + $0xac8] sm:$0xff]
    %v401 = vld [vmem:[#allocation5 + $0xad0] sm:$0xff]
    %v402 = vld [vmem:[#allocation5 + $0xad8] sm:$0xff]
    %v403 = vld [vmem:[#allocation5 + $0xae0] sm:$0xff]
    %v404 = vld [vmem:[#allocation5 + $0xae8] sm:$0xff]
    %v405 = vld [vmem:[#allocation5 + $0xaf0] sm:$0xff]
    %v406 = vld [vmem:[#allocation5 + $0xaf8] sm:$0xff]
    %v407 = vld [vmem:[#allocation5 + $0xb00] sm:$0xff]
    %v408 = vld [vmem:[#allocation5 + $0xb08] sm:$0xff]
    %v409 = vld [vmem:[#allocation5 + $0xb10] sm:$0xff]
    %v410 = vld [vmem:[#allocation5 + $0xb18] sm:$0xff]
    %v411 = vld [vmem:[#allocation5 + $0xb20] sm:$0xff]
    %v412 = vld [vmem:[#allocation5 + $0xb28] sm:$0xff]
    %v413 = vld [vmem:[#allocation5 + $0xb30] sm:$0xff]
    %v414 = vld [vmem:[#allocation5 + $0xb38] sm:$0xff]
    %v415 = vld [vmem:[#allocation5 + $0xb40] sm:$0xff]
    %v416 = vld [vmem:[#allocation5 + $0xb48] sm:$0xff]
    %v417 = vld [vmem:[#allocation5 + $0xb50] sm:$0xff]
    %v418 = vld [vmem:[#allocation5 + $0xb58] sm:$0xff]
    %v419 = vld [vmem:[#allocation5 + $0xb60] sm:$0xff]
    %v420 = vld [vmem:[#allocation5 + $0xb68] sm:$0xff]
    %v421 = vld [vmem:[#allocation5 + $0xb70] sm:$0xff]
    %v422 = vld [vmem:[#allocation5 + $0xb78] sm:$0xff]
    %v423 = vld [vmem:[#allocation5 + $0xb80] sm:$0xff]
    %v424 = vld [vmem:[#allocation5 + $0xb88] sm:$0xff]
    %v425 = vld [vmem:[#allocation5 + $0xb90] sm:$0xff]
    %v426 = vld [vmem:[#allocation5 + $0xb98] sm:$0xff]
    %v427 = vld [vmem:[#allocation5 + $0xba0] sm:$0xff]
    %v428 = vld [vmem:[#allocation5 + $0xba8] sm:$0xff]
    %v429 = vld [vmem:[#allocation5 + $0xbb0] sm:$0xff]
    %v430 = vld [vmem:[#allocation5 + $0xbb8] sm:$0xff]
    %v431 = vld [vmem:[#allocation5 + $0xbc0] sm:$0xff]
    %v432 = vld [vmem:[#allocation5 + $0xbc8] sm:$0xff]
    %v433 = vld [vmem:[#allocation5 + $0xbd0] sm:$0xff]
    %v434 = vld [vmem:[#allocation5 + $0xbd8] sm:$0xff]
    %v435 = vld [vmem:[#allocation5 + $0xbe0] sm:$0xff]
    %v436 = vld [vmem:[#allocation5 + $0xbe8] sm:$0xff]
    %v437 = vld [vmem:[#allocation5 + $0xbf0] sm:$0xff]
    %v438 = vld [vmem:[#allocation5 + $0xbf8] sm:$0xff]
    %v439 = vld [vmem:[#allocation5 + $0xc00] sm:$0xff]
    %v440 = vld [vmem:[#allocation5 + $0xc08] sm:$0xff]
    %v441 = vld [vmem:[#allocation5 + $0xc10] sm:$0xff]
    %v442 = vld [vmem:[#allocation5 + $0xc18] sm:$0xff]
    %v443 = vld [vmem:[#allocation5 + $0xc20] sm:$0xff]
    %v444 = vld [vmem:[#allocation5 + $0xc28] sm:$0xff]
    %v445 = vld [vmem:[#allocation5 + $0xc30] sm:$0xff]
    %v446 = vld [vmem:[#allocation5 + $0xc38] sm:$0xff]
    %v447 = vld [vmem:[#allocation5 + $0xc40] sm:$0xff]
    %v448 = vld [vmem:[#allocation5 + $0xc48] sm:$0xff]
    %v449 = vld [vmem:[#allocation5 + $0xc50] sm:$0xff]
    %v450 = vld [vmem:[#allocation5 + $0xc58] sm:$0xff]
    %v451 = vld [vmem:[#allocation5 + $0xc60] sm:$0xff]
    %v452 = vld [vmem:[#allocation5 + $0xc68] sm:$0xff]
    %v453 = vld [vmem:[#allocation5 + $0xc70] sm:$0xff]
    %v454 = vld [vmem:[#allocation5 + $0xc78] sm:$0xff]
    %v455 = vld [vmem:[#allocation5 + $0xc80] sm:$0xff]
    %v456 = vld [vmem:[#allocation5 + $0xc88] sm:$0xff]
    %v457 = vld [vmem:[#allocation5 + $0xc90] sm:$0xff]
    %v458 = vld [vmem:[#allocation5 + $0xc98] sm:$0xff]
    %v459 = vld [vmem:[#allocation5 + $0xca0] sm:$0xff]
    %v460 = vld [vmem:[#allocation5 + $0xca8] sm:$0xff]
    %v461 = vld [vmem:[#allocation5 + $0xcb0] sm:$0xff]
    %v462 = vld [vmem:[#allocation5 + $0xcb8] sm:$0xff]
    %v463 = vld [vmem:[#allocation5 + $0xcc0] sm:$0xff]
    %v464 = vld [vmem:[#allocation5 + $0xcc8] sm:$0xff]
    %v465 = vld [vmem:[#allocation5 + $0xcd0] sm:$0xff]
    %v466 = vld [vmem:[#allocation5 + $0xcd8] sm:$0xff]
    %v467 = vld [vmem:[#allocation5 + $0xce0] sm:$0xff]
    %v468 = vld [vmem:[#allocation5 + $0xce8] sm:$0xff]
    %v469 = vld [vmem:[#allocation5 + $0xcf0] sm:$0xff]
    %v470 = vld [vmem:[#allocation5 + $0xcf8] sm:$0xff]
    %v471 = vld [vmem:[#allocation5 + $0xd00] sm:$0xff]
    %v472 = vld [vmem:[#allocation5 + $0xd08] sm:$0xff]
    %v473 = vld [vmem:[#allocation5 + $0xd10] sm:$0xff]
    %v474 = vld [vmem:[#allocation5 + $0xd18] sm:$0xff]
    %v475 = vld [vmem:[#allocation5 + $0xd20] sm:$0xff]
    %v476 = vld [vmem:[#allocation5 + $0xd28] sm:$0xff]
    %v477 = vld [vmem:[#allocation5 + $0xd30] sm:$0xff]
    %v478 = vld [vmem:[#allocation5 + $0xd38] sm:$0xff]
    %v479 = vld [vmem:[#allocation5 + $0xd40] sm:$0xff]
    %v480 = vld [vmem:[#allocation5 + $0xd48] sm:$0xff]
    %v481 = vld [vmem:[#allocation5 + $0xd50] sm:$0xff]
    %v482 = vld [vmem:[#allocation5 + $0xd58] sm:$0xff]
    %v483 = vld [vmem:[#allocation5 + $0xd60] sm:$0xff]
    %v484 = vld [vmem:[#allocation5 + $0xd68] sm:$0xff]
    %v485 = vld [vmem:[#allocation5 + $0xd70] sm:$0xff]
    %v486 = vld [vmem:[#allocation5 + $0xd78] sm:$0xff]
    %v501 = vunpack.c.l.b16 %v41
    %v502 = vunpack.c.h.b16 %v41
    %v503 = vunpack.c.l.b16 %v42
    %v504 = vunpack.c.l.b16 %v43
    %v505 = vunpack.c.h.b16 %v43
    %v506 = vunpack.c.l.b16 %v44
    %v507 = vunpack.c.l.b16 %v45
    %v508 = vunpack.c.h.b16 %v45
    %v509 = vunpack.c.l.b16 %v46
    %v510 = vunpack.c.l.b16 %v47
    %v511 = vunpack.c.h.b16 %v47
    %v512 = vunpack.c.l.b16 %v48
    %v513 = vunpack.c.l.b16 %v49
    %v514 = vunpack.c.h.b16 %v49
    %v515 = vunpack.c.l.b16 %v50
    %v516 = vunpack.c.l.b16 %v51
    %v517 = vunpack.c.h.b16 %v51
    %v518 = vunpack.c.l.b16 %v52
    %v519 = vunpack.c.l.b16 %v53
    %v520 = vunpack.c.h.b16 %v53
    %v521 = vunpack.c.l.b16 %v54
    %v522 = vpack.c.b16 %v504, %v501
    %v523 = vpack.c.b16 %v505, %v502
    %v524 = vpack.c.b16 %v506, %v503
    %v525 = vpack.c.b16 %v510, %v507
    %v526 = vpack.c.b16 %v511, %v508
    %v527 = vpack.c.b16 %v512, %v509
    %v528 = vpack.c.b16 %v516, %v513
    %v529 = vpack.c.b16 %v517, %v514
    %v530 = vpack.c.b16 %v518, %v515
    %v531 = vpack.c.b16 %v519, %v519
    %v532 = vpack.c.b16 %v520, %v520
    %v533 = vpack.c.b16 %v521, %v521
    %v978 = vunpack.c.l.b16 %v55
    %v979 = vunpack.c.h.b16 %v55
    %v980 = vunpack.c.l.b16 %v56
    %v981 = vunpack.c.h.b16 %v56
    %v982 = vunpack.c.l.b16 %v57
    %v983 = vunpack.c.h.b16 %v57
    %v984 = vunpack.c.l.b16 %v58
    %v985 = vunpack.c.h.b16 %v58
    %v986 = vunpack.c.l.b16 %v59
    %v987 = vunpack.c.h.b16 %v59
    %v988 = vunpack.c.l.b16 %v60
    %v989 = vunpack.c.h.b16 %v60
    %v990 = vunpack.c.l.b16 %v61
    %v991 = vunpack.c.h.b16 %v61
    %v992 = vunpack.c.l.b16 %v62
    %v993 = vunpack.c.h.b16 %v62
    %v994 = vunpack.c.l.b16 %v63
    %v995 = vunpack.c.h.b16 %v63
    %v996 = vunpack.c.l.b16 %v64
    %v997 = vunpack.c.h.b16 %v64
    %v998 = vunpack.c.l.b16 %v65
    %v999 = vunpack.c.h.b16 %v65
    %v1000 = vunpack.c.l.b16 %v66
    %v1001 = vunpack.c.h.b16 %v66
    %v1002 = vunpack.c.l.b16 %v67
    %v1003 = vunpack.c.h.b16 %v67
    %v1004 = vunpack.c.l.b16 %v68
    %v1005 = vunpack.c.h.b16 %v68
    %v1006 = vunpack.c.l.b16 %v69
    %v1007 = vunpack.c.h.b16 %v69
    %v1008 = vunpack.c.l.b16 %v70
    %v1009 = vunpack.c.h.b16 %v70
    %v1010 = vunpack.c.l.b16 %v71
    %v1011 = vunpack.c.h.b16 %v71
    %v1012 = vunpack.c.l.b16 %v72
    %v1013 = vunpack.c.h.b16 %v72
    %v1014 = vunpack.c.l.b16 %v73
    %v1015 = vunpack.c.h.b16 %v73
    %v1016 = vunpack.c.l.b16 %v74
    %v1017 = vunpack.c.h.b16 %v74
    %v1018 = vunpack.c.l.b16 %v75
    %v1019 = vunpack.c.h.b16 %v75
    %v1020 = vunpack.c.l.b16 %v76
    %v1021 = vunpack.c.h.b16 %v76
    %v1022 = vunpack.c.l.b16 %v77
    %v1023 = vunpack.c.h.b16 %v77
    %v1024 = vunpack.c.l.b16 %v78
    %v1025 = vunpack.c.h.b16 %v78
    %v1026 = vunpack.c.l.b16 %v79
    %v1027 = vunpack.c.h.b16 %v79
    %v1028 = vunpack.c.l.b16 %v80
    %v1029 = vunpack.c.h.b16 %v80
    %v1030 = vunpack.c.l.b16 %v81
    %v1031 = vunpack.c.h.b16 %v81
    %v1032 = vunpack.c.l.b16 %v82
    %v1033 = vunpack.c.h.b16 %v82
    %v1034 = vunpack.c.l.b16 %v83
    %v1035 = vunpack.c.h.b16 %v83
    %v1036 = vunpack.c.l.b16 %v84
    %v1037 = vunpack.c.h.b16 %v84
    %v1038 = vunpack.c.l.b16 %v85
    %v1039 = vunpack.c.h.b16 %v85
    %v1040 = vunpack.c.l.b16 %v86
    %v1041 = vunpack.c.h.b16 %v86
    %v1042 = vunpack.c.l.b16 %v87
    %v1043 = vunpack.c.h.b16 %v87
    %v1044 = vunpack.c.l.b16 %v88
    %v1045 = vunpack.c.h.b16 %v88
    %v1046 = vunpack.c.l.b16 %v89
    %v1047 = vunpack.c.h.b16 %v89
    %v1048 = vunpack.c.l.b16 %v90
    %v1049 = vunpack.c.h.b16 %v90
    %v1050 = vunpack.c.l.b16 %v91
    %v1051 = vunpack.c.h.b16 %v91
    %v1052 = vunpack.c.l.b16 %v92
    %v1053 = vunpack.c.h.b16 %v92
    %v1054 = vunpack.c.l.b16 %v93
    %v1055 = vunpack.c.h.b16 %v93
    %v1056 = vunpack.c.l.b16 %v94
    %v1057 = vunpack.c.h.b16 %v94
    %v1058 = vunpack.c.l.b16 %v95
    %v1059 = vunpack.c.h.b16 %v95
    %v1060 = vunpack.c.l.b16 %v96
    %v1061 = vunpack.c.h.b16 %v96
    %v1062 = vunpack.c.l.b16 %v97
    %v1063 = vunpack.c.h.b16 %v97
    %v1064 = vunpack.c.l.b16 %v98
    %v1065 = vunpack.c.h.b16 %v98
    %v1066 = vunpack.c.l.b16 %v99
    %v1067 = vunpack.c.h.b16 %v99
    %v1068 = vunpack.c.l.b16 %v100
    %v1069 = vunpack.c.h.b16 %v100
    %v1070 = vunpack.c.l.b16 %v101
    %v1071 = vunpack.c.h.b16 %v101
    %v1072 = vunpack.c.l.b16 %v102
    %v1073 = vunpack.c.h.b16 %v102
    %v1074 = vunpack.c.l.b16 %v103
    %v1075 = vunpack.c.h.b16 %v103
    %v1076 = vunpack.c.l.b16 %v104
    %v1077 = vunpack.c.h.b16 %v104
    %v1078 = vunpack.c.l.b16 %v105
    %v1079 = vunpack.c.h.b16 %v105
    %v1080 = vunpack.c.l.b16 %v106
    %v1081 = vunpack.c.h.b16 %v106
    %v1082 = vunpack.c.l.b16 %v107
    %v1083 = vunpack.c.h.b16 %v107
    %v1084 = vunpack.c.l.b16 %v108
    %v1085 = vunpack.c.h.b16 %v108
    %v1086 = vunpack.c.l.b16 %v109
    %v1087 = vunpack.c.h.b16 %v109
    %v1088 = vunpack.c.l.b16 %v110
    %v1089 = vunpack.c.h.b16 %v110
    %v1090 = vunpack.c.l.b16 %v111
    %v1091 = vunpack.c.h.b16 %v111
    %v1092 = vunpack.c.l.b16 %v112
    %v1093 = vunpack.c.h.b16 %v112
    %v1094 = vunpack.c.l.b16 %v113
    %v1095 = vunpack.c.h.b16 %v113
    %v1096 = vunpack.c.l.b16 %v114
    %v1097 = vunpack.c.h.b16 %v114
    %v1098 = vunpack.c.l.b16 %v115
    %v1099 = vunpack.c.h.b16 %v115
    %v1100 = vunpack.c.l.b16 %v116
    %v1101 = vunpack.c.h.b16 %v116
    %v1102 = vunpack.c.l.b16 %v117
    %v1103 = vunpack.c.h.b16 %v117
    %v1104 = vunpack.c.l.b16 %v118
    %v1105 = vunpack.c.h.b16 %v118
    %v1106 = vunpack.c.l.b16 %v119
    %v1107 = vunpack.c.h.b16 %v119
    %v1108 = vunpack.c.l.b16 %v120
    %v1109 = vunpack.c.h.b16 %v120
    %v1110 = vunpack.c.l.b16 %v121
    %v1111 = vunpack.c.h.b16 %v121
    %v1112 = vunpack.c.l.b16 %v122
    %v1113 = vunpack.c.h.b16 %v122
    %v1114 = vunpack.c.l.b16 %v123
    %v1115 = vunpack.c.h.b16 %v123
    %v1116 = vunpack.c.l.b16 %v124
    %v1117 = vunpack.c.h.b16 %v124
    %v1118 = vunpack.c.l.b16 %v125
    %v1119 = vunpack.c.h.b16 %v125
    %v1120 = vunpack.c.l.b16 %v126
    %v1121 = vunpack.c.h.b16 %v126
    %v1122 = vunpack.c.l.b16 %v127
    %v1123 = vunpack.c.h.b16 %v127
    %v1124 = vunpack.c.l.b16 %v128
    %v1125 = vunpack.c.h.b16 %v128
    %v1126 = vunpack.c.l.b16 %v129
    %v1127 = vunpack.c.h.b16 %v129
    %v1128 = vunpack.c.l.b16 %v130
    %v1129 = vunpack.c.h.b16 %v130
    %v1130 = vunpack.c.l.b16 %v131
    %v1131 = vunpack.c.h.b16 %v131
    %v1132 = vunpack.c.l.b16 %v132
    %v1133 = vunpack.c.h.b16 %v132
    %v1134 = vunpack.c.l.b16 %v133
    %v1135 = vunpack.c.h.b16 %v133
    %v1136 = vunpack.c.l.b16 %v134
    %v1137 = vunpack.c.h.b16 %v134
    %v1138 = vunpack.c.l.b16 %v135
    %v1139 = vunpack.c.h.b16 %v135
    %v1140 = vunpack.c.l.b16 %v136
    %v1141 = vunpack.c.h.b16 %v136
    %v1142 = vunpack.c.l.b16 %v137
    %v1143 = vunpack.c.h.b16 %v137
    %v1144 = vunpack.c.l.b16 %v138
    %v1145 = vunpack.c.h.b16 %v138
    %v1146 = vunpack.c.l.b16 %v139
    %v1147 = vunpack.c.h.b16 %v139
    %v1148 = vunpack.c.l.b16 %v140
    %v1149 = vunpack.c.h.b16 %v140
    %v1150 = vunpack.c.l.b16 %v141
    %v1151 = vunpack.c.h.b16 %v141
    %v1152 = vunpack.c.l.b16 %v142
    %v1153 = vunpack.c.h.b16 %v142
    %v1154 = vunpack.c.l.b16 %v143
    %v1155 = vunpack.c.h.b16 %v143
    %v1156 = vunpack.c.l.b16 %v144
    %v1157 = vunpack.c.h.b16 %v144
    %v1158 = vunpack.c.l.b16 %v145
    %v1159 = vunpack.c.h.b16 %v145
    %v1160 = vunpack.c.l.b16 %v146
    %v1161 = vunpack.c.h.b16 %v146
    %v1162 = vunpack.c.l.b16 %v147
    %v1163 = vunpack.c.h.b16 %v147
    %v1164 = vunpack.c.l.b16 %v148
    %v1165 = vunpack.c.h.b16 %v148
    %v1166 = vunpack.c.l.b16 %v149
    %v1167 = vunpack.c.h.b16 %v149
    %v1168 = vunpack.c.l.b16 %v150
    %v1169 = vunpack.c.h.b16 %v150
    %v1170 = vunpack.c.l.b16 %v151
    %v1171 = vunpack.c.h.b16 %v151
    %v1172 = vunpack.c.l.b16 %v152
    %v1173 = vunpack.c.h.b16 %v152
    %v1174 = vunpack.c.l.b16 %v153
    %v1175 = vunpack.c.h.b16 %v153
    %v1176 = vunpack.c.l.b16 %v154
    %v1177 = vunpack.c.h.b16 %v154
    %v1178 = vunpack.c.l.b16 %v155
    %v1179 = vunpack.c.h.b16 %v155
    %v1180 = vunpack.c.l.b16 %v156
    %v1181 = vunpack.c.h.b16 %v156
    %v1182 = vunpack.c.l.b16 %v157
    %v1183 = vunpack.c.h.b16 %v157
    %v1184 = vunpack.c.l.b16 %v158
    %v1185 = vunpack.c.h.b16 %v158
    %v1186 = vunpack.c.l.b16 %v159
    %v1187 = vunpack.c.h.b16 %v159
    %v1188 = vunpack.c.l.b16 %v160
    %v1189 = vunpack.c.h.b16 %v160
    %v1190 = vunpack.c.l.b16 %v161
    %v1191 = vunpack.c.h.b16 %v161
    %v1192 = vunpack.c.l.b16 %v162
    %v1193 = vunpack.c.h.b16 %v162
    %v1194 = vunpack.c.l.b16 %v163
    %v1195 = vunpack.c.h.b16 %v163
    %v1196 = vunpack.c.l.b16 %v164
    %v1197 = vunpack.c.h.b16 %v164
    %v1198 = vunpack.c.l.b16 %v165
    %v1199 = vunpack.c.h.b16 %v165
    %v1200 = vunpack.c.l.b16 %v166
    %v1201 = vunpack.c.h.b16 %v166
    %v1202 = vunpack.c.l.b16 %v167
    %v1203 = vunpack.c.h.b16 %v167
    %v1204 = vunpack.c.l.b16 %v168
    %v1205 = vunpack.c.h.b16 %v168
    %v1206 = vunpack.c.l.b16 %v169
    %v1207 = vunpack.c.h.b16 %v169
    %v1208 = vunpack.c.l.b16 %v170
    %v1209 = vunpack.c.h.b16 %v170
    %v1210 = vunpack.c.l.b16 %v171
    %v1211 = vunpack.c.h.b16 %v171
    %v1212 = vunpack.c.l.b16 %v172
    %v1213 = vunpack.c.h.b16 %v172
    %v1214 = vunpack.c.l.b16 %v173
    %v1215 = vunpack.c.h.b16 %v173
    %v1216 = vunpack.c.l.b16 %v174
    %v1217 = vunpack.c.h.b16 %v174
    %v1218 = vunpack.c.l.b16 %v175
    %v1219 = vunpack.c.h.b16 %v175
    %v1220 = vunpack.c.l.b16 %v176
    %v1221 = vunpack.c.h.b16 %v176
    %v1222 = vunpack.c.l.b16 %v177
    %v1223 = vunpack.c.h.b16 %v177
    %v1224 = vunpack.c.l.b16 %v178
    %v1225 = vunpack.c.h.b16 %v178
    %v1226 = vunpack.c.l.b16 %v179
    %v1227 = vunpack.c.h.b16 %v179
    %v1228 = vunpack.c.l.b16 %v180
    %v1229 = vunpack.c.h.b16 %v180
    %v1230 = vunpack.c.l.b16 %v181
    %v1231 = vunpack.c.h.b16 %v181
    %v1232 = vunpack.c.l.b16 %v182
    %v1233 = vunpack.c.h.b16 %v182
    %v1234 = vunpack.c.l.b16 %v183
    %v1235 = vunpack.c.h.b16 %v183
    %v1236 = vunpack.c.l.b16 %v184
    %v1237 = vunpack.c.h.b16 %v184
    %v1238 = vunpack.c.l.b16 %v185
    %v1239 = vunpack.c.h.b16 %v185
    %v1240 = vunpack.c.l.b16 %v186
    %v1241 = vunpack.c.h.b16 %v186
    %v1242 = vunpack.c.l.b16 %v187
    %v1243 = vunpack.c.h.b16 %v187
    %v1244 = vunpack.c.l.b16 %v188
    %v1245 = vunpack.c.h.b16 %v188
    %v1246 = vunpack.c.l.b16 %v189
    %v1247 = vunpack.c.h.b16 %v189
    %v1248 = vunpack.c.l.b16 %v190
    %v1249 = vunpack.c.h.b16 %v190
    %v1250 = vunpack.c.l.b16 %v191
    %v1251 = vunpack.c.h.b16 %v191
    %v1252 = vunpack.c.l.b16 %v192
    %v1253 = vunpack.c.h.b16 %v192
    %v1254 = vunpack.c.l.b16 %v193
    %v1255 = vunpack.c.h.b16 %v193
    %v1256 = vunpack.c.l.b16 %v194
    %v1257 = vunpack.c.h.b16 %v194
    %v1258 = vunpack.c.l.b16 %v195
    %v1259 = vunpack.c.h.b16 %v195
    %v1260 = vunpack.c.l.b16 %v196
    %v1261 = vunpack.c.h.b16 %v196
    %v1262 = vunpack.c.l.b16 %v197
    %v1263 = vunpack.c.h.b16 %v197
    %v1264 = vunpack.c.l.b16 %v198
    %v1265 = vunpack.c.h.b16 %v198
    %v1266 = vunpack.c.l.b16 %v199
    %v1267 = vunpack.c.h.b16 %v199
    %v1268 = vunpack.c.l.b16 %v200
    %v1269 = vunpack.c.h.b16 %v200
    %v1270 = vunpack.c.l.b16 %v201
    %v1271 = vunpack.c.h.b16 %v201
    %v1272 = vunpack.c.l.b16 %v202
    %v1273 = vunpack.c.h.b16 %v202
    %v1274 = vunpack.c.l.b16 %v203
    %v1275 = vunpack.c.h.b16 %v203
    %v1276 = vunpack.c.l.b16 %v204
    %v1277 = vunpack.c.h.b16 %v204
    %v1278 = vunpack.c.l.b16 %v205
    %v1279 = vunpack.c.h.b16 %v205
    %v1280 = vunpack.c.l.b16 %v206
    %v1281 = vunpack.c.h.b16 %v206
    %v1282 = vunpack.c.l.b16 %v207
    %v1283 = vunpack.c.h.b16 %v207
    %v1284 = vunpack.c.l.b16 %v208
    %v1285 = vunpack.c.h.b16 %v208
    %v1286 = vunpack.c.l.b16 %v209
    %v1287 = vunpack.c.h.b16 %v209
    %v1288 = vunpack.c.l.b16 %v210
    %v1289 = vunpack.c.h.b16 %v210
    %v1290 = vunpack.c.l.b16 %v211
    %v1291 = vunpack.c.h.b16 %v211
    %v1292 = vunpack.c.l.b16 %v212
    %v1293 = vunpack.c.h.b16 %v212
    %v1294 = vunpack.c.l.b16 %v213
    %v1295 = vunpack.c.h.b16 %v213
    %v1296 = vunpack.c.l.b16 %v214
    %v1297 = vunpack.c.h.b16 %v214
    %v1298 = vunpack.c.l.b16 %v215
    %v1299 = vunpack.c.h.b16 %v215
    %v1300 = vunpack.c.l.b16 %v216
    %v1301 = vunpack.c.h.b16 %v216
    %v1302 = vunpack.c.l.b16 %v217
    %v1303 = vunpack.c.h.b16 %v217
    %v1304 = vunpack.c.l.b16 %v218
    %v1305 = vunpack.c.h.b16 %v218
    %v1306 = vunpack.c.l.b16 %v219
    %v1307 = vunpack.c.h.b16 %v219
    %v1308 = vunpack.c.l.b16 %v220
    %v1309 = vunpack.c.h.b16 %v220
    %v1310 = vunpack.c.l.b16 %v221
    %v1311 = vunpack.c.h.b16 %v221
    %v1312 = vunpack.c.l.b16 %v222
    %v1313 = vunpack.c.h.b16 %v222
    %v1314 = vunpack.c.l.b16 %v223
    %v1315 = vunpack.c.h.b16 %v223
    %v1316 = vunpack.c.l.b16 %v224
    %v1317 = vunpack.c.h.b16 %v224
    %v1318 = vunpack.c.l.b16 %v225
    %v1319 = vunpack.c.h.b16 %v225
    %v1320 = vunpack.c.l.b16 %v226
    %v1321 = vunpack.c.h.b16 %v226
    %v1322 = vunpack.c.l.b16 %v227
    %v1323 = vunpack.c.h.b16 %v227
    %v1324 = vunpack.c.l.b16 %v228
    %v1325 = vunpack.c.h.b16 %v228
    %v1326 = vunpack.c.l.b16 %v229
    %v1327 = vunpack.c.h.b16 %v229
    %v1328 = vunpack.c.l.b16 %v230
    %v1329 = vunpack.c.h.b16 %v230
    %v1330 = vunpack.c.l.b16 %v231
    %v1331 = vunpack.c.h.b16 %v231
    %v1332 = vunpack.c.l.b16 %v232
    %v1333 = vunpack.c.h.b16 %v232
    %v1334 = vunpack.c.l.b16 %v233
    %v1335 = vunpack.c.h.b16 %v233
    %v1336 = vunpack.c.l.b16 %v234
    %v1337 = vunpack.c.h.b16 %v234
    %v1338 = vunpack.c.l.b16 %v235
    %v1339 = vunpack.c.h.b16 %v235
    %v1340 = vunpack.c.l.b16 %v236
    %v1341 = vunpack.c.h.b16 %v236
    %v1342 = vunpack.c.l.b16 %v237
    %v1343 = vunpack.c.h.b16 %v237
    %v1344 = vunpack.c.l.b16 %v238
    %v1345 = vunpack.c.h.b16 %v238
    %v1346 = vunpack.c.l.b16 %v239
    %v1347 = vunpack.c.h.b16 %v239
    %v1348 = vunpack.c.l.b16 %v240
    %v1349 = vunpack.c.h.b16 %v240
    %v1350 = vunpack.c.l.b16 %v241
    %v1351 = vunpack.c.h.b16 %v241
    %v1352 = vunpack.c.l.b16 %v242
    %v1353 = vunpack.c.h.b16 %v242
    %v1354 = vunpack.c.l.b16 %v243
    %v1355 = vunpack.c.h.b16 %v243
    %v1356 = vunpack.c.l.b16 %v244
    %v1357 = vunpack.c.h.b16 %v244
    %v1358 = vunpack.c.l.b16 %v245
    %v1359 = vunpack.c.h.b16 %v245
    %v1360 = vunpack.c.l.b16 %v246
    %v1361 = vunpack.c.h.b16 %v246
    %v1362 = vunpack.c.l.b16 %v247
    %v1363 = vunpack.c.h.b16 %v247
    %v1364 = vunpack.c.l.b16 %v248
    %v1365 = vunpack.c.h.b16 %v248
    %v1366 = vunpack.c.l.b16 %v249
    %v1367 = vunpack.c.h.b16 %v249
    %v1368 = vunpack.c.l.b16 %v250
    %v1369 = vunpack.c.h.b16 %v250
    %v1370 = vunpack.c.l.b16 %v251
    %v1371 = vunpack.c.h.b16 %v251
    %v1372 = vunpack.c.l.b16 %v252
    %v1373 = vunpack.c.h.b16 %v252
    %v1374 = vunpack.c.l.b16 %v253
    %v1375 = vunpack.c.h.b16 %v253
    %v1376 = vunpack.c.l.b16 %v254
    %v1377 = vunpack.c.h.b16 %v254
    %v1378 = vunpack.c.l.b16 %v255
    %v1379 = vunpack.c.h.b16 %v255
    %v1380 = vunpack.c.l.b16 %v256
    %v1381 = vunpack.c.h.b16 %v256
    %v1382 = vunpack.c.l.b16 %v257
    %v1383 = vunpack.c.h.b16 %v257
    %v1384 = vunpack.c.l.b16 %v258
    %v1385 = vunpack.c.h.b16 %v258
    %v1386 = vunpack.c.l.b16 %v259
    %v1387 = vunpack.c.h.b16 %v259
    %v1388 = vunpack.c.l.b16 %v260
    %v1389 = vunpack.c.h.b16 %v260
    %v1390 = vunpack.c.l.b16 %v261
    %v1391 = vunpack.c.h.b16 %v261
    %v1392 = vunpack.c.l.b16 %v262
    %v1393 = vunpack.c.h.b16 %v262
    %v1394 = vunpack.c.l.b16 %v263
    %v1395 = vunpack.c.h.b16 %v263
    %v1396 = vunpack.c.l.b16 %v264
    %v1397 = vunpack.c.h.b16 %v264
    %v1398 = vunpack.c.l.b16 %v265
    %v1399 = vunpack.c.h.b16 %v265
    %v1400 = vunpack.c.l.b16 %v266
    %v1401 = vunpack.c.h.b16 %v266
    %v1402 = vunpack.c.l.b16 %v267
    %v1403 = vunpack.c.h.b16 %v267
    %v1404 = vunpack.c.l.b16 %v268
    %v1405 = vunpack.c.h.b16 %v268
    %v1406 = vunpack.c.l.b16 %v269
    %v1407 = vunpack.c.h.b16 %v269
    %v1408 = vunpack.c.l.b16 %v270
    %v1409 = vunpack.c.h.b16 %v270
    %v1410 = vunpack.c.l.b16 %v271
    %v1411 = vunpack.c.h.b16 %v271
    %v1412 = vunpack.c.l.b16 %v272
    %v1413 = vunpack.c.h.b16 %v272
    %v1414 = vunpack.c.l.b16 %v273
    %v1415 = vunpack.c.h.b16 %v273
    %v1416 = vunpack.c.l.b16 %v274
    %v1417 = vunpack.c.h.b16 %v274
    %v1418 = vunpack.c.l.b16 %v275
    %v1419 = vunpack.c.h.b16 %v275
    %v1420 = vunpack.c.l.b16 %v276
    %v1421 = vunpack.c.h.b16 %v276
    %v1422 = vunpack.c.l.b16 %v277
    %v1423 = vunpack.c.h.b16 %v277
    %v1424 = vunpack.c.l.b16 %v278
    %v1425 = vunpack.c.h.b16 %v278
    %v1426 = vunpack.c.l.b16 %v279
    %v1427 = vunpack.c.h.b16 %v279
    %v1428 = vunpack.c.l.b16 %v280
    %v1429 = vunpack.c.h.b16 %v280
    %v1430 = vunpack.c.l.b16 %v281
    %v1431 = vunpack.c.h.b16 %v281
    %v1432 = vunpack.c.l.b16 %v282
    %v1433 = vunpack.c.h.b16 %v282
    %v1434 = vunpack.c.l.b16 %v283
    %v1435 = vunpack.c.h.b16 %v283
    %v1436 = vunpack.c.l.b16 %v284
    %v1437 = vunpack.c.h.b16 %v284
    %v1438 = vunpack.c.l.b16 %v285
    %v1439 = vunpack.c.h.b16 %v285
    %v1440 = vunpack.c.l.b16 %v286
    %v1441 = vunpack.c.h.b16 %v286
    %v1442 = vunpack.c.l.b16 %v287
    %v1443 = vunpack.c.h.b16 %v287
    %v1444 = vunpack.c.l.b16 %v288
    %v1445 = vunpack.c.h.b16 %v288
    %v1446 = vunpack.c.l.b16 %v289
    %v1447 = vunpack.c.h.b16 %v289
    %v1448 = vunpack.c.l.b16 %v290
    %v1449 = vunpack.c.h.b16 %v290
    %v1450 = vunpack.c.l.b16 %v291
    %v1451 = vunpack.c.h.b16 %v291
    %v1452 = vunpack.c.l.b16 %v292
    %v1453 = vunpack.c.h.b16 %v292
    %v1454 = vunpack.c.l.b16 %v293
    %v1455 = vunpack.c.h.b16 %v293
    %v1456 = vunpack.c.l.b16 %v294
    %v1457 = vunpack.c.h.b16 %v294
    %v1458 = vunpack.c.l.b16 %v295
    %v1459 = vunpack.c.h.b16 %v295
    %v1460 = vunpack.c.l.b16 %v296
    %v1461 = vunpack.c.h.b16 %v296
    %v1462 = vunpack.c.l.b16 %v297
    %v1463 = vunpack.c.h.b16 %v297
    %v1464 = vunpack.c.l.b16 %v298
    %v1465 = vunpack.c.h.b16 %v298
    %v1466 = vunpack.c.l.b16 %v299
    %v1467 = vunpack.c.h.b16 %v299
    %v1468 = vunpack.c.l.b16 %v300
    %v1469 = vunpack.c.h.b16 %v300
    %v1470 = vunpack.c.l.b16 %v301
    %v1471 = vunpack.c.h.b16 %v301
    %v1472 = vunpack.c.l.b16 %v302
    %v1473 = vunpack.c.h.b16 %v302
    %v1474 = vunpack.c.l.b16 %v303
    %v1475 = vunpack.c.h.b16 %v303
    %v1476 = vunpack.c.l.b16 %v304
    %v1477 = vunpack.c.h.b16 %v304
    %v1478 = vunpack.c.l.b16 %v305
    %v1479 = vunpack.c.h.b16 %v305
    %v1480 = vunpack.c.l.b16 %v306
    %v1481 = vunpack.c.h.b16 %v306
    %v1482 = vunpack.c.l.b16 %v307
    %v1483 = vunpack.c.h.b16 %v307
    %v1484 = vunpack.c.l.b16 %v308
    %v1485 = vunpack.c.h.b16 %v308
    %v1486 = vunpack.c.l.b16 %v309
    %v1487 = vunpack.c.h.b16 %v309
    %v1488 = vunpack.c.l.b16 %v310
    %v1489 = vunpack.c.h.b16 %v310
    %v1490 = vunpack.c.l.b16 %v311
    %v1491 = vunpack.c.h.b16 %v311
    %v1492 = vunpack.c.l.b16 %v312
    %v1493 = vunpack.c.h.b16 %v312
    %v1494 = vunpack.c.l.b16 %v313
    %v1495 = vunpack.c.h.b16 %v313
    %v1496 = vunpack.c.l.b16 %v314
    %v1497 = vunpack.c.h.b16 %v314
    %v1498 = vunpack.c.l.b16 %v315
    %v1499 = vunpack.c.h.b16 %v315
    %v1500 = vunpack.c.l.b16 %v316
    %v1501 = vunpack.c.h.b16 %v316
    %v1502 = vunpack.c.l.b16 %v317
    %v1503 = vunpack.c.h.b16 %v317
    %v1504 = vunpack.c.l.b16 %v318
    %v1505 = vunpack.c.h.b16 %v318
    %v1506 = vunpack.c.l.b16 %v319
    %v1507 = vunpack.c.h.b16 %v319
    %v1508 = vunpack.c.l.b16 %v320
    %v1509 = vunpack.c.h.b16 %v320
    %v1510 = vunpack.c.l.b16 %v321
    %v1511 = vunpack.c.h.b16 %v321
    %v1512 = vunpack.c.l.b16 %v322
    %v1513 = vunpack.c.h.b16 %v322
    %v1514 = vunpack.c.l.b16 %v323
    %v1515 = vunpack.c.h.b16 %v323
    %v1516 = vunpack.c.l.b16 %v324
    %v1517 = vunpack.c.h.b16 %v324
    %v1518 = vunpack.c.l.b16 %v325
    %v1519 = vunpack.c.h.b16 %v325
    %v1520 = vunpack.c.l.b16 %v326
    %v1521 = vunpack.c.h.b16 %v326
    %v1522 = vunpack.c.l.b16 %v327
    %v1523 = vunpack.c.h.b16 %v327
    %v1524 = vunpack.c.l.b16 %v328
    %v1525 = vunpack.c.h.b16 %v328
    %v1526 = vunpack.c.l.b16 %v329
    %v1527 = vunpack.c.h.b16 %v329
    %v1528 = vunpack.c.l.b16 %v330
    %v1529 = vunpack.c.h.b16 %v330
    %v1530 = vunpack.c.l.b16 %v331
    %v1531 = vunpack.c.h.b16 %v331
    %v1532 = vunpack.c.l.b16 %v332
    %v1533 = vunpack.c.h.b16 %v332
    %v1534 = vunpack.c.l.b16 %v333
    %v1535 = vunpack.c.h.b16 %v333
    %v1536 = vunpack.c.l.b16 %v334
    %v1537 = vunpack.c.h.b16 %v334
    %v1538 = vunpack.c.l.b16 %v335
    %v1539 = vunpack.c.h.b16 %v335
    %v1540 = vunpack.c.l.b16 %v336
    %v1541 = vunpack.c.h.b16 %v336
    %v1542 = vunpack.c.l.b16 %v337
    %v1543 = vunpack.c.h.b16 %v337
    %v1544 = vunpack.c.l.b16 %v338
    %v1545 = vunpack.c.h.b16 %v338
    %v1546 = vunpack.c.l.b16 %v339
    %v1547 = vunpack.c.h.b16 %v339
    %v1548 = vunpack.c.l.b16 %v340
    %v1549 = vunpack.c.h.b16 %v340
    %v1550 = vunpack.c.l.b16 %v341
    %v1551 = vunpack.c.h.b16 %v341
    %v1552 = vunpack.c.l.b16 %v342
    %v1553 = vunpack.c.h.b16 %v342
    %v1554 = vunpack.c.l.b16 %v343
    %v1555 = vunpack.c.h.b16 %v343
    %v1556 = vunpack.c.l.b16 %v344
    %v1557 = vunpack.c.h.b16 %v344
    %v1558 = vunpack.c.l.b16 %v345
    %v1559 = vunpack.c.h.b16 %v345
    %v1560 = vunpack.c.l.b16 %v346
    %v1561 = vunpack.c.h.b16 %v346
    %v1562 = vunpack.c.l.b16 %v347
    %v1563 = vunpack.c.h.b16 %v347
    %v1564 = vunpack.c.l.b16 %v348
    %v1565 = vunpack.c.h.b16 %v348
    %v1566 = vunpack.c.l.b16 %v349
    %v1567 = vunpack.c.h.b16 %v349
    %v1568 = vunpack.c.l.b16 %v350
    %v1569 = vunpack.c.h.b16 %v350
    %v1570 = vunpack.c.l.b16 %v351
    %v1571 = vunpack.c.h.b16 %v351
    %v1572 = vunpack.c.l.b16 %v352
    %v1573 = vunpack.c.h.b16 %v352
    %v1574 = vunpack.c.l.b16 %v353
    %v1575 = vunpack.c.h.b16 %v353
    %v1576 = vunpack.c.l.b16 %v354
    %v1577 = vunpack.c.h.b16 %v354
    %v1578 = vunpack.c.l.b16 %v355
    %v1579 = vunpack.c.h.b16 %v355
    %v1580 = vunpack.c.l.b16 %v356
    %v1581 = vunpack.c.h.b16 %v356
    %v1582 = vunpack.c.l.b16 %v357
    %v1583 = vunpack.c.h.b16 %v357
    %v1584 = vunpack.c.l.b16 %v358
    %v1585 = vunpack.c.h.b16 %v358
    %v1586 = vunpack.c.l.b16 %v359
    %v1587 = vunpack.c.h.b16 %v359
    %v1588 = vunpack.c.l.b16 %v360
    %v1589 = vunpack.c.h.b16 %v360
    %v1590 = vunpack.c.l.b16 %v361
    %v1591 = vunpack.c.h.b16 %v361
    %v1592 = vunpack.c.l.b16 %v362
    %v1593 = vunpack.c.h.b16 %v362
    %v1594 = vunpack.c.l.b16 %v363
    %v1595 = vunpack.c.h.b16 %v363
    %v1596 = vunpack.c.l.b16 %v364
    %v1597 = vunpack.c.h.b16 %v364
    %v1598 = vunpack.c.l.b16 %v365
    %v1599 = vunpack.c.h.b16 %v365
    %v1600 = vunpack.c.l.b16 %v366
    %v1601 = vunpack.c.h.b16 %v366
    %v1602 = vunpack.c.l.b16 %v367
    %v1603 = vunpack.c.h.b16 %v367
    %v1604 = vunpack.c.l.b16 %v368
    %v1605 = vunpack.c.h.b16 %v368
    %v1606 = vunpack.c.l.b16 %v369
    %v1607 = vunpack.c.h.b16 %v369
    %v1608 = vunpack.c.l.b16 %v370
    %v1609 = vunpack.c.h.b16 %v370
    %v1610 = vunpack.c.l.b16 %v371
    %v1611 = vunpack.c.h.b16 %v371
    %v1612 = vunpack.c.l.b16 %v372
    %v1613 = vunpack.c.h.b16 %v372
    %v1614 = vunpack.c.l.b16 %v373
    %v1615 = vunpack.c.h.b16 %v373
    %v1616 = vunpack.c.l.b16 %v374
    %v1617 = vunpack.c.h.b16 %v374
    %v1618 = vunpack.c.l.b16 %v375
    %v1619 = vunpack.c.h.b16 %v375
    %v1620 = vunpack.c.l.b16 %v376
    %v1621 = vunpack.c.h.b16 %v376
    %v1622 = vunpack.c.l.b16 %v377
    %v1623 = vunpack.c.h.b16 %v377
    %v1624 = vunpack.c.l.b16 %v378
    %v1625 = vunpack.c.h.b16 %v378
    %v1626 = vunpack.c.l.b16 %v379
    %v1627 = vunpack.c.h.b16 %v379
    %v1628 = vunpack.c.l.b16 %v380
    %v1629 = vunpack.c.h.b16 %v380
    %v1630 = vunpack.c.l.b16 %v381
    %v1631 = vunpack.c.h.b16 %v381
    %v1632 = vunpack.c.l.b16 %v382
    %v1633 = vunpack.c.h.b16 %v382
    %v1634 = vunpack.c.l.b16 %v383
    %v1635 = vunpack.c.h.b16 %v383
    %v1636 = vunpack.c.l.b16 %v384
    %v1637 = vunpack.c.h.b16 %v384
    %v1638 = vunpack.c.l.b16 %v385
    %v1639 = vunpack.c.h.b16 %v385
    %v1640 = vunpack.c.l.b16 %v386
    %v1641 = vunpack.c.h.b16 %v386
    %v1642 = vunpack.c.l.b16 %v387
    %v1643 = vunpack.c.h.b16 %v387
    %v1644 = vunpack.c.l.b16 %v388
    %v1645 = vunpack.c.h.b16 %v388
    %v1646 = vunpack.c.l.b16 %v389
    %v1647 = vunpack.c.h.b16 %v389
    %v1648 = vunpack.c.l.b16 %v390
    %v1649 = vunpack.c.h.b16 %v390
    %v1650 = vunpack.c.l.b16 %v391
    %v1651 = vunpack.c.h.b16 %v391
    %v1652 = vunpack.c.l.b16 %v392
    %v1653 = vunpack.c.h.b16 %v392
    %v1654 = vunpack.c.l.b16 %v393
    %v1655 = vunpack.c.h.b16 %v393
    %v1656 = vunpack.c.l.b16 %v394
    %v1657 = vunpack.c.h.b16 %v394
    %v1658 = vunpack.c.l.b16 %v395
    %v1659 = vunpack.c.h.b16 %v395
    %v1660 = vunpack.c.l.b16 %v396
    %v1661 = vunpack.c.h.b16 %v396
    %v1662 = vunpack.c.l.b16 %v397
    %v1663 = vunpack.c.h.b16 %v397
    %v1664 = vunpack.c.l.b16 %v398
    %v1665 = vunpack.c.h.b16 %v398
    %v1666 = vunpack.c.l.b16 %v399
    %v1667 = vunpack.c.h.b16 %v399
    %v1668 = vunpack.c.l.b16 %v400
    %v1669 = vunpack.c.h.b16 %v400
    %v1670 = vunpack.c.l.b16 %v401
    %v1671 = vunpack.c.h.b16 %v401
    %v1672 = vunpack.c.l.b16 %v402
    %v1673 = vunpack.c.h.b16 %v402
    %v1674 = vunpack.c.l.b16 %v403
    %v1675 = vunpack.c.h.b16 %v403
    %v1676 = vunpack.c.l.b16 %v404
    %v1677 = vunpack.c.h.b16 %v404
    %v1678 = vunpack.c.l.b16 %v405
    %v1679 = vunpack.c.h.b16 %v405
    %v1680 = vunpack.c.l.b16 %v406
    %v1681 = vunpack.c.h.b16 %v406
    %v1682 = vunpack.c.l.b16 %v407
    %v1683 = vunpack.c.h.b16 %v407
    %v1684 = vunpack.c.l.b16 %v408
    %v1685 = vunpack.c.h.b16 %v408
    %v1686 = vunpack.c.l.b16 %v409
    %v1687 = vunpack.c.h.b16 %v409
    %v1688 = vunpack.c.l.b16 %v410
    %v1689 = vunpack.c.h.b16 %v410
    %v1690 = vunpack.c.l.b16 %v411
    %v1691 = vunpack.c.h.b16 %v411
    %v1692 = vunpack.c.l.b16 %v412
    %v1693 = vunpack.c.h.b16 %v412
    %v1694 = vunpack.c.l.b16 %v413
    %v1695 = vunpack.c.h.b16 %v413
    %v1696 = vunpack.c.l.b16 %v414
    %v1697 = vunpack.c.h.b16 %v414
    %v1698 = vunpack.c.l.b16 %v415
    %v1699 = vunpack.c.h.b16 %v415
    %v1700 = vunpack.c.l.b16 %v416
    %v1701 = vunpack.c.h.b16 %v416
    %v1702 = vunpack.c.l.b16 %v417
    %v1703 = vunpack.c.h.b16 %v417
    %v1704 = vunpack.c.l.b16 %v418
    %v1705 = vunpack.c.h.b16 %v418
    %v1706 = vunpack.c.l.b16 %v419
    %v1707 = vunpack.c.h.b16 %v419
    %v1708 = vunpack.c.l.b16 %v420
    %v1709 = vunpack.c.h.b16 %v420
    %v1710 = vunpack.c.l.b16 %v421
    %v1711 = vunpack.c.h.b16 %v421
    %v1712 = vunpack.c.l.b16 %v422
    %v1713 = vunpack.c.h.b16 %v422
    %v1714 = vunpack.c.l.b16 %v423
    %v1715 = vunpack.c.h.b16 %v423
    %v1716 = vunpack.c.l.b16 %v424
    %v1717 = vunpack.c.h.b16 %v424
    %v1718 = vunpack.c.l.b16 %v425
    %v1719 = vunpack.c.h.b16 %v425
    %v1720 = vunpack.c.l.b16 %v426
    %v1721 = vunpack.c.h.b16 %v426
    %v1722 = vunpack.c.l.b16 %v427
    %v1723 = vunpack.c.h.b16 %v427
    %v1724 = vunpack.c.l.b16 %v428
    %v1725 = vunpack.c.h.b16 %v428
    %v1726 = vunpack.c.l.b16 %v429
    %v1727 = vunpack.c.h.b16 %v429
    %v1728 = vunpack.c.l.b16 %v430
    %v1729 = vunpack.c.h.b16 %v430
    %v1730 = vunpack.c.l.b16 %v431
    %v1731 = vunpack.c.h.b16 %v431
    %v1732 = vunpack.c.l.b16 %v432
    %v1733 = vunpack.c.h.b16 %v432
    %v1734 = vunpack.c.l.b16 %v433
    %v1735 = vunpack.c.h.b16 %v433
    %v1736 = vunpack.c.l.b16 %v434
    %v1737 = vunpack.c.h.b16 %v434
    %v1738 = vunpack.c.l.b16 %v435
    %v1739 = vunpack.c.h.b16 %v435
    %v1740 = vunpack.c.l.b16 %v436
    %v1741 = vunpack.c.h.b16 %v436
    %v1742 = vunpack.c.l.b16 %v437
    %v1743 = vunpack.c.h.b16 %v437
    %v1744 = vunpack.c.l.b16 %v438
    %v1745 = vunpack.c.h.b16 %v438
    %v1746 = vunpack.c.l.b16 %v439
    %v1747 = vunpack.c.h.b16 %v439
    %v1748 = vunpack.c.l.b16 %v440
    %v1749 = vunpack.c.h.b16 %v440
    %v1750 = vunpack.c.l.b16 %v441
    %v1751 = vunpack.c.h.b16 %v441
    %v1752 = vunpack.c.l.b16 %v442
    %v1753 = vunpack.c.h.b16 %v442
    %v1754 = vunpack.c.l.b16 %v443
    %v1755 = vunpack.c.h.b16 %v443
    %v1756 = vunpack.c.l.b16 %v444
    %v1757 = vunpack.c.h.b16 %v444
    %v1758 = vunpack.c.l.b16 %v445
    %v1759 = vunpack.c.h.b16 %v445
    %v1760 = vunpack.c.l.b16 %v446
    %v1761 = vunpack.c.h.b16 %v446
    %v1762 = vunpack.c.l.b16 %v447
    %v1763 = vunpack.c.h.b16 %v447
    %v1764 = vunpack.c.l.b16 %v448
    %v1765 = vunpack.c.h.b16 %v448
    %v1766 = vunpack.c.l.b16 %v449
    %v1767 = vunpack.c.h.b16 %v449
    %v1768 = vunpack.c.l.b16 %v450
    %v1769 = vunpack.c.h.b16 %v450
    %v1770 = vunpack.c.l.b16 %v451
    %v1771 = vunpack.c.h.b16 %v451
    %v1772 = vunpack.c.l.b16 %v452
    %v1773 = vunpack.c.h.b16 %v452
    %v1774 = vunpack.c.l.b16 %v453
    %v1775 = vunpack.c.h.b16 %v453
    %v1776 = vunpack.c.l.b16 %v454
    %v1777 = vunpack.c.h.b16 %v454
    %v1778 = vunpack.c.l.b16 %v455
    %v1779 = vunpack.c.h.b16 %v455
    %v1780 = vunpack.c.l.b16 %v456
    %v1781 = vunpack.c.h.b16 %v456
    %v1782 = vunpack.c.l.b16 %v457
    %v1783 = vunpack.c.h.b16 %v457
    %v1784 = vunpack.c.l.b16 %v458
    %v1785 = vunpack.c.h.b16 %v458
    %v1786 = vunpack.c.l.b16 %v459
    %v1787 = vunpack.c.h.b16 %v459
    %v1788 = vunpack.c.l.b16 %v460
    %v1789 = vunpack.c.h.b16 %v460
    %v1790 = vunpack.c.l.b16 %v461
    %v1791 = vunpack.c.h.b16 %v461
    %v1792 = vunpack.c.l.b16 %v462
    %v1793 = vunpack.c.h.b16 %v462
    %v1794 = vunpack.c.l.b16 %v463
    %v1795 = vunpack.c.h.b16 %v463
    %v1796 = vunpack.c.l.b16 %v464
    %v1797 = vunpack.c.h.b16 %v464
    %v1798 = vunpack.c.l.b16 %v465
    %v1799 = vunpack.c.h.b16 %v465
    %v1800 = vunpack.c.l.b16 %v466
    %v1801 = vunpack.c.h.b16 %v466
    %v1802 = vunpack.c.l.b16 %v467
    %v1803 = vunpack.c.h.b16 %v467
    %v1804 = vunpack.c.l.b16 %v468
    %v1805 = vunpack.c.h.b16 %v468
    %v1806 = vunpack.c.l.b16 %v469
    %v1807 = vunpack.c.h.b16 %v469
    %v1808 = vunpack.c.l.b16 %v470
    %v1809 = vunpack.c.h.b16 %v470
    %v1810 = vunpack.c.l.b16 %v471
    %v1811 = vunpack.c.h.b16 %v471
    %v1812 = vunpack.c.l.b16 %v472
    %v1813 = vunpack.c.h.b16 %v472
    %v1814 = vunpack.c.l.b16 %v473
    %v1815 = vunpack.c.h.b16 %v473
    %v1816 = vunpack.c.l.b16 %v474
    %v1817 = vunpack.c.h.b16 %v474
    %v1818 = vunpack.c.l.b16 %v475
    %v1819 = vunpack.c.h.b16 %v475
    %v1820 = vunpack.c.l.b16 %v476
    %v1821 = vunpack.c.h.b16 %v476
    %v1822 = vunpack.c.l.b16 %v477
    %v1823 = vunpack.c.h.b16 %v477
    %v1824 = vunpack.c.l.b16 %v478
    %v1825 = vunpack.c.h.b16 %v478
    %v1826 = vunpack.c.l.b16 %v479
    %v1827 = vunpack.c.h.b16 %v479
    %v1828 = vunpack.c.l.b16 %v480
    %v1829 = vunpack.c.h.b16 %v480
    %v1830 = vunpack.c.l.b16 %v481
    %v1831 = vunpack.c.h.b16 %v481
    %v1832 = vunpack.c.l.b16 %v482
    %v1833 = vunpack.c.h.b16 %v482
    %v1834 = vunpack.c.l.b16 %v483
    %v1835 = vunpack.c.h.b16 %v483
    %v1836 = vunpack.c.l.b16 %v484
    %v1837 = vunpack.c.h.b16 %v484
    %v1838 = vunpack.c.l.b16 %v485
    %v1839 = vunpack.c.h.b16 %v485
    %v1840 = vunpack.c.l.b16 %v486
    %v1841 = vunpack.c.h.b16 %v486
    %v1842 = vpack.c.b16 %v996, %v978
    %v1843 = vpack.c.b16 %v997, %v979
    %v1844 = vpack.c.b16 %v998, %v980
    %v1845 = vpack.c.b16 %v999, %v981
    %v1846 = vpack.c.b16 %v1000, %v982
    %v1847 = vpack.c.b16 %v1001, %v983
    %v1848 = vpack.c.b16 %v1002, %v984
    %v1849 = vpack.c.b16 %v1003, %v985
    %v1850 = vpack.c.b16 %v1004, %v986
    %v1851 = vpack.c.b16 %v1005, %v987
    %v1852 = vpack.c.b16 %v1006, %v988
    %v1853 = vpack.c.b16 %v1007, %v989
    %v1854 = vpack.c.b16 %v1008, %v990
    %v1855 = vpack.c.b16 %v1009, %v991
    %v1856 = vpack.c.b16 %v1010, %v992
    %v1857 = vpack.c.b16 %v1011, %v993
    %v1858 = vpack.c.b16 %v1012, %v994
    %v1859 = vpack.c.b16 %v1013, %v995
    %v1860 = vpack.c.b16 %v1032, %v1014
    %v1861 = vpack.c.b16 %v1033, %v1015
    %v1862 = vpack.c.b16 %v1034, %v1016
    %v1863 = vpack.c.b16 %v1035, %v1017
    %v1864 = vpack.c.b16 %v1036, %v1018
    %v1865 = vpack.c.b16 %v1037, %v1019
    %v1866 = vpack.c.b16 %v1038, %v1020
    %v1867 = vpack.c.b16 %v1039, %v1021
    %v1868 = vpack.c.b16 %v1040, %v1022
    %v1869 = vpack.c.b16 %v1041, %v1023
    %v1870 = vpack.c.b16 %v1042, %v1024
    %v1871 = vpack.c.b16 %v1043, %v1025
    %v1872 = vpack.c.b16 %v1044, %v1026
    %v1873 = vpack.c.b16 %v1045, %v1027
    %v1874 = vpack.c.b16 %v1046, %v1028
    %v1875 = vpack.c.b16 %v1047, %v1029
    %v1876 = vpack.c.b16 %v1048, %v1030
    %v1877 = vpack.c.b16 %v1049, %v1031
    %v1878 = vpack.c.b16 %v1068, %v1050
    %v1879 = vpack.c.b16 %v1069, %v1051
    %v1880 = vpack.c.b16 %v1070, %v1052
    %v1881 = vpack.c.b16 %v1071, %v1053
    %v1882 = vpack.c.b16 %v1072, %v1054
    %v1883 = vpack.c.b16 %v1073, %v1055
    %v1884 = vpack.c.b16 %v1074, %v1056
    %v1885 = vpack.c.b16 %v1075, %v1057
    %v1886 = vpack.c.b16 %v1076, %v1058
    %v1887 = vpack.c.b16 %v1077, %v1059
    %v1888 = vpack.c.b16 %v1078, %v1060
    %v1889 = vpack.c.b16 %v1079, %v1061
    %v1890 = vpack.c.b16 %v1080, %v1062
    %v1891 = vpack.c.b16 %v1081, %v1063
    %v1892 = vpack.c.b16 %v1082, %v1064
    %v1893 = vpack.c.b16 %v1083, %v1065
    %v1894 = vpack.c.b16 %v1084, %v1066
    %v1895 = vpack.c.b16 %v1085, %v1067
    %v1896 = vpack.c.b16 %v1104, %v1086
    %v1897 = vpack.c.b16 %v1105, %v1087
    %v1898 = vpack.c.b16 %v1106, %v1088
    %v1899 = vpack.c.b16 %v1107, %v1089
    %v1900 = vpack.c.b16 %v1108, %v1090
    %v1901 = vpack.c.b16 %v1109, %v1091
    %v1902 = vpack.c.b16 %v1110, %v1092
    %v1903 = vpack.c.b16 %v1111, %v1093
    %v1904 = vpack.c.b16 %v1112, %v1094
    %v1905 = vpack.c.b16 %v1113, %v1095
    %v1906 = vpack.c.b16 %v1114, %v1096
    %v1907 = vpack.c.b16 %v1115, %v1097
    %v1908 = vpack.c.b16 %v1116, %v1098
    %v1909 = vpack.c.b16 %v1117, %v1099
    %v1910 = vpack.c.b16 %v1118, %v1100
    %v1911 = vpack.c.b16 %v1119, %v1101
    %v1912 = vpack.c.b16 %v1120, %v1102
    %v1913 = vpack.c.b16 %v1121, %v1103
    %v1914 = vpack.c.b16 %v1140, %v1122
    %v1915 = vpack.c.b16 %v1141, %v1123
    %v1916 = vpack.c.b16 %v1142, %v1124
    %v1917 = vpack.c.b16 %v1143, %v1125
    %v1918 = vpack.c.b16 %v1144, %v1126
    %v1919 = vpack.c.b16 %v1145, %v1127
    %v1920 = vpack.c.b16 %v1146, %v1128
    %v1921 = vpack.c.b16 %v1147, %v1129
    %v1922 = vpack.c.b16 %v1148, %v1130
    %v1923 = vpack.c.b16 %v1149, %v1131
    %v1924 = vpack.c.b16 %v1150, %v1132
    %v1925 = vpack.c.b16 %v1151, %v1133
    %v1926 = vpack.c.b16 %v1152, %v1134
    %v1927 = vpack.c.b16 %v1153, %v1135
    %v1928 = vpack.c.b16 %v1154, %v1136
    %v1929 = vpack.c.b16 %v1155, %v1137
    %v1930 = vpack.c.b16 %v1156, %v1138
    %v1931 = vpack.c.b16 %v1157, %v1139
    %v1932 = vpack.c.b16 %v1176, %v1158
    %v1933 = vpack.c.b16 %v1177, %v1159
    %v1934 = vpack.c.b16 %v1178, %v1160
    %v1935 = vpack.c.b16 %v1179, %v1161
    %v1936 = vpack.c.b16 %v1180, %v1162
    %v1937 = vpack.c.b16 %v1181, %v1163
    %v1938 = vpack.c.b16 %v1182, %v1164
    %v1939 = vpack.c.b16 %v1183, %v1165
    %v1940 = vpack.c.b16 %v1184, %v1166
    %v1941 = vpack.c.b16 %v1185, %v1167
    %v1942 = vpack.c.b16 %v1186, %v1168
    %v1943 = vpack.c.b16 %v1187, %v1169
    %v1944 = vpack.c.b16 %v1188, %v1170
    %v1945 = vpack.c.b16 %v1189, %v1171
    %v1946 = vpack.c.b16 %v1190, %v1172
    %v1947 = vpack.c.b16 %v1191, %v1173
    %v1948 = vpack.c.b16 %v1192, %v1174
    %v1949 = vpack.c.b16 %v1193, %v1175
    %v1950 = vpack.c.b16 %v1212, %v1194
    %v1951 = vpack.c.b16 %v1213, %v1195
    %v1952 = vpack.c.b16 %v1214, %v1196
    %v1953 = vpack.c.b16 %v1215, %v1197
    %v1954 = vpack.c.b16 %v1216, %v1198
    %v1955 = vpack.c.b16 %v1217, %v1199
    %v1956 = vpack.c.b16 %v1218, %v1200
    %v1957 = vpack.c.b16 %v1219, %v1201
    %v1958 = vpack.c.b16 %v1220, %v1202
    %v1959 = vpack.c.b16 %v1221, %v1203
    %v1960 = vpack.c.b16 %v1222, %v1204
    %v1961 = vpack.c.b16 %v1223, %v1205
    %v1962 = vpack.c.b16 %v1224, %v1206
    %v1963 = vpack.c.b16 %v1225, %v1207
    %v1964 = vpack.c.b16 %v1226, %v1208
    %v1965 = vpack.c.b16 %v1227, %v1209
    %v1966 = vpack.c.b16 %v1228, %v1210
    %v1967 = vpack.c.b16 %v1229, %v1211
    %v1968 = vpack.c.b16 %v1248, %v1230
    %v1969 = vpack.c.b16 %v1249, %v1231
    %v1970 = vpack.c.b16 %v1250, %v1232
    %v1971 = vpack.c.b16 %v1251, %v1233
    %v1972 = vpack.c.b16 %v1252, %v1234
    %v1973 = vpack.c.b16 %v1253, %v1235
    %v1974 = vpack.c.b16 %v1254, %v1236
    %v1975 = vpack.c.b16 %v1255, %v1237
    %v1976 = vpack.c.b16 %v1256, %v1238
    %v1977 = vpack.c.b16 %v1257, %v1239
    %v1978 = vpack.c.b16 %v1258, %v1240
    %v1979 = vpack.c.b16 %v1259, %v1241
    %v1980 = vpack.c.b16 %v1260, %v1242
    %v1981 = vpack.c.b16 %v1261, %v1243
    %v1982 = vpack.c.b16 %v1262, %v1244
    %v1983 = vpack.c.b16 %v1263, %v1245
    %v1984 = vpack.c.b16 %v1264, %v1246
    %v1985 = vpack.c.b16 %v1265, %v1247
    %v1986 = vpack.c.b16 %v1284, %v1266
    %v1987 = vpack.c.b16 %v1285, %v1267
    %v1988 = vpack.c.b16 %v1286, %v1268
    %v1989 = vpack.c.b16 %v1287, %v1269
    %v1990 = vpack.c.b16 %v1288, %v1270
    %v1991 = vpack.c.b16 %v1289, %v1271
    %v1992 = vpack.c.b16 %v1290, %v1272
    %v1993 = vpack.c.b16 %v1291, %v1273
    %v1994 = vpack.c.b16 %v1292, %v1274
    %v1995 = vpack.c.b16 %v1293, %v1275
    %v1996 = vpack.c.b16 %v1294, %v1276
    %v1997 = vpack.c.b16 %v1295, %v1277
    %v1998 = vpack.c.b16 %v1296, %v1278
    %v1999 = vpack.c.b16 %v1297, %v1279
    %v2000 = vpack.c.b16 %v1298, %v1280
    %v2001 = vpack.c.b16 %v1299, %v1281
    %v2002 = vpack.c.b16 %v1300, %v1282
    %v2003 = vpack.c.b16 %v1301, %v1283
    %v2004 = vpack.c.b16 %v1320, %v1302
    %v2005 = vpack.c.b16 %v1321, %v1303
    %v2006 = vpack.c.b16 %v1322, %v1304
    %v2007 = vpack.c.b16 %v1323, %v1305
    %v2008 = vpack.c.b16 %v1324, %v1306
    %v2009 = vpack.c.b16 %v1325, %v1307
    %v2010 = vpack.c.b16 %v1326, %v1308
    %v2011 = vpack.c.b16 %v1327, %v1309
    %v2012 = vpack.c.b16 %v1328, %v1310
    %v2013 = vpack.c.b16 %v1329, %v1311
    %v2014 = vpack.c.b16 %v1330, %v1312
    %v2015 = vpack.c.b16 %v1331, %v1313
    %v2016 = vpack.c.b16 %v1332, %v1314
    %v2017 = vpack.c.b16 %v1333, %v1315
    %v2018 = vpack.c.b16 %v1334, %v1316
    %v2019 = vpack.c.b16 %v1335, %v1317
    %v2020 = vpack.c.b16 %v1336, %v1318
    %v2021 = vpack.c.b16 %v1337, %v1319
    %v2022 = vpack.c.b16 %v1356, %v1338
    %v2023 = vpack.c.b16 %v1357, %v1339
    %v2024 = vpack.c.b16 %v1358, %v1340
    %v2025 = vpack.c.b16 %v1359, %v1341
    %v2026 = vpack.c.b16 %v1360, %v1342
    %v2027 = vpack.c.b16 %v1361, %v1343
    %v2028 = vpack.c.b16 %v1362, %v1344
    %v2029 = vpack.c.b16 %v1363, %v1345
    %v2030 = vpack.c.b16 %v1364, %v1346
    %v2031 = vpack.c.b16 %v1365, %v1347
    %v2032 = vpack.c.b16 %v1366, %v1348
    %v2033 = vpack.c.b16 %v1367, %v1349
    %v2034 = vpack.c.b16 %v1368, %v1350
    %v2035 = vpack.c.b16 %v1369, %v1351
    %v2036 = vpack.c.b16 %v1370, %v1352
    %v2037 = vpack.c.b16 %v1371, %v1353
    %v2038 = vpack.c.b16 %v1372, %v1354
    %v2039 = vpack.c.b16 %v1373, %v1355
    %v2040 = vpack.c.b16 %v1392, %v1374
    %v2041 = vpack.c.b16 %v1393, %v1375
    %v2042 = vpack.c.b16 %v1394, %v1376
    %v2043 = vpack.c.b16 %v1395, %v1377
    %v2044 = vpack.c.b16 %v1396, %v1378
    %v2045 = vpack.c.b16 %v1397, %v1379
    %v2046 = vpack.c.b16 %v1398, %v1380
    %v2047 = vpack.c.b16 %v1399, %v1381
    %v2048 = vpack.c.b16 %v1400, %v1382
    %v2049 = vpack.c.b16 %v1401, %v1383
    %v2050 = vpack.c.b16 %v1402, %v1384
    %v2051 = vpack.c.b16 %v1403, %v1385
    %v2052 = vpack.c.b16 %v1404, %v1386
    %v2053 = vpack.c.b16 %v1405, %v1387
    %v2054 = vpack.c.b16 %v1406, %v1388
    %v2055 = vpack.c.b16 %v1407, %v1389
    %v2056 = vpack.c.b16 %v1408, %v1390
    %v2057 = vpack.c.b16 %v1409, %v1391
    %v2058 = vpack.c.b16 %v1428, %v1410
    %v2059 = vpack.c.b16 %v1429, %v1411
    %v2060 = vpack.c.b16 %v1430, %v1412
    %v2061 = vpack.c.b16 %v1431, %v1413
    %v2062 = vpack.c.b16 %v1432, %v1414
    %v2063 = vpack.c.b16 %v1433, %v1415
    %v2064 = vpack.c.b16 %v1434, %v1416
    %v2065 = vpack.c.b16 %v1435, %v1417
    %v2066 = vpack.c.b16 %v1436, %v1418
    %v2067 = vpack.c.b16 %v1437, %v1419
    %v2068 = vpack.c.b16 %v1438, %v1420
    %v2069 = vpack.c.b16 %v1439, %v1421
    %v2070 = vpack.c.b16 %v1440, %v1422
    %v2071 = vpack.c.b16 %v1441, %v1423
    %v2072 = vpack.c.b16 %v1442, %v1424
    %v2073 = vpack.c.b16 %v1443, %v1425
    %v2074 = vpack.c.b16 %v1444, %v1426
    %v2075 = vpack.c.b16 %v1445, %v1427
    %v2076 = vpack.c.b16 %v1464, %v1446
    %v2077 = vpack.c.b16 %v1465, %v1447
    %v2078 = vpack.c.b16 %v1466, %v1448
    %v2079 = vpack.c.b16 %v1467, %v1449
    %v2080 = vpack.c.b16 %v1468, %v1450
    %v2081 = vpack.c.b16 %v1469, %v1451
    %v2082 = vpack.c.b16 %v1470, %v1452
    %v2083 = vpack.c.b16 %v1471, %v1453
    %v2084 = vpack.c.b16 %v1472, %v1454
    %v2085 = vpack.c.b16 %v1473, %v1455
    %v2086 = vpack.c.b16 %v1474, %v1456
    %v2087 = vpack.c.b16 %v1475, %v1457
    %v2088 = vpack.c.b16 %v1476, %v1458
    %v2089 = vpack.c.b16 %v1477, %v1459
    %v2090 = vpack.c.b16 %v1478, %v1460
    %v2091 = vpack.c.b16 %v1479, %v1461
    %v2092 = vpack.c.b16 %v1480, %v1462
    %v2093 = vpack.c.b16 %v1481, %v1463
    %v2094 = vpack.c.b16 %v1500, %v1482
    %v2095 = vpack.c.b16 %v1501, %v1483
    %v2096 = vpack.c.b16 %v1502, %v1484
    %v2097 = vpack.c.b16 %v1503, %v1485
    %v2098 = vpack.c.b16 %v1504, %v1486
    %v2099 = vpack.c.b16 %v1505, %v1487
    %v2100 = vpack.c.b16 %v1506, %v1488
    %v2101 = vpack.c.b16 %v1507, %v1489
    %v2102 = vpack.c.b16 %v1508, %v1490
    %v2103 = vpack.c.b16 %v1509, %v1491
    %v2104 = vpack.c.b16 %v1510, %v1492
    %v2105 = vpack.c.b16 %v1511, %v1493
    %v2106 = vpack.c.b16 %v1512, %v1494
    %v2107 = vpack.c.b16 %v1513, %v1495
    %v2108 = vpack.c.b16 %v1514, %v1496
    %v2109 = vpack.c.b16 %v1515, %v1497
    %v2110 = vpack.c.b16 %v1516, %v1498
    %v2111 = vpack.c.b16 %v1517, %v1499
    %v2112 = vpack.c.b16 %v1536, %v1518
    %v2113 = vpack.c.b16 %v1537, %v1519
    %v2114 = vpack.c.b16 %v1538, %v1520
    %v2115 = vpack.c.b16 %v1539, %v1521
    %v2116 = vpack.c.b16 %v1540, %v1522
    %v2117 = vpack.c.b16 %v1541, %v1523
    %v2118 = vpack.c.b16 %v1542, %v1524
    %v2119 = vpack.c.b16 %v1543, %v1525
    %v2120 = vpack.c.b16 %v1544, %v1526
    %v2121 = vpack.c.b16 %v1545, %v1527
    %v2122 = vpack.c.b16 %v1546, %v1528
    %v2123 = vpack.c.b16 %v1547, %v1529
    %v2124 = vpack.c.b16 %v1548, %v1530
    %v2125 = vpack.c.b16 %v1549, %v1531
    %v2126 = vpack.c.b16 %v1550, %v1532
    %v2127 = vpack.c.b16 %v1551, %v1533
    %v2128 = vpack.c.b16 %v1552, %v1534
    %v2129 = vpack.c.b16 %v1553, %v1535
    %v2130 = vpack.c.b16 %v1572, %v1554
    %v2131 = vpack.c.b16 %v1573, %v1555
    %v2132 = vpack.c.b16 %v1574, %v1556
    %v2133 = vpack.c.b16 %v1575, %v1557
    %v2134 = vpack.c.b16 %v1576, %v1558
    %v2135 = vpack.c.b16 %v1577, %v1559
    %v2136 = vpack.c.b16 %v1578, %v1560
    %v2137 = vpack.c.b16 %v1579, %v1561
    %v2138 = vpack.c.b16 %v1580, %v1562
    %v2139 = vpack.c.b16 %v1581, %v1563
    %v2140 = vpack.c.b16 %v1582, %v1564
    %v2141 = vpack.c.b16 %v1583, %v1565
    %v2142 = vpack.c.b16 %v1584, %v1566
    %v2143 = vpack.c.b16 %v1585, %v1567
    %v2144 = vpack.c.b16 %v1586, %v1568
    %v2145 = vpack.c.b16 %v1587, %v1569
    %v2146 = vpack.c.b16 %v1588, %v1570
    %v2147 = vpack.c.b16 %v1589, %v1571
    %v2148 = vpack.c.b16 %v1608, %v1590
    %v2149 = vpack.c.b16 %v1609, %v1591
    %v2150 = vpack.c.b16 %v1610, %v1592
    %v2151 = vpack.c.b16 %v1611, %v1593
    %v2152 = vpack.c.b16 %v1612, %v1594
    %v2153 = vpack.c.b16 %v1613, %v1595
    %v2154 = vpack.c.b16 %v1614, %v1596
    %v2155 = vpack.c.b16 %v1615, %v1597
    %v2156 = vpack.c.b16 %v1616, %v1598
    %v2157 = vpack.c.b16 %v1617, %v1599
    %v2158 = vpack.c.b16 %v1618, %v1600
    %v2159 = vpack.c.b16 %v1619, %v1601
    %v2160 = vpack.c.b16 %v1620, %v1602
    %v2161 = vpack.c.b16 %v1621, %v1603
    %v2162 = vpack.c.b16 %v1622, %v1604
    %v2163 = vpack.c.b16 %v1623, %v1605
    %v2164 = vpack.c.b16 %v1624, %v1606
    %v2165 = vpack.c.b16 %v1625, %v1607
    %v2166 = vpack.c.b16 %v1644, %v1626
    %v2167 = vpack.c.b16 %v1645, %v1627
    %v2168 = vpack.c.b16 %v1646, %v1628
    %v2169 = vpack.c.b16 %v1647, %v1629
    %v2170 = vpack.c.b16 %v1648, %v1630
    %v2171 = vpack.c.b16 %v1649, %v1631
    %v2172 = vpack.c.b16 %v1650, %v1632
    %v2173 = vpack.c.b16 %v1651, %v1633
    %v2174 = vpack.c.b16 %v1652, %v1634
    %v2175 = vpack.c.b16 %v1653, %v1635
    %v2176 = vpack.c.b16 %v1654, %v1636
    %v2177 = vpack.c.b16 %v1655, %v1637
    %v2178 = vpack.c.b16 %v1656, %v1638
    %v2179 = vpack.c.b16 %v1657, %v1639
    %v2180 = vpack.c.b16 %v1658, %v1640
    %v2181 = vpack.c.b16 %v1659, %v1641
    %v2182 = vpack.c.b16 %v1660, %v1642
    %v2183 = vpack.c.b16 %v1661, %v1643
    %v2184 = vpack.c.b16 %v1680, %v1662
    %v2185 = vpack.c.b16 %v1681, %v1663
    %v2186 = vpack.c.b16 %v1682, %v1664
    %v2187 = vpack.c.b16 %v1683, %v1665
    %v2188 = vpack.c.b16 %v1684, %v1666
    %v2189 = vpack.c.b16 %v1685, %v1667
    %v2190 = vpack.c.b16 %v1686, %v1668
    %v2191 = vpack.c.b16 %v1687, %v1669
    %v2192 = vpack.c.b16 %v1688, %v1670
    %v2193 = vpack.c.b16 %v1689, %v1671
    %v2194 = vpack.c.b16 %v1690, %v1672
    %v2195 = vpack.c.b16 %v1691, %v1673
    %v2196 = vpack.c.b16 %v1692, %v1674
    %v2197 = vpack.c.b16 %v1693, %v1675
    %v2198 = vpack.c.b16 %v1694, %v1676
    %v2199 = vpack.c.b16 %v1695, %v1677
    %v2200 = vpack.c.b16 %v1696, %v1678
    %v2201 = vpack.c.b16 %v1697, %v1679
    %v2202 = vpack.c.b16 %v1716, %v1698
    %v2203 = vpack.c.b16 %v1717, %v1699
    %v2204 = vpack.c.b16 %v1718, %v1700
    %v2205 = vpack.c.b16 %v1719, %v1701
    %v2206 = vpack.c.b16 %v1720, %v1702
    %v2207 = vpack.c.b16 %v1721, %v1703
    %v2208 = vpack.c.b16 %v1722, %v1704
    %v2209 = vpack.c.b16 %v1723, %v1705
    %v2210 = vpack.c.b16 %v1724, %v1706
    %v2211 = vpack.c.b16 %v1725, %v1707
    %v2212 = vpack.c.b16 %v1726, %v1708
    %v2213 = vpack.c.b16 %v1727, %v1709
    %v2214 = vpack.c.b16 %v1728, %v1710
    %v2215 = vpack.c.b16 %v1729, %v1711
    %v2216 = vpack.c.b16 %v1730, %v1712
    %v2217 = vpack.c.b16 %v1731, %v1713
    %v2218 = vpack.c.b16 %v1732, %v1714
    %v2219 = vpack.c.b16 %v1733, %v1715
    %v2220 = vpack.c.b16 %v1752, %v1734
    %v2221 = vpack.c.b16 %v1753, %v1735
    %v2222 = vpack.c.b16 %v1754, %v1736
    %v2223 = vpack.c.b16 %v1755, %v1737
    %v2224 = vpack.c.b16 %v1756, %v1738
    %v2225 = vpack.c.b16 %v1757, %v1739
    %v2226 = vpack.c.b16 %v1758, %v1740
    %v2227 = vpack.c.b16 %v1759, %v1741
    %v2228 = vpack.c.b16 %v1760, %v1742
    %v2229 = vpack.c.b16 %v1761, %v1743
    %v2230 = vpack.c.b16 %v1762, %v1744
    %v2231 = vpack.c.b16 %v1763, %v1745
    %v2232 = vpack.c.b16 %v1764, %v1746
    %v2233 = vpack.c.b16 %v1765, %v1747
    %v2234 = vpack.c.b16 %v1766, %v1748
    %v2235 = vpack.c.b16 %v1767, %v1749
    %v2236 = vpack.c.b16 %v1768, %v1750
    %v2237 = vpack.c.b16 %v1769, %v1751
    %v2238 = vpack.c.b16 %v1788, %v1770
    %v2239 = vpack.c.b16 %v1789, %v1771
    %v2240 = vpack.c.b16 %v1790, %v1772
    %v2241 = vpack.c.b16 %v1791, %v1773
    %v2242 = vpack.c.b16 %v1792, %v1774
    %v2243 = vpack.c.b16 %v1793, %v1775
    %v2244 = vpack.c.b16 %v1794, %v1776
    %v2245 = vpack.c.b16 %v1795, %v1777
    %v2246 = vpack.c.b16 %v1796, %v1778
    %v2247 = vpack.c.b16 %v1797, %v1779
    %v2248 = vpack.c.b16 %v1798, %v1780
    %v2249 = vpack.c.b16 %v1799, %v1781
    %v2250 = vpack.c.b16 %v1800, %v1782
    %v2251 = vpack.c.b16 %v1801, %v1783
    %v2252 = vpack.c.b16 %v1802, %v1784
    %v2253 = vpack.c.b16 %v1803, %v1785
    %v2254 = vpack.c.b16 %v1804, %v1786
    %v2255 = vpack.c.b16 %v1805, %v1787
    %v2256 = vpack.c.b16 %v1824, %v1806
    %v2257 = vpack.c.b16 %v1825, %v1807
    %v2258 = vpack.c.b16 %v1826, %v1808
    %v2259 = vpack.c.b16 %v1827, %v1809
    %v2260 = vpack.c.b16 %v1828, %v1810
    %v2261 = vpack.c.b16 %v1829, %v1811
    %v2262 = vpack.c.b16 %v1830, %v1812
    %v2263 = vpack.c.b16 %v1831, %v1813
    %v2264 = vpack.c.b16 %v1832, %v1814
    %v2265 = vpack.c.b16 %v1833, %v1815
    %v2266 = vpack.c.b16 %v1834, %v1816
    %v2267 = vpack.c.b16 %v1835, %v1817
    %v2268 = vpack.c.b16 %v1836, %v1818
    %v2269 = vpack.c.b16 %v1837, %v1819
    %v2270 = vpack.c.b16 %v1838, %v1820
    %v2271 = vpack.c.b16 %v1839, %v1821
    %v2272 = vpack.c.b16 %v1840, %v1822
    %v2273 = vpack.c.b16 %v1841, %v1823
    %2706 = vmatprep.subr.bf16.mxu0 %v1843
    %2707 = vmatpush1.bf16.msra.mxu0 %v1842
    %2708 = vmatprep.subr.bf16.mxu0 %v1861
    %2709 = vmatpush1.bf16.msra.mxu0 %v1860
    %2710 = vmatprep.subr.bf16.mxu0 %v1879
    %2711 = vmatpush1.bf16.msra.mxu0 %v1878
    %2712 = vmatprep.subr.bf16.mxu0 %v1897
    %2713 = vmatpush1.bf16.msra.mxu0 %v1896
    %2714 = vmatprep.subr.bf16.mxu0 %v1915
    %2715 = vmatpush1.bf16.msra.mxu0 %v1914
    %2716 = vmatprep.subr.bf16.mxu0 %v1933
    %2717 = vmatpush1.bf16.msra.mxu0 %v1932
    %2718 = vmatprep.subr.bf16.mxu0 %v1951
    %2719 = vmatpush1.bf16.msra.mxu0 %v1950
    %2720 = vmatprep.subr.bf16.mxu0 %v1969
    %2721 = vmatpush1.bf16.msra.mxu0 %v1968
    %2722 = vmatprep.subr.bf16.mxu0 %v1987
    %2723 = vmatpush1.bf16.msra.mxu0 %v1986
    %2724 = vmatprep.subr.bf16.mxu0 %v2005
    %2725 = vmatpush1.bf16.msra.mxu0 %v2004
    %2726 = vmatprep.subr.bf16.mxu0 %v2023
    %2727 = vmatpush1.bf16.msra.mxu0 %v2022
    %2728 = vmatprep.subr.bf16.mxu0 %v2041
    %2729 = vmatpush1.bf16.msra.mxu0 %v2040
    %2730 = vmatprep.subr.bf16.mxu0 %v2059
    %2731 = vmatpush1.bf16.msra.mxu0 %v2058
    %2732 = vmatprep.subr.bf16.mxu0 %v2077
    %2733 = vmatpush1.bf16.msra.mxu0 %v2076
    %2734 = vmatprep.subr.bf16.mxu0 %v2095
    %2735 = vmatpush1.bf16.msra.mxu0 %v2094
    %2736 = vmatprep.subr.bf16.mxu0 %v2113
    %2737 = vmatpush1.bf16.msra.mxu0 %v2112
    %2738 = vmatprep.mubr.bf16.mxu0 %v523
    %2739 = vmatmul.mubr.bf16.gmra.mrb[0].mxu0 %v522
    %v2740 = vpop.f32.mrb[0].mxu0
    %v2741 = vadd.f32 0.0, %v2740
    %v2742 = vpop.f32.mrb[0].mxu0
    %v2743 = vadd.f32 0.0, %v2742
    %v2744 = vpop.f32.mrb[0].mxu0
    %v2745 = vadd.f32 0.0, %v2744
    %v2746 = vpop.f32.mrb[0].mxu0
    %v2747 = vadd.f32 0.0, %v2746
    %2748 = vmatprep.mubr.bf16.mxu0 %v526
    %2749 = vmatmul.mubr.bf16.gmra.mrb[0].mxu0 %v525
    %v2750 = vpop.f32.mrb[0].mxu0
    %v2751 = vadd.f32 0.0, %v2750
    %v2752 = vpop.f32.mrb[0].mxu0
    %v2753 = vadd.f32 0.0, %v2752
    %v2754 = vpop.f32.mrb[0].mxu0
    %v2755 = vadd.f32 0.0, %v2754
    %v2756 = vpop.f32.mrb[0].mxu0
    %v2757 = vadd.f32 0.0, %v2756
    %2758 = vmatprep.mubr.bf16.mxu0 %v529
    %2759 = vmatmul.mubr.bf16.gmra.mrb[0].mxu0 %v528
    %v2760 = vpop.f32.mrb[0].mxu0
    %v2761 = vadd.f32 0.0, %v2760
    %v2762 = vpop.f32.mrb[0].mxu0
    %v2763 = vadd.f32 0.0, %v2762
    %v2764 = vpop.f32.mrb[0].mxu0
    %v2765 = vadd.f32 0.0, %v2764
    %v2766 = vpop.f32.mrb[0].mxu0
    %v2767 = vadd.f32 0.0, %v2766
    %2768 = vmatprep.mubr.bf16.mxu0 %v532
    %2769 = vmatmul.mubr.bf16.gmra.mrb[0].mxu0 %v531
    %v2770 = vpop.f32.mrb[0].mxu0
    %v2771 = vadd.f32 0.0, %v2770
    %v2772 = vpop.f32.mrb[0].mxu0
    %v2773 = vadd.f32 0.0, %v2772
    %v2774 = vpop.f32.mrb[0].mxu0
    %v2775 = vpop.f32.mrb[0].mxu0
    %2776 = vdwg.mxu0
    %2777 = vmatprep.subr.bf16.mxu0 %v2131
    %2778 = vmatpush1.bf16.msra.mxu0 %v2130
    %2779 = vmatprep.subr.bf16.mxu0 %v2149
    %2780 = vmatpush1.bf16.msra.mxu0 %v2148
    %2781 = vmatprep.subr.bf16.mxu0 %v2167
    %2782 = vmatpush1.bf16.msra.mxu0 %v2166
    %2783 = vmatprep.subr.bf16.mxu0 %v2185
    %2784 = vmatpush1.bf16.msra.mxu0 %v2184
    %2785 = vmatprep.subr.bf16.mxu0 %v2203
    %2786 = vmatpush1.bf16.msra.mxu0 %v2202
    %2787 = vmatprep.subr.bf16.mxu0 %v2221
    %2788 = vmatpush1.bf16.msra.mxu0 %v2220
    %2789 = vmatprep.subr.bf16.mxu0 %v2239
    %2790 = vmatpush1.bf16.msra.mxu0 %v2238
    %2791 = vmatprep.subr.bf16.mxu0 %v2257
    %2792 = vmatpush1.bf16.msra.mxu0 %v2256
    %2793 = vmatprep.subr.bf16.mxu0 0
    %2794 = vmatpush1.bf16.msra.mxu0 0
    %2795 = vmatprep.subr.bf16.mxu0 0
    %2796 = vmatpush1.bf16.msra.mxu0 0
    %2797 = vmatprep.subr.bf16.mxu0 0
    %2798 = vmatpush1.bf16.msra.mxu0 0
    %2799 = vmatprep.subr.bf16.mxu0 0
    %2800 = vmatpush1.bf16.msra.mxu0 0
    %2801 = vmatprep.subr.bf16.mxu0 0
    %2802 = vmatpush1.bf16.msra.mxu0 0
    %2803 = vmatprep.subr.bf16.mxu0 0
    %2804 = vmatpush1.bf16.msra.mxu0 0
    %2805 = vmatprep.subr.bf16.mxu0 0
    %2806 = vmatpush1.bf16.msra.mxu0 0
    %2807 = vmatprep.subr.bf16.mxu0 0
    %2808 = vmatpush1.bf16.msra.mxu0 0
    %2809 = vmatprep.mubr.bf16.mxu0 0
    %2810 = vmatmul.mubr.bf16.gmra.mrb[0].mxu0 %v524
    %v2811 = vpop.f32.mrb[0].mxu0
    %v2812 = vadd.f32 %v2741, %v2811
    %v2813 = vpop.f32.mrb[0].mxu0
    %v2814 = vadd.f32 %v2743, %v2813
    %v2815 = vpop.f32.mrb[0].mxu0
    %v2816 = vadd.f32 %v2745, %v2815
    %v2817 = vpop.f32.mrb[0].mxu0
    %v2818 = vadd.f32 %v2747, %v2817
    %2819 = vmatprep.mubr.bf16.mxu0 0
    %2820 = vmatmul.mubr.bf16.gmra.mrb[0].mxu0 %v527
    %v2821 = vpop.f32.mrb[0].mxu0
    %v2822 = vadd.f32 %v2751, %v2821
    %v2823 = vpop.f32.mrb[0].mxu0
    %v2824 = vadd.f32 %v2753, %v2823
    %v2825 = vpop.f32.mrb[0].mxu0
    %v2826 = vadd.f32 %v2755, %v2825
    %v2827 = vpop.f32.mrb[0].mxu0
    %v2828 = vadd.f32 %v2757, %v2827
    %2829 = vmatprep.mubr.bf16.mxu0 0
    %2830 = vmatmul.mubr.bf16.gmra.mrb[0].mxu0 %v530
    %v2831 = vpop.f32.mrb[0].mxu0
    %v2832 = vadd.f32 %v2761, %v2831
    %v2833 = vpop.f32.mrb[0].mxu0
    %v2834 = vadd.f32 %v2763, %v2833
    %v2835 = vpop.f32.mrb[0].mxu0
    %v2836 = vadd.f32 %v2765, %v2835
    %v2837 = vpop.f32.mrb[0].mxu0
    %v2838 = vadd.f32 %v2767, %v2837
    %2839 = vmatprep.mubr.bf16.mxu0 0
    %2840 = vmatmul.mubr.bf16.gmra.mrb[0].mxu0 %v533
    %v2841 = vpop.f32.mrb[0].mxu0
    %v2842 = vadd.f32 %v2771, %v2841
    %v2843 = vpop.f32.mrb[0].mxu0
    %v2844 = vadd.f32 %v2773, %v2843
    %v2845 = vpop.f32.mrb[0].mxu0
    %v2846 = vpop.f32.mrb[0].mxu0
    %2847 = vdwg.mxu0
    %2848 = vmatprep.subr.bf16.mxu0 %v1845
    %2849 = vmatpush1.bf16.msra.mxu0 %v1844
    %2850 = vmatprep.subr.bf16.mxu0 %v1863
    %2851 = vmatpush1.bf16.msra.mxu0 %v1862
    %2852 = vmatprep.subr.bf16.mxu0 %v1881
    %2853 = vmatpush1.bf16.msra.mxu0 %v1880
    %2854 = vmatprep.subr.bf16.mxu0 %v1899
    %2855 = vmatpush1.bf16.msra.mxu0 %v1898
    %2856 = vmatprep.subr.bf16.mxu0 %v1917
    %2857 = vmatpush1.bf16.msra.mxu0 %v1916
    %2858 = vmatprep.subr.bf16.mxu0 %v1935
    %2859 = vmatpush1.bf16.msra.mxu0 %v1934
    %2860 = vmatprep.subr.bf16.mxu0 %v1953
    %2861 = vmatpush1.bf16.msra.mxu0 %v1952
    %2862 = vmatprep.subr.bf16.mxu0 %v1971
    %2863 = vmatpush1.bf16.msra.mxu0 %v1970
    %2864 = vmatprep.subr.bf16.mxu0 %v1989
    %2865 = vmatpush1.bf16.msra.mxu0 %v1988
    %2866 = vmatprep.subr.bf16.mxu0 %v2007
    %2867 = vmatpush1.bf16.msra.mxu0 %v2006
    %2868 = vmatprep.subr.bf16.mxu0 %v2025
    %2869 = vmatpush1.bf16.msra.mxu0 %v2024
    %2870 = vmatprep.subr.bf16.mxu0 %v2043
    %2871 = vmatpush1.bf16.msra.mxu0 %v2042
    %2872 = vmatprep.subr.bf16.mxu0 %v2061
    %2873 = vmatpush1.bf16.msra.mxu0 %v2060
    %2874 = vmatprep.subr.bf16.mxu0 %v2079
    %2875 = vmatpush1.bf16.msra.mxu0 %v2078
    %2876 = vmatprep.subr.bf16.mxu0 %v2097
    %2877 = vmatpush1.bf16.msra.mxu0 %v2096
    %2878 = vmatprep.subr.bf16.mxu0 %v2115
    %2879 = vmatpush1.bf16.msra.mxu0 %v2114
    %2880 = vmatprep.mubr.bf16.mxu0 %v523
    %2881 = vmatmul.mubr.bf16.gmra.mrb[0].mxu0 %v522
    %v2882 = vpop.f32.mrb[0].mxu0
    %v2883 = vadd.f32 0.0, %v2882
    %v2884 = vpop.f32.mrb[0].mxu0
    %v2885 = vadd.f32 0.0, %v2884
    %v2886 = vpop.f32.mrb[0].mxu0
    %v2887 = vadd.f32 0.0, %v2886
    %v2888 = vpop.f32.mrb[0].mxu0
    %v2889 = vadd.f32 0.0, %v2888
    %2890 = vmatprep.mubr.bf16.mxu0 %v526
    %2891 = vmatmul.mubr.bf16.gmra.mrb[0].mxu0 %v525
    %v2892 = vpop.f32.mrb[0].mxu0
    %v2893 = vadd.f32 0.0, %v2892
    %v2894 = vpop.f32.mrb[0].mxu0
    %v2895 = vadd.f32 0.0, %v2894
    %v2896 = vpop.f32.mrb[0].mxu0
    %v2897 = vadd.f32 0.0, %v2896
    %v2898 = vpop.f32.mrb[0].mxu0
    %v2899 = vadd.f32 0.0, %v2898
    %2900 = vmatprep.mubr.bf16.mxu0 %v529
    %2901 = vmatmul.mubr.bf16.gmra.mrb[0].mxu0 %v528
    %v2902 = vpop.f32.mrb[0].mxu0
    %v2903 = vadd.f32 0.0, %v2902
    %v2904 = vpop.f32.mrb[0].mxu0
    %v2905 = vadd.f32 0.0, %v2904
    %v2906 = vpop.f32.mrb[0].mxu0
    %v2907 = vadd.f32 0.0, %v2906
    %v2908 = vpop.f32.mrb[0].mxu0
    %v2909 = vadd.f32 0.0, %v2908
    %2910 = vmatprep.mubr.bf16.mxu0 %v532
    %2911 = vmatmul.mubr.bf16.gmra.mrb[0].mxu0 %v531
    %v2912 = vpop.f32.mrb[0].mxu0
    %v2913 = vadd.f32 0.0, %v2912
    %v2914 = vpop.f32.mrb[0].mxu0
    %v2915 = vadd.f32 0.0, %v2914
    %v2916 = vpop.f32.mrb[0].mxu0
    %v2917 = vpop.f32.mrb[0].mxu0
    %2918 = vdwg.mxu0
    %2919 = vmatprep.subr.bf16.mxu0 %v2133
    %2920 = vmatpush1.bf16.msra.mxu0 %v2132
    %2921 = vmatprep.subr.bf16.mxu0 %v2151
    %2922 = vmatpush1.bf16.msra.mxu0 %v2150
    %2923 = vmatprep.subr.bf16.mxu0 %v2169
    %2924 = vmatpush1.bf16.msra.mxu0 %v2168
    %2925 = vmatprep.subr.bf16.mxu0 %v2187
    %2926 = vmatpush1.bf16.msra.mxu0 %v2186
    %2927 = vmatprep.subr.bf16.mxu0 %v2205
    %2928 = vmatpush1.bf16.msra.mxu0 %v2204
    %2929 = vmatprep.subr.bf16.mxu0 %v2223
    %2930 = vmatpush1.bf16.msra.mxu0 %v2222
    %2931 = vmatprep.subr.bf16.mxu0 %v2241
    %2932 = vmatpush1.bf16.msra.mxu0 %v2240
    %2933 = vmatprep.subr.bf16.mxu0 %v2259
    %2934 = vmatpush1.bf16.msra.mxu0 %v2258
    %2935 = vmatprep.subr.bf16.mxu0 0
    %2936 = vmatpush1.bf16.msra.mxu0 0
    %2937 = vmatprep.subr.bf16.mxu0 0
    %2938 = vmatpush1.bf16.msra.mxu0 0
    %2939 = vmatprep.subr.bf16.mxu0 0
    %2940 = vmatpush1.bf16.msra.mxu0 0
    %2941 = vmatprep.subr.bf16.mxu0 0
    %2942 = vmatpush1.bf16.msra.mxu0 0
    %2943 = vmatprep.subr.bf16.mxu0 0
    %2944 = vmatpush1.bf16.msra.mxu0 0
    %2945 = vmatprep.subr.bf16.mxu0 0
    %2946 = vmatpush1.bf16.msra.mxu0 0
    %2947 = vmatprep.subr.bf16.mxu0 0
    %2948 = vmatpush1.bf16.msra.mxu0 0
    %2949 = vmatprep.subr.bf16.mxu0 0
    %2950 = vmatpush1.bf16.msra.mxu0 0
    %2951 = vmatprep.mubr.bf16.mxu0 0
    %2952 = vmatmul.mubr.bf16.gmra.mrb[0].mxu0 %v524
    %v2953 = vpop.f32.mrb[0].mxu0
    %v2954 = vadd.f32 %v2883, %v2953
    %v2955 = vpop.f32.mrb[0].mxu0
    %v2956 = vadd.f32 %v2885, %v2955
    %v2957 = vpop.f32.mrb[0].mxu0
    %v2958 = vadd.f32 %v2887, %v2957
    %v2959 = vpop.f32.mrb[0].mxu0
    %v2960 = vadd.f32 %v2889, %v2959
    %2961 = vmatprep.mubr.bf16.mxu0 0
    %2962 = vmatmul.mubr.bf16.gmra.mrb[0].mxu0 %v527
    %v2963 = vpop.f32.mrb[0].mxu0
    %v2964 = vadd.f32 %v2893, %v2963
    %v2965 = vpop.f32.mrb[0].mxu0
    %v2966 = vadd.f32 %v2895, %v2965
    %v2967 = vpop.f32.mrb[0].mxu0
    %v2968 = vadd.f32 %v2897, %v2967
    %v2969 = vpop.f32.mrb[0].mxu0
    %v2970 = vadd.f32 %v2899, %v2969
    %2971 = vmatprep.mubr.bf16.mxu0 0
    %2972 = vmatmul.mubr.bf16.gmra.mrb[0].mxu0 %v530
    %v2973 = vpop.f32.mrb[0].mxu0
    %v2974 = vadd.f32 %v2903, %v2973
    %v2975 = vpop.f32.mrb[0].mxu0
    %v2976 = vadd.f32 %v2905, %v2975
    %v2977 = vpop.f32.mrb[0].mxu0
    %v2978 = vadd.f32 %v2907, %v2977
    %v2979 = vpop.f32.mrb[0].mxu0
    %v2980 = vadd.f32 %v2909, %v2979
    %2981 = vmatprep.mubr.bf16.mxu0 0
    %2982 = vmatmul.mubr.bf16.gmra.mrb[0].mxu0 %v533
    %v2983 = vpop.f32.mrb[0].mxu0
    %v2984 = vadd.f32 %v2913, %v2983
    %v2985 = vpop.f32.mrb[0].mxu0
    %v2986 = vadd.f32 %v2915, %v2985
    %v2987 = vpop.f32.mrb[0].mxu0
    %v2988 = vpop.f32.mrb[0].mxu0
    %2989 = vdwg.mxu0
    %2990 = vmatprep.subr.bf16.mxu0 %v1847
    %2991 = vmatpush1.bf16.msra.mxu0 %v1846
    %2992 = vmatprep.subr.bf16.mxu0 %v1865
    %2993 = vmatpush1.bf16.msra.mxu0 %v1864
    %2994 = vmatprep.subr.bf16.mxu0 %v1883
    %2995 = vmatpush1.bf16.msra.mxu0 %v1882
    %2996 = vmatprep.subr.bf16.mxu0 %v1901
    %2997 = vmatpush1.bf16.msra.mxu0 %v1900
    %2998 = vmatprep.subr.bf16.mxu0 %v1919
    %2999 = vmatpush1.bf16.msra.mxu0 %v1918
    %3000 = vmatprep.subr.bf16.mxu0 %v1937
    %3001 = vmatpush1.bf16.msra.mxu0 %v1936
    %3002 = vmatprep.subr.bf16.mxu0 %v1955
    %3003 = vmatpush1.bf16.msra.mxu0 %v1954
    %3004 = vmatprep.subr.bf16.mxu0 %v1973
    %3005 = vmatpush1.bf16.msra.mxu0 %v1972
    %3006 = vmatprep.subr.bf16.mxu0 %v1991
    %3007 = vmatpush1.bf16.msra.mxu0 %v1990
    %3008 = vmatprep.subr.bf16.mxu0 %v2009
    %3009 = vmatpush1.bf16.msra.mxu0 %v2008
    %3010 = vmatprep.subr.bf16.mxu0 %v2027
    %3011 = vmatpush1.bf16.msra.mxu0 %v2026
    %3012 = vmatprep.subr.bf16.mxu0 %v2045
    %3013 = vmatpush1.bf16.msra.mxu0 %v2044
    %3014 = vmatprep.subr.bf16.mxu0 %v2063
    %3015 = vmatpush1.bf16.msra.mxu0 %v2062
    %3016 = vmatprep.subr.bf16.mxu0 %v2081
    %3017 = vmatpush1.bf16.msra.mxu0 %v2080
    %3018 = vmatprep.subr.bf16.mxu0 %v2099
    %3019 = vmatpush1.bf16.msra.mxu0 %v2098
    %3020 = vmatprep.subr.bf16.mxu0 %v2117
    %3021 = vmatpush1.bf16.msra.mxu0 %v2116
    %3022 = vmatprep.mubr.bf16.mxu0 %v523
    %3023 = vmatmul.mubr.bf16.gmra.mrb[0].mxu0 %v522
    %v3024 = vpop.f32.mrb[0].mxu0
    %v3025 = vadd.f32 0.0, %v3024
    %v3026 = vpop.f32.mrb[0].mxu0
    %v3027 = vadd.f32 0.0, %v3026
    %v3028 = vpop.f32.mrb[0].mxu0
    %v3029 = vadd.f32 0.0, %v3028
    %v3030 = vpop.f32.mrb[0].mxu0
    %v3031 = vadd.f32 0.0, %v3030
    %3032 = vmatprep.mubr.bf16.mxu0 %v526
    %3033 = vmatmul.mubr.bf16.gmra.mrb[0].mxu0 %v525
    %v3034 = vpop.f32.mrb[0].mxu0
    %v3035 = vadd.f32 0.0, %v3034
    %v3036 = vpop.f32.mrb[0].mxu0
    %v3037 = vadd.f32 0.0, %v3036
    %v3038 = vpop.f32.mrb[0].mxu0
    %v3039 = vadd.f32 0.0, %v3038
    %v3040 = vpop.f32.mrb[0].mxu0
    %v3041 = vadd.f32 0.0, %v3040
    %3042 = vmatprep.mubr.bf16.mxu0 %v529
    %3043 = vmatmul.mubr.bf16.gmra.mrb[0].mxu0 %v528
    %v3044 = vpop.f32.mrb[0].mxu0
    %v3045 = vadd.f32 0.0, %v3044
    %v3046 = vpop.f32.mrb[0].mxu0
    %v3047 = vadd.f32 0.0, %v3046
    %v3048 = vpop.f32.mrb[0].mxu0
    %v3049 = vadd.f32 0.0, %v3048
    %v3050 = vpop.f32.mrb[0].mxu0
    %v3051 = vadd.f32 0.0, %v3050
    %3052 = vmatprep.mubr.bf16.mxu0 %v532
    %3053 = vmatmul.mubr.bf16.gmra.mrb[0].mxu0 %v531
    %v3054 = vpop.f32.mrb[0].mxu0
    %v3055 = vadd.f32 0.0, %v3054
    %v3056 = vpop.f32.mrb[0].mxu0
    %v3057 = vadd.f32 0.0, %v3056
    %v3058 = vpop.f32.mrb[0].mxu0
    %v3059 = vpop.f32.mrb[0].mxu0
    %3060 = vdwg.mxu0
    %3061 = vmatprep.subr.bf16.mxu0 %v2135
    %3062 = vmatpush1.bf16.msra.mxu0 %v2134
    %3063 = vmatprep.subr.bf16.mxu0 %v2153
    %3064 = vmatpush1.bf16.msra.mxu0 %v2152
    %3065 = vmatprep.subr.bf16.mxu0 %v2171
    %3066 = vmatpush1.bf16.msra.mxu0 %v2170
    %3067 = vmatprep.subr.bf16.mxu0 %v2189
    %3068 = vmatpush1.bf16.msra.mxu0 %v2188
    %3069 = vmatprep.subr.bf16.mxu0 %v2207
    %3070 = vmatpush1.bf16.msra.mxu0 %v2206
    %3071 = vmatprep.subr.bf16.mxu0 %v2225
    %3072 = vmatpush1.bf16.msra.mxu0 %v2224
    %3073 = vmatprep.subr.bf16.mxu0 %v2243
    %3074 = vmatpush1.bf16.msra.mxu0 %v2242
    %3075 = vmatprep.subr.bf16.mxu0 %v2261
    %3076 = vmatpush1.bf16.msra.mxu0 %v2260
    %3077 = vmatprep.subr.bf16.mxu0 0
    %3078 = vmatpush1.bf16.msra.mxu0 0
    %3079 = vmatprep.subr.bf16.mxu0 0
    %3080 = vmatpush1.bf16.msra.mxu0 0
    %3081 = vmatprep.subr.bf16.mxu0 0
    %3082 = vmatpush1.bf16.msra.mxu0 0
    %3083 = vmatprep.subr.bf16.mxu0 0
    %3084 = vmatpush1.bf16.msra.mxu0 0
    %3085 = vmatprep.subr.bf16.mxu0 0
    %3086 = vmatpush1.bf16.msra.mxu0 0
    %3087 = vmatprep.subr.bf16.mxu0 0
    %3088 = vmatpush1.bf16.msra.mxu0 0
    %3089 = vmatprep.subr.bf16.mxu0 0
    %3090 = vmatpush1.bf16.msra.mxu0 0
    %3091 = vmatprep.subr.bf16.mxu0 0
    %3092 = vmatpush1.bf16.msra.mxu0 0
    %3093 = vmatprep.mubr.bf16.mxu0 0
    %3094 = vmatmul.mubr.bf16.gmra.mrb[0].mxu0 %v524
    %v3095 = vpop.f32.mrb[0].mxu0
    %v3096 = vadd.f32 %v3025, %v3095
    %v3097 = vpop.f32.mrb[0].mxu0
    %v3098 = vadd.f32 %v3027, %v3097
    %v3099 = vpop.f32.mrb[0].mxu0
    %v3100 = vadd.f32 %v3029, %v3099
    %v3101 = vpop.f32.mrb[0].mxu0
    %v3102 = vadd.f32 %v3031, %v3101
    %3103 = vmatprep.mubr.bf16.mxu0 0
    %3104 = vmatmul.mubr.bf16.gmra.mrb[0].mxu0 %v527
    %v3105 = vpop.f32.mrb[0].mxu0
    %v3106 = vadd.f32 %v3035, %v3105
    %v3107 = vpop.f32.mrb[0].mxu0
    %v3108 = vadd.f32 %v3037, %v3107
    %v3109 = vpop.f32.mrb[0].mxu0
    %v3110 = vadd.f32 %v3039, %v3109
    %v3111 = vpop.f32.mrb[0].mxu0
    %v3112 = vadd.f32 %v3041, %v3111
    %3113 = vmatprep.mubr.bf16.mxu0 0
    %3114 = vmatmul.mubr.bf16.gmra.mrb[0].mxu0 %v530
    %v3115 = vpop.f32.mrb[0].mxu0
    %v3116 = vadd.f32 %v3045, %v3115
    %v3117 = vpop.f32.mrb[0].mxu0
    %v3118 = vadd.f32 %v3047, %v3117
    %v3119 = vpop.f32.mrb[0].mxu0
    %v3120 = vadd.f32 %v3049, %v3119
    %v3121 = vpop.f32.mrb[0].mxu0
    %v3122 = vadd.f32 %v3051, %v3121
    %3123 = vmatprep.mubr.bf16.mxu0 0
    %3124 = vmatmul.mubr.bf16.gmra.mrb[0].mxu0 %v533
    %v3125 = vpop.f32.mrb[0].mxu0
    %v3126 = vadd.f32 %v3055, %v3125
    %v3127 = vpop.f32.mrb[0].mxu0
    %v3128 = vadd.f32 %v3057, %v3127
    %v3129 = vpop.f32.mrb[0].mxu0
    %v3130 = vpop.f32.mrb[0].mxu0
    %3131 = vdwg.mxu0
    %3132 = vmatprep.subr.bf16.mxu0 %v1849
    %3133 = vmatpush1.bf16.msra.mxu0 %v1848
    %3134 = vmatprep.subr.bf16.mxu0 %v1867
    %3135 = vmatpush1.bf16.msra.mxu0 %v1866
    %3136 = vmatprep.subr.bf16.mxu0 %v1885
    %3137 = vmatpush1.bf16.msra.mxu0 %v1884
    %3138 = vmatprep.subr.bf16.mxu0 %v1903
    %3139 = vmatpush1.bf16.msra.mxu0 %v1902
    %3140 = vmatprep.subr.bf16.mxu0 %v1921
    %3141 = vmatpush1.bf16.msra.mxu0 %v1920
    %3142 = vmatprep.subr.bf16.mxu0 %v1939
    %3143 = vmatpush1.bf16.msra.mxu0 %v1938
    %3144 = vmatprep.subr.bf16.mxu0 %v1957
    %3145 = vmatpush1.bf16.msra.mxu0 %v1956
    %3146 = vmatprep.subr.bf16.mxu0 %v1975
    %3147 = vmatpush1.bf16.msra.mxu0 %v1974
    %3148 = vmatprep.subr.bf16.mxu0 %v1993
    %3149 = vmatpush1.bf16.msra.mxu0 %v1992
    %3150 = vmatprep.subr.bf16.mxu0 %v2011
    %3151 = vmatpush1.bf16.msra.mxu0 %v2010
    %3152 = vmatprep.subr.bf16.mxu0 %v2029
    %3153 = vmatpush1.bf16.msra.mxu0 %v2028
    %3154 = vmatprep.subr.bf16.mxu0 %v2047
    %3155 = vmatpush1.bf16.msra.mxu0 %v2046
    %3156 = vmatprep.subr.bf16.mxu0 %v2065
    %3157 = vmatpush1.bf16.msra.mxu0 %v2064
    %3158 = vmatprep.subr.bf16.mxu0 %v2083
    %3159 = vmatpush1.bf16.msra.mxu0 %v2082
    %3160 = vmatprep.subr.bf16.mxu0 %v2101
    %3161 = vmatpush1.bf16.msra.mxu0 %v2100
    %3162 = vmatprep.subr.bf16.mxu0 %v2119
    %3163 = vmatpush1.bf16.msra.mxu0 %v2118
    %3164 = vmatprep.mubr.bf16.mxu0 %v523
    %3165 = vmatmul.mubr.bf16.gmra.mrb[0].mxu0 %v522
    %v3166 = vpop.f32.mrb[0].mxu0
    %v3167 = vadd.f32 0.0, %v3166
    %v3168 = vpop.f32.mrb[0].mxu0
    %v3169 = vadd.f32 0.0, %v3168
    %v3170 = vpop.f32.mrb[0].mxu0
    %v3171 = vadd.f32 0.0, %v3170
    %v3172 = vpop.f32.mrb[0].mxu0
    %v3173 = vadd.f32 0.0, %v3172
    %3174 = vmatprep.mubr.bf16.mxu0 %v526
    %3175 = vmatmul.mubr.bf16.gmra.mrb[0].mxu0 %v525
    %v3176 = vpop.f32.mrb[0].mxu0
    %v3177 = vadd.f32 0.0, %v3176
    %v3178 = vpop.f32.mrb[0].mxu0
    %v3179 = vadd.f32 0.0, %v3178
    %v3180 = vpop.f32.mrb[0].mxu0
    %v3181 = vadd.f32 0.0, %v3180
    %v3182 = vpop.f32.mrb[0].mxu0
    %v3183 = vadd.f32 0.0, %v3182
    %3184 = vmatprep.mubr.bf16.mxu0 %v529
    %3185 = vmatmul.mubr.bf16.gmra.mrb[0].mxu0 %v528
    %v3186 = vpop.f32.mrb[0].mxu0
    %v3187 = vadd.f32 0.0, %v3186
    %v3188 = vpop.f32.mrb[0].mxu0
    %v3189 = vadd.f32 0.0, %v3188
    %v3190 = vpop.f32.mrb[0].mxu0
    %v3191 = vadd.f32 0.0, %v3190
    %v3192 = vpop.f32.mrb[0].mxu0
    %v3193 = vadd.f32 0.0, %v3192
    %3194 = vmatprep.mubr.bf16.mxu0 %v532
    %3195 = vmatmul.mubr.bf16.gmra.mrb[0].mxu0 %v531
    %v3196 = vpop.f32.mrb[0].mxu0
    %v3197 = vadd.f32 0.0, %v3196
    %v3198 = vpop.f32.mrb[0].mxu0
    %v3199 = vadd.f32 0.0, %v3198
    %v3200 = vpop.f32.mrb[0].mxu0
    %v3201 = vpop.f32.mrb[0].mxu0
    %3202 = vdwg.mxu0
    %3203 = vmatprep.subr.bf16.mxu0 %v2137
    %3204 = vmatpush1.bf16.msra.mxu0 %v2136
    %3205 = vmatprep.subr.bf16.mxu0 %v2155
    %3206 = vmatpush1.bf16.msra.mxu0 %v2154
    %3207 = vmatprep.subr.bf16.mxu0 %v2173
    %3208 = vmatpush1.bf16.msra.mxu0 %v2172
    %3209 = vmatprep.subr.bf16.mxu0 %v2191
    %3210 = vmatpush1.bf16.msra.mxu0 %v2190
    %3211 = vmatprep.subr.bf16.mxu0 %v2209
    %3212 = vmatpush1.bf16.msra.mxu0 %v2208
    %3213 = vmatprep.subr.bf16.mxu0 %v2227
    %3214 = vmatpush1.bf16.msra.mxu0 %v2226
    %3215 = vmatprep.subr.bf16.mxu0 %v2245
    %3216 = vmatpush1.bf16.msra.mxu0 %v2244
    %3217 = vmatprep.subr.bf16.mxu0 %v2263
    %3218 = vmatpush1.bf16.msra.mxu0 %v2262
    %3219 = vmatprep.subr.bf16.mxu0 0
    %3220 = vmatpush1.bf16.msra.mxu0 0
    %3221 = vmatprep.subr.bf16.mxu0 0
    %3222 = vmatpush1.bf16.msra.mxu0 0
    %3223 = vmatprep.subr.bf16.mxu0 0
    %3224 = vmatpush1.bf16.msra.mxu0 0
    %3225 = vmatprep.subr.bf16.mxu0 0
    %3226 = vmatpush1.bf16.msra.mxu0 0
    %3227 = vmatprep.subr.bf16.mxu0 0
    %3228 = vmatpush1.bf16.msra.mxu0 0
    %3229 = vmatprep.subr.bf16.mxu0 0
    %3230 = vmatpush1.bf16.msra.mxu0 0
    %3231 = vmatprep.subr.bf16.mxu0 0
    %3232 = vmatpush1.bf16.msra.mxu0 0
    %3233 = vmatprep.subr.bf16.mxu0 0
    %3234 = vmatpush1.bf16.msra.mxu0 0
    %3235 = vmatprep.mubr.bf16.mxu0 0
    %3236 = vmatmul.mubr.bf16.gmra.mrb[0].mxu0 %v524
    %v3237 = vpop.f32.mrb[0].mxu0
    %v3238 = vadd.f32 %v3167, %v3237
    %v3239 = vpop.f32.mrb[0].mxu0
    %v3240 = vadd.f32 %v3169, %v3239
    %v3241 = vpop.f32.mrb[0].mxu0
    %v3242 = vadd.f32 %v3171, %v3241
    %v3243 = vpop.f32.mrb[0].mxu0
    %v3244 = vadd.f32 %v3173, %v3243
    %3245 = vmatprep.mubr.bf16.mxu0 0
    %3246 = vmatmul.mubr.bf16.gmra.mrb[0].mxu0 %v527
    %v3247 = vpop.f32.mrb[0].mxu0
    %v3248 = vadd.f32 %v3177, %v3247
    %v3249 = vpop.f32.mrb[0].mxu0
    %v3250 = vadd.f32 %v3179, %v3249
    %v3251 = vpop.f32.mrb[0].mxu0
    %v3252 = vadd.f32 %v3181, %v3251
    %v3253 = vpop.f32.mrb[0].mxu0
    %v3254 = vadd.f32 %v3183, %v3253
    %3255 = vmatprep.mubr.bf16.mxu0 0
    %3256 = vmatmul.mubr.bf16.gmra.mrb[0].mxu0 %v530
    %v3257 = vpop.f32.mrb[0].mxu0
    %v3258 = vadd.f32 %v3187, %v3257
    %v3259 = vpop.f32.mrb[0].mxu0
    %v3260 = vadd.f32 %v3189, %v3259
    %v3261 = vpop.f32.mrb[0].mxu0
    %v3262 = vadd.f32 %v3191, %v3261
    %v3263 = vpop.f32.mrb[0].mxu0
    %v3264 = vadd.f32 %v3193, %v3263
    %3265 = vmatprep.mubr.bf16.mxu0 0
    %3266 = vmatmul.mubr.bf16.gmra.mrb[0].mxu0 %v533
    %v3267 = vpop.f32.mrb[0].mxu0
    %v3268 = vadd.f32 %v3197, %v3267
    %v3269 = vpop.f32.mrb[0].mxu0
    %v3270 = vadd.f32 %v3199, %v3269
    %v3271 = vpop.f32.mrb[0].mxu0
    %v3272 = vpop.f32.mrb[0].mxu0
    %3273 = vdwg.mxu0
    %3274 = vmatprep.subr.bf16.mxu0 %v1851
    %3275 = vmatpush1.bf16.msra.mxu0 %v1850
    %3276 = vmatprep.subr.bf16.mxu0 %v1869
    %3277 = vmatpush1.bf16.msra.mxu0 %v1868
    %3278 = vmatprep.subr.bf16.mxu0 %v1887
    %3279 = vmatpush1.bf16.msra.mxu0 %v1886
    %3280 = vmatprep.subr.bf16.mxu0 %v1905
    %3281 = vmatpush1.bf16.msra.mxu0 %v1904
    %3282 = vmatprep.subr.bf16.mxu0 %v1923
    %3283 = vmatpush1.bf16.msra.mxu0 %v1922
    %3284 = vmatprep.subr.bf16.mxu0 %v1941
    %3285 = vmatpush1.bf16.msra.mxu0 %v1940
    %3286 = vmatprep.subr.bf16.mxu0 %v1959
    %3287 = vmatpush1.bf16.msra.mxu0 %v1958
    %3288 = vmatprep.subr.bf16.mxu0 %v1977
    %3289 = vmatpush1.bf16.msra.mxu0 %v1976
    %3290 = vmatprep.subr.bf16.mxu0 %v1995
    %3291 = vmatpush1.bf16.msra.mxu0 %v1994
    %3292 = vmatprep.subr.bf16.mxu0 %v2013
    %3293 = vmatpush1.bf16.msra.mxu0 %v2012
    %3294 = vmatprep.subr.bf16.mxu0 %v2031
    %3295 = vmatpush1.bf16.msra.mxu0 %v2030
    %3296 = vmatprep.subr.bf16.mxu0 %v2049
    %3297 = vmatpush1.bf16.msra.mxu0 %v2048
    %3298 = vmatprep.subr.bf16.mxu0 %v2067
    %3299 = vmatpush1.bf16.msra.mxu0 %v2066
    %3300 = vmatprep.subr.bf16.mxu0 %v2085
    %3301 = vmatpush1.bf16.msra.mxu0 %v2084
    %3302 = vmatprep.subr.bf16.mxu0 %v2103
    %3303 = vmatpush1.bf16.msra.mxu0 %v2102
    %3304 = vmatprep.subr.bf16.mxu0 %v2121
    %3305 = vmatpush1.bf16.msra.mxu0 %v2120
    %3306 = vmatprep.mubr.bf16.mxu0 %v523
    %3307 = vmatmul.mubr.bf16.gmra.mrb[0].mxu0 %v522
    %v3308 = vpop.f32.mrb[0].mxu0
    %v3309 = vadd.f32 0.0, %v3308
    %v3310 = vpop.f32.mrb[0].mxu0
    %v3311 = vadd.f32 0.0, %v3310
    %v3312 = vpop.f32.mrb[0].mxu0
    %v3313 = vadd.f32 0.0, %v3312
    %v3314 = vpop.f32.mrb[0].mxu0
    %v3315 = vadd.f32 0.0, %v3314
    %3316 = vmatprep.mubr.bf16.mxu0 %v526
    %3317 = vmatmul.mubr.bf16.gmra.mrb[0].mxu0 %v525
    %v3318 = vpop.f32.mrb[0].mxu0
    %v3319 = vadd.f32 0.0, %v3318
    %v3320 = vpop.f32.mrb[0].mxu0
    %v3321 = vadd.f32 0.0, %v3320
    %v3322 = vpop.f32.mrb[0].mxu0
    %v3323 = vadd.f32 0.0, %v3322
    %v3324 = vpop.f32.mrb[0].mxu0
    %v3325 = vadd.f32 0.0, %v3324
    %3326 = vmatprep.mubr.bf16.mxu0 %v529
    %3327 = vmatmul.mubr.bf16.gmra.mrb[0].mxu0 %v528
    %v3328 = vpop.f32.mrb[0].mxu0
    %v3329 = vadd.f32 0.0, %v3328
    %v3330 = vpop.f32.mrb[0].mxu0
    %v3331 = vadd.f32 0.0, %v3330
    %v3332 = vpop.f32.mrb[0].mxu0
    %v3333 = vadd.f32 0.0, %v3332
    %v3334 = vpop.f32.mrb[0].mxu0
    %v3335 = vadd.f32 0.0, %v3334
    %3336 = vmatprep.mubr.bf16.mxu0 %v532
    %3337 = vmatmul.mubr.bf16.gmra.mrb[0].mxu0 %v531
    %v3338 = vpop.f32.mrb[0].mxu0
    %v3339 = vadd.f32 0.0, %v3338
    %v3340 = vpop.f32.mrb[0].mxu0
    %v3341 = vadd.f32 0.0, %v3340
    %v3342 = vpop.f32.mrb[0].mxu0
    %v3343 = vpop.f32.mrb[0].mxu0
    %3344 = vdwg.mxu0
    %3345 = vmatprep.subr.bf16.mxu0 %v2139
    %3346 = vmatpush1.bf16.msra.mxu0 %v2138
    %3347 = vmatprep.subr.bf16.mxu0 %v2157
    %3348 = vmatpush1.bf16.msra.mxu0 %v2156
    %3349 = vmatprep.subr.bf16.mxu0 %v2175
    %3350 = vmatpush1.bf16.msra.mxu0 %v2174
    %3351 = vmatprep.subr.bf16.mxu0 %v2193
    %3352 = vmatpush1.bf16.msra.mxu0 %v2192
    %3353 = vmatprep.subr.bf16.mxu0 %v2211
    %3354 = vmatpush1.bf16.msra.mxu0 %v2210
    %3355 = vmatprep.subr.bf16.mxu0 %v2229
    %3356 = vmatpush1.bf16.msra.mxu0 %v2228
    %3357 = vmatprep.subr.bf16.mxu0 %v2247
    %3358 = vmatpush1.bf16.msra.mxu0 %v2246
    %3359 = vmatprep.subr.bf16.mxu0 %v2265
    %3360 = vmatpush1.bf16.msra.mxu0 %v2264
    %3361 = vmatprep.subr.bf16.mxu0 0
    %3362 = vmatpush1.bf16.msra.mxu0 0
    %3363 = vmatprep.subr.bf16.mxu0 0
    %3364 = vmatpush1.bf16.msra.mxu0 0
    %3365 = vmatprep.subr.bf16.mxu0 0
    %3366 = vmatpush1.bf16.msra.mxu0 0
    %3367 = vmatprep.subr.bf16.mxu0 0
    %3368 = vmatpush1.bf16.msra.mxu0 0
    %3369 = vmatprep.subr.bf16.mxu0 0
    %3370 = vmatpush1.bf16.msra.mxu0 0
    %3371 = vmatprep.subr.bf16.mxu0 0
    %3372 = vmatpush1.bf16.msra.mxu0 0
    %3373 = vmatprep.subr.bf16.mxu0 0
    %3374 = vmatpush1.bf16.msra.mxu0 0
    %3375 = vmatprep.subr.bf16.mxu0 0
    %3376 = vmatpush1.bf16.msra.mxu0 0
    %3377 = vmatprep.mubr.bf16.mxu0 0
    %3378 = vmatmul.mubr.bf16.gmra.mrb[0].mxu0 %v524
    %v3379 = vpop.f32.mrb[0].mxu0
    %v3380 = vadd.f32 %v3309, %v3379
    %v3381 = vpop.f32.mrb[0].mxu0
    %v3382 = vadd.f32 %v3311, %v3381
    %v3383 = vpop.f32.mrb[0].mxu0
    %v3384 = vadd.f32 %v3313, %v3383
    %v3385 = vpop.f32.mrb[0].mxu0
    %v3386 = vadd.f32 %v3315, %v3385
    %3387 = vmatprep.mubr.bf16.mxu0 0
    %3388 = vmatmul.mubr.bf16.gmra.mrb[0].mxu0 %v527
    %v3389 = vpop.f32.mrb[0].mxu0
    %v3390 = vadd.f32 %v3319, %v3389
    %v3391 = vpop.f32.mrb[0].mxu0
    %v3392 = vadd.f32 %v3321, %v3391
    %v3393 = vpop.f32.mrb[0].mxu0
    %v3394 = vadd.f32 %v3323, %v3393
    %v3395 = vpop.f32.mrb[0].mxu0
    %v3396 = vadd.f32 %v3325, %v3395
    %3397 = vmatprep.mubr.bf16.mxu0 0
    %3398 = vmatmul.mubr.bf16.gmra.mrb[0].mxu0 %v530
    %v3399 = vpop.f32.mrb[0].mxu0
    %v3400 = vadd.f32 %v3329, %v3399
    %v3401 = vpop.f32.mrb[0].mxu0
    %v3402 = vadd.f32 %v3331, %v3401
    %v3403 = vpop.f32.mrb[0].mxu0
    %v3404 = vadd.f32 %v3333, %v3403
    %v3405 = vpop.f32.mrb[0].mxu0
    %v3406 = vadd.f32 %v3335, %v3405
    %3407 = vmatprep.mubr.bf16.mxu0 0
    %3408 = vmatmul.mubr.bf16.gmra.mrb[0].mxu0 %v533
    %v3409 = vpop.f32.mrb[0].mxu0
    %v3410 = vadd.f32 %v3339, %v3409
    %v3411 = vpop.f32.mrb[0].mxu0
    %v3412 = vadd.f32 %v3341, %v3411
    %v3413 = vpop.f32.mrb[0].mxu0
    %v3414 = vpop.f32.mrb[0].mxu0
    %3415 = vdwg.mxu0
    %3416 = vmatprep.subr.bf16.mxu0 %v1853
    %3417 = vmatpush1.bf16.msra.mxu0 %v1852
    %3418 = vmatprep.subr.bf16.mxu0 %v1871
    %3419 = vmatpush1.bf16.msra.mxu0 %v1870
    %3420 = vmatprep.subr.bf16.mxu0 %v1889
    %3421 = vmatpush1.bf16.msra.mxu0 %v1888
    %3422 = vmatprep.subr.bf16.mxu0 %v1907
    %3423 = vmatpush1.bf16.msra.mxu0 %v1906
    %3424 = vmatprep.subr.bf16.mxu0 %v1925
    %3425 = vmatpush1.bf16.msra.mxu0 %v1924
    %3426 = vmatprep.subr.bf16.mxu0 %v1943
    %3427 = vmatpush1.bf16.msra.mxu0 %v1942
    %3428 = vmatprep.subr.bf16.mxu0 %v1961
    %3429 = vmatpush1.bf16.msra.mxu0 %v1960
    %3430 = vmatprep.subr.bf16.mxu0 %v1979
    %3431 = vmatpush1.bf16.msra.mxu0 %v1978
    %3432 = vmatprep.subr.bf16.mxu0 %v1997
    %3433 = vmatpush1.bf16.msra.mxu0 %v1996
    %3434 = vmatprep.subr.bf16.mxu0 %v2015
    %3435 = vmatpush1.bf16.msra.mxu0 %v2014
    %3436 = vmatprep.subr.bf16.mxu0 %v2033
    %3437 = vmatpush1.bf16.msra.mxu0 %v2032
    %3438 = vmatprep.subr.bf16.mxu0 %v2051
    %3439 = vmatpush1.bf16.msra.mxu0 %v2050
    %3440 = vmatprep.subr.bf16.mxu0 %v2069
    %3441 = vmatpush1.bf16.msra.mxu0 %v2068
    %3442 = vmatprep.subr.bf16.mxu0 %v2087
    %3443 = vmatpush1.bf16.msra.mxu0 %v2086
    %3444 = vmatprep.subr.bf16.mxu0 %v2105
    %3445 = vmatpush1.bf16.msra.mxu0 %v2104
    %3446 = vmatprep.subr.bf16.mxu0 %v2123
    %3447 = vmatpush1.bf16.msra.mxu0 %v2122
    %3448 = vmatprep.mubr.bf16.mxu0 %v523
    %3449 = vmatmul.mubr.bf16.gmra.mrb[0].mxu0 %v522
    %v3450 = vpop.f32.mrb[0].mxu0
    %v3451 = vadd.f32 0.0, %v3450
    %v3452 = vpop.f32.mrb[0].mxu0
    %v3453 = vadd.f32 0.0, %v3452
    %v3454 = vpop.f32.mrb[0].mxu0
    %v3455 = vadd.f32 0.0, %v3454
    %v3456 = vpop.f32.mrb[0].mxu0
    %v3457 = vadd.f32 0.0, %v3456
    %3458 = vmatprep.mubr.bf16.mxu0 %v526
    %3459 = vmatmul.mubr.bf16.gmra.mrb[0].mxu0 %v525
    %v3460 = vpop.f32.mrb[0].mxu0
    %v3461 = vadd.f32 0.0, %v3460
    %v3462 = vpop.f32.mrb[0].mxu0
    %v3463 = vadd.f32 0.0, %v3462
    %v3464 = vpop.f32.mrb[0].mxu0
    %v3465 = vadd.f32 0.0, %v3464
    %v3466 = vpop.f32.mrb[0].mxu0
    %v3467 = vadd.f32 0.0, %v3466
    %3468 = vmatprep.mubr.bf16.mxu0 %v529
    %3469 = vmatmul.mubr.bf16.gmra.mrb[0].mxu0 %v528
    %v3470 = vpop.f32.mrb[0].mxu0
    %v3471 = vadd.f32 0.0, %v3470
    %v3472 = vpop.f32.mrb[0].mxu0
    %v3473 = vadd.f32 0.0, %v3472
    %v3474 = vpop.f32.mrb[0].mxu0
    %v3475 = vadd.f32 0.0, %v3474
    %v3476 = vpop.f32.mrb[0].mxu0
    %v3477 = vadd.f32 0.0, %v3476
    %3478 = vmatprep.mubr.bf16.mxu0 %v532
    %3479 = vmatmul.mubr.bf16.gmra.mrb[0].mxu0 %v531
    %v3480 = vpop.f32.mrb[0].mxu0
    %v3481 = vadd.f32 0.0, %v3480
    %v3482 = vpop.f32.mrb[0].mxu0
    %v3483 = vadd.f32 0.0, %v3482
    %v3484 = vpop.f32.mrb[0].mxu0
    %v3485 = vpop.f32.mrb[0].mxu0
    %3486 = vdwg.mxu0
    %3487 = vmatprep.subr.bf16.mxu0 %v2141
    %3488 = vmatpush1.bf16.msra.mxu0 %v2140
    %3489 = vmatprep.subr.bf16.mxu0 %v2159
    %3490 = vmatpush1.bf16.msra.mxu0 %v2158
    %3491 = vmatprep.subr.bf16.mxu0 %v2177
    %3492 = vmatpush1.bf16.msra.mxu0 %v2176
    %3493 = vmatprep.subr.bf16.mxu0 %v2195
    %3494 = vmatpush1.bf16.msra.mxu0 %v2194
    %3495 = vmatprep.subr.bf16.mxu0 %v2213
    %3496 = vmatpush1.bf16.msra.mxu0 %v2212
    %3497 = vmatprep.subr.bf16.mxu0 %v2231
    %3498 = vmatpush1.bf16.msra.mxu0 %v2230
    %3499 = vmatprep.subr.bf16.mxu0 %v2249
    %3500 = vmatpush1.bf16.msra.mxu0 %v2248
    %3501 = vmatprep.subr.bf16.mxu0 %v2267
    %3502 = vmatpush1.bf16.msra.mxu0 %v2266
    %3503 = vmatprep.subr.bf16.mxu0 0
    %3504 = vmatpush1.bf16.msra.mxu0 0
    %3505 = vmatprep.subr.bf16.mxu0 0
    %3506 = vmatpush1.bf16.msra.mxu0 0
    %3507 = vmatprep.subr.bf16.mxu0 0
    %3508 = vmatpush1.bf16.msra.mxu0 0
    %3509 = vmatprep.subr.bf16.mxu0 0
    %3510 = vmatpush1.bf16.msra.mxu0 0
    %3511 = vmatprep.subr.bf16.mxu0 0
    %3512 = vmatpush1.bf16.msra.mxu0 0
    %3513 = vmatprep.subr.bf16.mxu0 0
    %3514 = vmatpush1.bf16.msra.mxu0 0
    %3515 = vmatprep.subr.bf16.mxu0 0
    %3516 = vmatpush1.bf16.msra.mxu0 0
    %3517 = vmatprep.subr.bf16.mxu0 0
    %3518 = vmatpush1.bf16.msra.mxu0 0
    %3519 = vmatprep.mubr.bf16.mxu0 0
    %3520 = vmatmul.mubr.bf16.gmra.mrb[0].mxu0 %v524
    %v3521 = vpop.f32.mrb[0].mxu0
    %v3522 = vadd.f32 %v3451, %v3521
    %v3523 = vpop.f32.mrb[0].mxu0
    %v3524 = vadd.f32 %v3453, %v3523
    %v3525 = vpop.f32.mrb[0].mxu0
    %v3526 = vadd.f32 %v3455, %v3525
    %v3527 = vpop.f32.mrb[0].mxu0
    %v3528 = vadd.f32 %v3457, %v3527
    %3529 = vmatprep.mubr.bf16.mxu0 0
    %3530 = vmatmul.mubr.bf16.gmra.mrb[0].mxu0 %v527
    %v3531 = vpop.f32.mrb[0].mxu0
    %v3532 = vadd.f32 %v3461, %v3531
    %v3533 = vpop.f32.mrb[0].mxu0
    %v3534 = vadd.f32 %v3463, %v3533
    %v3535 = vpop.f32.mrb[0].mxu0
    %v3536 = vadd.f32 %v3465, %v3535
    %v3537 = vpop.f32.mrb[0].mxu0
    %v3538 = vadd.f32 %v3467, %v3537
    %3539 = vmatprep.mubr.bf16.mxu0 0
    %3540 = vmatmul.mubr.bf16.gmra.mrb[0].mxu0 %v530
    %v3541 = vpop.f32.mrb[0].mxu0
    %v3542 = vadd.f32 %v3471, %v3541
    %v3543 = vpop.f32.mrb[0].mxu0
    %v3544 = vadd.f32 %v3473, %v3543
    %v3545 = vpop.f32.mrb[0].mxu0
    %v3546 = vadd.f32 %v3475, %v3545
    %v3547 = vpop.f32.mrb[0].mxu0
    %v3548 = vadd.f32 %v3477, %v3547
    %3549 = vmatprep.mubr.bf16.mxu0 0
    %3550 = vmatmul.mubr.bf16.gmra.mrb[0].mxu0 %v533
    %v3551 = vpop.f32.mrb[0].mxu0
    %v3552 = vadd.f32 %v3481, %v3551
    %v3553 = vpop.f32.mrb[0].mxu0
    %v3554 = vadd.f32 %v3483, %v3553
    %v3555 = vpop.f32.mrb[0].mxu0
    %v3556 = vpop.f32.mrb[0].mxu0
    %3557 = vdwg.mxu0
    %3558 = vmatprep.subr.bf16.mxu0 %v1855
    %3559 = vmatpush1.bf16.msra.mxu0 %v1854
    %3560 = vmatprep.subr.bf16.mxu0 %v1873
    %3561 = vmatpush1.bf16.msra.mxu0 %v1872
    %3562 = vmatprep.subr.bf16.mxu0 %v1891
    %3563 = vmatpush1.bf16.msra.mxu0 %v1890
    %3564 = vmatprep.subr.bf16.mxu0 %v1909
    %3565 = vmatpush1.bf16.msra.mxu0 %v1908
    %3566 = vmatprep.subr.bf16.mxu0 %v1927
    %3567 = vmatpush1.bf16.msra.mxu0 %v1926
    %3568 = vmatprep.subr.bf16.mxu0 %v1945
    %3569 = vmatpush1.bf16.msra.mxu0 %v1944
    %3570 = vmatprep.subr.bf16.mxu0 %v1963
    %3571 = vmatpush1.bf16.msra.mxu0 %v1962
    %3572 = vmatprep.subr.bf16.mxu0 %v1981
    %3573 = vmatpush1.bf16.msra.mxu0 %v1980
    %3574 = vmatprep.subr.bf16.mxu0 %v1999
    %3575 = vmatpush1.bf16.msra.mxu0 %v1998
    %3576 = vmatprep.subr.bf16.mxu0 %v2017
    %3577 = vmatpush1.bf16.msra.mxu0 %v2016
    %3578 = vmatprep.subr.bf16.mxu0 %v2035
    %3579 = vmatpush1.bf16.msra.mxu0 %v2034
    %3580 = vmatprep.subr.bf16.mxu0 %v2053
    %3581 = vmatpush1.bf16.msra.mxu0 %v2052
    %3582 = vmatprep.subr.bf16.mxu0 %v2071
    %3583 = vmatpush1.bf16.msra.mxu0 %v2070
    %3584 = vmatprep.subr.bf16.mxu0 %v2089
    %3585 = vmatpush1.bf16.msra.mxu0 %v2088
    %3586 = vmatprep.subr.bf16.mxu0 %v2107
    %3587 = vmatpush1.bf16.msra.mxu0 %v2106
    %3588 = vmatprep.subr.bf16.mxu0 %v2125
    %3589 = vmatpush1.bf16.msra.mxu0 %v2124
    %3590 = vmatprep.mubr.bf16.mxu0 %v523
    %3591 = vmatmul.mubr.bf16.gmra.mrb[0].mxu0 %v522
    %v3592 = vpop.f32.mrb[0].mxu0
    %v3593 = vadd.f32 0.0, %v3592
    %v3594 = vpop.f32.mrb[0].mxu0
    %v3595 = vadd.f32 0.0, %v3594
    %v3596 = vpop.f32.mrb[0].mxu0
    %v3597 = vadd.f32 0.0, %v3596
    %v3598 = vpop.f32.mrb[0].mxu0
    %v3599 = vadd.f32 0.0, %v3598
    %3600 = vmatprep.mubr.bf16.mxu0 %v526
    %3601 = vmatmul.mubr.bf16.gmra.mrb[0].mxu0 %v525
    %v3602 = vpop.f32.mrb[0].mxu0
    %v3603 = vadd.f32 0.0, %v3602
    %v3604 = vpop.f32.mrb[0].mxu0
    %v3605 = vadd.f32 0.0, %v3604
    %v3606 = vpop.f32.mrb[0].mxu0
    %v3607 = vadd.f32 0.0, %v3606
    %v3608 = vpop.f32.mrb[0].mxu0
    %v3609 = vadd.f32 0.0, %v3608
    %3610 = vmatprep.mubr.bf16.mxu0 %v529
    %3611 = vmatmul.mubr.bf16.gmra.mrb[0].mxu0 %v528
    %v3612 = vpop.f32.mrb[0].mxu0
    %v3613 = vadd.f32 0.0, %v3612
    %v3614 = vpop.f32.mrb[0].mxu0
    %v3615 = vadd.f32 0.0, %v3614
    %v3616 = vpop.f32.mrb[0].mxu0
    %v3617 = vadd.f32 0.0, %v3616
    %v3618 = vpop.f32.mrb[0].mxu0
    %v3619 = vadd.f32 0.0, %v3618
    %3620 = vmatprep.mubr.bf16.mxu0 %v532
    %3621 = vmatmul.mubr.bf16.gmra.mrb[0].mxu0 %v531
    %v3622 = vpop.f32.mrb[0].mxu0
    %v3623 = vadd.f32 0.0, %v3622
    %v3624 = vpop.f32.mrb[0].mxu0
    %v3625 = vadd.f32 0.0, %v3624
    %v3626 = vpop.f32.mrb[0].mxu0
    %v3627 = vpop.f32.mrb[0].mxu0
    %3628 = vdwg.mxu0
    %3629 = vmatprep.subr.bf16.mxu0 %v2143
    %3630 = vmatpush1.bf16.msra.mxu0 %v2142
    %3631 = vmatprep.subr.bf16.mxu0 %v2161
    %3632 = vmatpush1.bf16.msra.mxu0 %v2160
    %3633 = vmatprep.subr.bf16.mxu0 %v2179
    %3634 = vmatpush1.bf16.msra.mxu0 %v2178
    %3635 = vmatprep.subr.bf16.mxu0 %v2197
    %3636 = vmatpush1.bf16.msra.mxu0 %v2196
    %3637 = vmatprep.subr.bf16.mxu0 %v2215
    %3638 = vmatpush1.bf16.msra.mxu0 %v2214
    %3639 = vmatprep.subr.bf16.mxu0 %v2233
    %3640 = vmatpush1.bf16.msra.mxu0 %v2232
    %3641 = vmatprep.subr.bf16.mxu0 %v2251
    %3642 = vmatpush1.bf16.msra.mxu0 %v2250
    %3643 = vmatprep.subr.bf16.mxu0 %v2269
    %3644 = vmatpush1.bf16.msra.mxu0 %v2268
    %3645 = vmatprep.subr.bf16.mxu0 0
    %3646 = vmatpush1.bf16.msra.mxu0 0
    %3647 = vmatprep.subr.bf16.mxu0 0
    %3648 = vmatpush1.bf16.msra.mxu0 0
    %3649 = vmatprep.subr.bf16.mxu0 0
    %3650 = vmatpush1.bf16.msra.mxu0 0
    %3651 = vmatprep.subr.bf16.mxu0 0
    %3652 = vmatpush1.bf16.msra.mxu0 0
    %3653 = vmatprep.subr.bf16.mxu0 0
    %3654 = vmatpush1.bf16.msra.mxu0 0
    %3655 = vmatprep.subr.bf16.mxu0 0
    %3656 = vmatpush1.bf16.msra.mxu0 0
    %3657 = vmatprep.subr.bf16.mxu0 0
    %3658 = vmatpush1.bf16.msra.mxu0 0
    %3659 = vmatprep.subr.bf16.mxu0 0
    %3660 = vmatpush1.bf16.msra.mxu0 0
    %3661 = vmatprep.mubr.bf16.mxu0 0
    %3662 = vmatmul.mubr.bf16.gmra.mrb[0].mxu0 %v524
    %v3663 = vpop.f32.mrb[0].mxu0
    %v3664 = vadd.f32 %v3593, %v3663
    %v3665 = vpop.f32.mrb[0].mxu0
    %v3666 = vadd.f32 %v3595, %v3665
    %v3667 = vpop.f32.mrb[0].mxu0
    %v3668 = vadd.f32 %v3597, %v3667
    %v3669 = vpop.f32.mrb[0].mxu0
    %v3670 = vadd.f32 %v3599, %v3669
    %3671 = vmatprep.mubr.bf16.mxu0 0
    %3672 = vmatmul.mubr.bf16.gmra.mrb[0].mxu0 %v527
    %v3673 = vpop.f32.mrb[0].mxu0
    %v3674 = vadd.f32 %v3603, %v3673
    %v3675 = vpop.f32.mrb[0].mxu0
    %v3676 = vadd.f32 %v3605, %v3675
    %v3677 = vpop.f32.mrb[0].mxu0
    %v3678 = vadd.f32 %v3607, %v3677
    %v3679 = vpop.f32.mrb[0].mxu0
    %v3680 = vadd.f32 %v3609, %v3679
    %3681 = vmatprep.mubr.bf16.mxu0 0
    %3682 = vmatmul.mubr.bf16.gmra.mrb[0].mxu0 %v530
    %v3683 = vpop.f32.mrb[0].mxu0
    %v3684 = vadd.f32 %v3613, %v3683
    %v3685 = vpop.f32.mrb[0].mxu0
    %v3686 = vadd.f32 %v3615, %v3685
    %v3687 = vpop.f32.mrb[0].mxu0
    %v3688 = vadd.f32 %v3617, %v3687
    %v3689 = vpop.f32.mrb[0].mxu0
    %v3690 = vadd.f32 %v3619, %v3689
    %3691 = vmatprep.mubr.bf16.mxu0 0
    %3692 = vmatmul.mubr.bf16.gmra.mrb[0].mxu0 %v533
    %v3693 = vpop.f32.mrb[0].mxu0
    %v3694 = vadd.f32 %v3623, %v3693
    %v3695 = vpop.f32.mrb[0].mxu0
    %v3696 = vadd.f32 %v3625, %v3695
    %v3697 = vpop.f32.mrb[0].mxu0
    %v3698 = vpop.f32.mrb[0].mxu0
    %3699 = vdwg.mxu0
    %3700 = vmatprep.subr.bf16.mxu0 %v1857
    %3701 = vmatpush1.bf16.msra.mxu0 %v1856
    %3702 = vmatprep.subr.bf16.mxu0 %v1875
    %3703 = vmatpush1.bf16.msra.mxu0 %v1874
    %3704 = vmatprep.subr.bf16.mxu0 %v1893
    %3705 = vmatpush1.bf16.msra.mxu0 %v1892
    %3706 = vmatprep.subr.bf16.mxu0 %v1911
    %3707 = vmatpush1.bf16.msra.mxu0 %v1910
    %3708 = vmatprep.subr.bf16.mxu0 %v1929
    %3709 = vmatpush1.bf16.msra.mxu0 %v1928
    %3710 = vmatprep.subr.bf16.mxu0 %v1947
    %3711 = vmatpush1.bf16.msra.mxu0 %v1946
    %3712 = vmatprep.subr.bf16.mxu0 %v1965
    %3713 = vmatpush1.bf16.msra.mxu0 %v1964
    %3714 = vmatprep.subr.bf16.mxu0 %v1983
    %3715 = vmatpush1.bf16.msra.mxu0 %v1982
    %3716 = vmatprep.subr.bf16.mxu0 %v2001
    %3717 = vmatpush1.bf16.msra.mxu0 %v2000
    %3718 = vmatprep.subr.bf16.mxu0 %v2019
    %3719 = vmatpush1.bf16.msra.mxu0 %v2018
    %3720 = vmatprep.subr.bf16.mxu0 %v2037
    %3721 = vmatpush1.bf16.msra.mxu0 %v2036
    %3722 = vmatprep.subr.bf16.mxu0 %v2055
    %3723 = vmatpush1.bf16.msra.mxu0 %v2054
    %3724 = vmatprep.subr.bf16.mxu0 %v2073
    %3725 = vmatpush1.bf16.msra.mxu0 %v2072
    %3726 = vmatprep.subr.bf16.mxu0 %v2091
    %3727 = vmatpush1.bf16.msra.mxu0 %v2090
    %3728 = vmatprep.subr.bf16.mxu0 %v2109
    %3729 = vmatpush1.bf16.msra.mxu0 %v2108
    %3730 = vmatprep.subr.bf16.mxu0 %v2127
    %3731 = vmatpush1.bf16.msra.mxu0 %v2126
    %3732 = vmatprep.mubr.bf16.mxu0 %v523
    %3733 = vmatmul.mubr.bf16.gmra.mrb[0].mxu0 %v522
    %v3734 = vpop.f32.mrb[0].mxu0
    %v3735 = vadd.f32 0.0, %v3734
    %v3736 = vpop.f32.mrb[0].mxu0
    %v3737 = vadd.f32 0.0, %v3736
    %v3738 = vpop.f32.mrb[0].mxu0
    %v3739 = vadd.f32 0.0, %v3738
    %v3740 = vpop.f32.mrb[0].mxu0
    %v3741 = vadd.f32 0.0, %v3740
    %3742 = vmatprep.mubr.bf16.mxu0 %v526
    %3743 = vmatmul.mubr.bf16.gmra.mrb[0].mxu0 %v525
    %v3744 = vpop.f32.mrb[0].mxu0
    %v3745 = vadd.f32 0.0, %v3744
    %v3746 = vpop.f32.mrb[0].mxu0
    %v3747 = vadd.f32 0.0, %v3746
    %v3748 = vpop.f32.mrb[0].mxu0
    %v3749 = vadd.f32 0.0, %v3748
    %v3750 = vpop.f32.mrb[0].mxu0
    %v3751 = vadd.f32 0.0, %v3750
    %3752 = vmatprep.mubr.bf16.mxu0 %v529
    %3753 = vmatmul.mubr.bf16.gmra.mrb[0].mxu0 %v528
    %v3754 = vpop.f32.mrb[0].mxu0
    %v3755 = vadd.f32 0.0, %v3754
    %v3756 = vpop.f32.mrb[0].mxu0
    %v3757 = vadd.f32 0.0, %v3756
    %v3758 = vpop.f32.mrb[0].mxu0
    %v3759 = vadd.f32 0.0, %v3758
    %v3760 = vpop.f32.mrb[0].mxu0
    %v3761 = vadd.f32 0.0, %v3760
    %3762 = vmatprep.mubr.bf16.mxu0 %v532
    %3763 = vmatmul.mubr.bf16.gmra.mrb[0].mxu0 %v531
    %v3764 = vpop.f32.mrb[0].mxu0
    %v3765 = vadd.f32 0.0, %v3764
    %v3766 = vpop.f32.mrb[0].mxu0
    %v3767 = vadd.f32 0.0, %v3766
    %v3768 = vpop.f32.mrb[0].mxu0
    %v3769 = vpop.f32.mrb[0].mxu0
    %3770 = vdwg.mxu0
    %3771 = vmatprep.subr.bf16.mxu0 %v2145
    %3772 = vmatpush1.bf16.msra.mxu0 %v2144
    %3773 = vmatprep.subr.bf16.mxu0 %v2163
    %3774 = vmatpush1.bf16.msra.mxu0 %v2162
    %3775 = vmatprep.subr.bf16.mxu0 %v2181
    %3776 = vmatpush1.bf16.msra.mxu0 %v2180
    %3777 = vmatprep.subr.bf16.mxu0 %v2199
    %3778 = vmatpush1.bf16.msra.mxu0 %v2198
    %3779 = vmatprep.subr.bf16.mxu0 %v2217
    %3780 = vmatpush1.bf16.msra.mxu0 %v2216
    %3781 = vmatprep.subr.bf16.mxu0 %v2235
    %3782 = vmatpush1.bf16.msra.mxu0 %v2234
    %3783 = vmatprep.subr.bf16.mxu0 %v2253
    %3784 = vmatpush1.bf16.msra.mxu0 %v2252
    %3785 = vmatprep.subr.bf16.mxu0 %v2271
    %3786 = vmatpush1.bf16.msra.mxu0 %v2270
    %3787 = vmatprep.subr.bf16.mxu0 0
    %3788 = vmatpush1.bf16.msra.mxu0 0
    %3789 = vmatprep.subr.bf16.mxu0 0
    %3790 = vmatpush1.bf16.msra.mxu0 0
    %3791 = vmatprep.subr.bf16.mxu0 0
    %3792 = vmatpush1.bf16.msra.mxu0 0
    %3793 = vmatprep.subr.bf16.mxu0 0
    %3794 = vmatpush1.bf16.msra.mxu0 0
    %3795 = vmatprep.subr.bf16.mxu0 0
    %3796 = vmatpush1.bf16.msra.mxu0 0
    %3797 = vmatprep.subr.bf16.mxu0 0
    %3798 = vmatpush1.bf16.msra.mxu0 0
    %3799 = vmatprep.subr.bf16.mxu0 0
    %3800 = vmatpush1.bf16.msra.mxu0 0
    %3801 = vmatprep.subr.bf16.mxu0 0
    %3802 = vmatpush1.bf16.msra.mxu0 0
    %3803 = vmatprep.mubr.bf16.mxu0 0
    %3804 = vmatmul.mubr.bf16.gmra.mrb[0].mxu0 %v524
    %v3805 = vpop.f32.mrb[0].mxu0
    %v3806 = vadd.f32 %v3735, %v3805
    %v3807 = vpop.f32.mrb[0].mxu0
    %v3808 = vadd.f32 %v3737, %v3807
    %v3809 = vpop.f32.mrb[0].mxu0
    %v3810 = vadd.f32 %v3739, %v3809
    %v3811 = vpop.f32.mrb[0].mxu0
    %v3812 = vadd.f32 %v3741, %v3811
    %3813 = vmatprep.mubr.bf16.mxu0 0
    %3814 = vmatmul.mubr.bf16.gmra.mrb[0].mxu0 %v527
    %v3815 = vpop.f32.mrb[0].mxu0
    %v3816 = vadd.f32 %v3745, %v3815
    %v3817 = vpop.f32.mrb[0].mxu0
    %v3818 = vadd.f32 %v3747, %v3817
    %v3819 = vpop.f32.mrb[0].mxu0
    %v3820 = vadd.f32 %v3749, %v3819
    %v3821 = vpop.f32.mrb[0].mxu0
    %v3822 = vadd.f32 %v3751, %v3821
    %3823 = vmatprep.mubr.bf16.mxu0 0
    %3824 = vmatmul.mubr.bf16.gmra.mrb[0].mxu0 %v530
    %v3825 = vpop.f32.mrb[0].mxu0
    %v3826 = vadd.f32 %v3755, %v3825
    %v3827 = vpop.f32.mrb[0].mxu0
    %v3828 = vadd.f32 %v3757, %v3827
    %v3829 = vpop.f32.mrb[0].mxu0
    %v3830 = vadd.f32 %v3759, %v3829
    %v3831 = vpop.f32.mrb[0].mxu0
    %v3832 = vadd.f32 %v3761, %v3831
    %3833 = vmatprep.mubr.bf16.mxu0 0
    %3834 = vmatmul.mubr.bf16.gmra.mrb[0].mxu0 %v533
    %v3835 = vpop.f32.mrb[0].mxu0
    %v3836 = vadd.f32 %v3765, %v3835
    %v3837 = vpop.f32.mrb[0].mxu0
    %v3838 = vadd.f32 %v3767, %v3837
    %v3839 = vpop.f32.mrb[0].mxu0
    %v3840 = vpop.f32.mrb[0].mxu0
    %3841 = vdwg.mxu0
    %3842 = vmatprep.subr.bf16.mxu0 %v1859
    %3843 = vmatpush1.bf16.msra.mxu0 %v1858
    %3844 = vmatprep.subr.bf16.mxu0 %v1877
    %3845 = vmatpush1.bf16.msra.mxu0 %v1876
    %3846 = vmatprep.subr.bf16.mxu0 %v1895
    %3847 = vmatpush1.bf16.msra.mxu0 %v1894
    %3848 = vmatprep.subr.bf16.mxu0 %v1913
    %3849 = vmatpush1.bf16.msra.mxu0 %v1912
    %3850 = vmatprep.subr.bf16.mxu0 %v1931
    %3851 = vmatpush1.bf16.msra.mxu0 %v1930
    %3852 = vmatprep.subr.bf16.mxu0 %v1949
    %3853 = vmatpush1.bf16.msra.mxu0 %v1948
    %3854 = vmatprep.subr.bf16.mxu0 %v1967
    %3855 = vmatpush1.bf16.msra.mxu0 %v1966
    %3856 = vmatprep.subr.bf16.mxu0 %v1985
    %3857 = vmatpush1.bf16.msra.mxu0 %v1984
    %3858 = vmatprep.subr.bf16.mxu0 %v2003
    %3859 = vmatpush1.bf16.msra.mxu0 %v2002
    %3860 = vmatprep.subr.bf16.mxu0 %v2021
    %3861 = vmatpush1.bf16.msra.mxu0 %v2020
    %3862 = vmatprep.subr.bf16.mxu0 %v2039
    %3863 = vmatpush1.bf16.msra.mxu0 %v2038
    %3864 = vmatprep.subr.bf16.mxu0 %v2057
    %3865 = vmatpush1.bf16.msra.mxu0 %v2056
    %3866 = vmatprep.subr.bf16.mxu0 %v2075
    %3867 = vmatpush1.bf16.msra.mxu0 %v2074
    %3868 = vmatprep.subr.bf16.mxu0 %v2093
    %3869 = vmatpush1.bf16.msra.mxu0 %v2092
    %3870 = vmatprep.subr.bf16.mxu0 %v2111
    %3871 = vmatpush1.bf16.msra.mxu0 %v2110
    %3872 = vmatprep.subr.bf16.mxu0 %v2129
    %3873 = vmatpush1.bf16.msra.mxu0 %v2128
    %3874 = vmatprep.mubr.bf16.mxu0 %v523
    %3875 = vmatmul.mubr.bf16.gmra.mrb[0].mxu0 %v522
    %v3876 = vpop.f32.mrb[0].mxu0
    %v3877 = vadd.f32 0.0, %v3876
    %v3878 = vpop.f32.mrb[0].mxu0
    %v3879 = vadd.f32 0.0, %v3878
    %v3880 = vpop.f32.mrb[0].mxu0
    %v3881 = vadd.f32 0.0, %v3880
    %v3882 = vpop.f32.mrb[0].mxu0
    %v3883 = vadd.f32 0.0, %v3882
    %3884 = vmatprep.mubr.bf16.mxu0 %v526
    %3885 = vmatmul.mubr.bf16.gmra.mrb[0].mxu0 %v525
    %v3886 = vpop.f32.mrb[0].mxu0
    %v3887 = vadd.f32 0.0, %v3886
    %v3888 = vpop.f32.mrb[0].mxu0
    %v3889 = vadd.f32 0.0, %v3888
    %v3890 = vpop.f32.mrb[0].mxu0
    %v3891 = vadd.f32 0.0, %v3890
    %v3892 = vpop.f32.mrb[0].mxu0
    %v3893 = vadd.f32 0.0, %v3892
    %3894 = vmatprep.mubr.bf16.mxu0 %v529
    %3895 = vmatmul.mubr.bf16.gmra.mrb[0].mxu0 %v528
    %v3896 = vpop.f32.mrb[0].mxu0
    %v3897 = vadd.f32 0.0, %v3896
    %v3898 = vpop.f32.mrb[0].mxu0
    %v3899 = vadd.f32 0.0, %v3898
    %v3900 = vpop.f32.mrb[0].mxu0
    %v3901 = vadd.f32 0.0, %v3900
    %v3902 = vpop.f32.mrb[0].mxu0
    %v3903 = vadd.f32 0.0, %v3902
    %3904 = vmatprep.mubr.bf16.mxu0 %v532
    %3905 = vmatmul.mubr.bf16.gmra.mrb[0].mxu0 %v531
    %v3906 = vpop.f32.mrb[0].mxu0
    %v3907 = vadd.f32 0.0, %v3906
    %v3908 = vpop.f32.mrb[0].mxu0
    %v3909 = vadd.f32 0.0, %v3908
    %v3910 = vpop.f32.mrb[0].mxu0
    %v3911 = vpop.f32.mrb[0].mxu0
    %3912 = vdwg.mxu0
    %3913 = vmatprep.subr.bf16.mxu0 %v2147
    %3914 = vmatpush1.bf16.msra.mxu0 %v2146
    %3915 = vmatprep.subr.bf16.mxu0 %v2165
    %3916 = vmatpush1.bf16.msra.mxu0 %v2164
    %3917 = vmatprep.subr.bf16.mxu0 %v2183
    %3918 = vmatpush1.bf16.msra.mxu0 %v2182
    %3919 = vmatprep.subr.bf16.mxu0 %v2201
    %3920 = vmatpush1.bf16.msra.mxu0 %v2200
    %3921 = vmatprep.subr.bf16.mxu0 %v2219
    %3922 = vmatpush1.bf16.msra.mxu0 %v2218
    %3923 = vmatprep.subr.bf16.mxu0 %v2237
    %3924 = vmatpush1.bf16.msra.mxu0 %v2236
    %3925 = vmatprep.subr.bf16.mxu0 %v2255
    %3926 = vmatpush1.bf16.msra.mxu0 %v2254
    %3927 = vmatprep.subr.bf16.mxu0 %v2273
    %3928 = vmatpush1.bf16.msra.mxu0 %v2272
    %3929 = vmatprep.subr.bf16.mxu0 0
    %3930 = vmatpush1.bf16.msra.mxu0 0
    %3931 = vmatprep.subr.bf16.mxu0 0
    %3932 = vmatpush1.bf16.msra.mxu0 0
    %3933 = vmatprep.subr.bf16.mxu0 0
    %3934 = vmatpush1.bf16.msra.mxu0 0
    %3935 = vmatprep.subr.bf16.mxu0 0
    %3936 = vmatpush1.bf16.msra.mxu0 0
    %3937 = vmatprep.subr.bf16.mxu0 0
    %3938 = vmatpush1.bf16.msra.mxu0 0
    %3939 = vmatprep.subr.bf16.mxu0 0
    %3940 = vmatpush1.bf16.msra.mxu0 0
    %3941 = vmatprep.subr.bf16.mxu0 0
    %3942 = vmatpush1.bf16.msra.mxu0 0
    %3943 = vmatprep.subr.bf16.mxu0 0
    %3944 = vmatpush1.bf16.msra.mxu0 0
    %3945 = vmatprep.mubr.bf16.mxu0 0
    %3946 = vmatmul.mubr.bf16.gmra.mrb[0].mxu0 %v524
    %v3947 = vpop.f32.mrb[0].mxu0
    %v3948 = vadd.f32 %v3877, %v3947
    %v3949 = vpop.f32.mrb[0].mxu0
    %v3950 = vadd.f32 %v3879, %v3949
    %v3951 = vpop.f32.mrb[0].mxu0
    %v3952 = vadd.f32 %v3881, %v3951
    %v3953 = vpop.f32.mrb[0].mxu0
    %v3954 = vadd.f32 %v3883, %v3953
    %3955 = vmatprep.mubr.bf16.mxu0 0
    %3956 = vmatmul.mubr.bf16.gmra.mrb[0].mxu0 %v527
    %v3957 = vpop.f32.mrb[0].mxu0
    %v3958 = vadd.f32 %v3887, %v3957
    %v3959 = vpop.f32.mrb[0].mxu0
    %v3960 = vadd.f32 %v3889, %v3959
    %v3961 = vpop.f32.mrb[0].mxu0
    %v3962 = vadd.f32 %v3891, %v3961
    %v3963 = vpop.f32.mrb[0].mxu0
    %v3964 = vadd.f32 %v3893, %v3963
    %3965 = vmatprep.mubr.bf16.mxu0 0
    %3966 = vmatmul.mubr.bf16.gmra.mrb[0].mxu0 %v530
    %v3967 = vpop.f32.mrb[0].mxu0
    %v3968 = vadd.f32 %v3897, %v3967
    %v3969 = vpop.f32.mrb[0].mxu0
    %v3970 = vadd.f32 %v3899, %v3969
    %v3971 = vpop.f32.mrb[0].mxu0
    %v3972 = vadd.f32 %v3901, %v3971
    %v3973 = vpop.f32.mrb[0].mxu0
    %v3974 = vadd.f32 %v3903, %v3973
    %3975 = vmatprep.mubr.bf16.mxu0 0
    %3976 = vmatmul.mubr.bf16.gmra.mrb[0].mxu0 %v533
    %v3977 = vpop.f32.mrb[0].mxu0
    %v3978 = vadd.f32 %v3907, %v3977
    %v3979 = vpop.f32.mrb[0].mxu0
    %v3980 = vadd.f32 %v3909, %v3979
    %v3981 = vpop.f32.mrb[0].mxu0
    %v3982 = vpop.f32.mrb[0].mxu0
    %3983 = vdwg.mxu0
    %3984 = vst [vmem:[#allocation7] sm:$0xff] %v2812
    %3985 = vst [vmem:[#allocation7 + $0x8] sm:$0xff] %v2814
    %3986 = vst [vmem:[#allocation7 + $0x10] sm:$0xff] %v2954
    %3987 = vst [vmem:[#allocation7 + $0x18] sm:$0xff] %v2956
    %3988 = vst [vmem:[#allocation7 + $0x20] sm:$0xff] %v3096
    %3989 = vst [vmem:[#allocation7 + $0x28] sm:$0xff] %v3098
    %3990 = vst [vmem:[#allocation7 + $0x30] sm:$0xff] %v3238
    %3991 = vst [vmem:[#allocation7 + $0x38] sm:$0xff] %v3240
    %3992 = vst [vmem:[#allocation7 + $0x40] sm:$0xff] %v3380
    %3993 = vst [vmem:[#allocation7 + $0x48] sm:$0xff] %v3382
    %3994 = vst [vmem:[#allocation7 + $0x50] sm:$0xff] %v3522
    %3995 = vst [vmem:[#allocation7 + $0x58] sm:$0xff] %v3524
    %3996 = vst [vmem:[#allocation7 + $0x60] sm:$0xff] %v3664
    %3997 = vst [vmem:[#allocation7 + $0x68] sm:$0xff] %v3666
    %3998 = vst [vmem:[#allocation7 + $0x70] sm:$0xff] %v3806
    %3999 = vst [vmem:[#allocation7 + $0x78] sm:$0xff] %v3808
    %4000 = vst [vmem:[#allocation7 + $0x80] sm:$0xff] %v3948
    %4001 = vst [vmem:[#allocation7 + $0x88] sm:$0xff] %v3950
    %4002 = vst [vmem:[#allocation7 + $0x90] sm:$0xff] %v2816
    %4003 = vst [vmem:[#allocation7 + $0x98] sm:$0xff] %v2818
    %4004 = vst [vmem:[#allocation7 + $0xa0] sm:$0xff] %v2958
    %4005 = vst [vmem:[#allocation7 + $0xa8] sm:$0xff] %v2960
    %4006 = vst [vmem:[#allocation7 + $0xb0] sm:$0xff] %v3100
    %4007 = vst [vmem:[#allocation7 + $0xb8] sm:$0xff] %v3102
    %4008 = vst [vmem:[#allocation7 + $0xc0] sm:$0xff] %v3242
    %4009 = vst [vmem:[#allocation7 + $0xc8] sm:$0xff] %v3244
    %4010 = vst [vmem:[#allocation7 + $0xd0] sm:$0xff] %v3384
    %4011 = vst [vmem:[#allocation7 + $0xd8] sm:$0xff] %v3386
    %4012 = vst [vmem:[#allocation7 + $0xe0] sm:$0xff] %v3526
    %4013 = vst [vmem:[#allocation7 + $0xe8] sm:$0xff] %v3528
    %4014 = vst [vmem:[#allocation7 + $0xf0] sm:$0xff] %v3668
    %4015 = vst [vmem:[#allocation7 + $0xf8] sm:$0xff] %v3670
    %4016 = vst [vmem:[#allocation7 + $0x100] sm:$0xff] %v3810
    %4017 = vst [vmem:[#allocation7 + $0x108] sm:$0xff] %v3812
    %4018 = vst [vmem:[#allocation7 + $0x110] sm:$0xff] %v3952
    %4019 = vst [vmem:[#allocation7 + $0x118] sm:$0xff] %v3954
    %4020 = vst [vmem:[#allocation7 + $0x120] sm:$0xff] %v2822
    %4021 = vst [vmem:[#allocation7 + $0x128] sm:$0xff] %v2824
    %4022 = vst [vmem:[#allocation7 + $0x130] sm:$0xff] %v2964
    %4023 = vst [vmem:[#allocation7 + $0x138] sm:$0xff] %v2966
    %4024 = vst [vmem:[#allocation7 + $0x140] sm:$0xff] %v3106
    %4025 = vst [vmem:[#allocation7 + $0x148] sm:$0xff] %v3108
    %4026 = vst [vmem:[#allocation7 + $0x150] sm:$0xff] %v3248
    %4027 = vst [vmem:[#allocation7 + $0x158] sm:$0xff] %v3250
    %4028 = vst [vmem:[#allocation7 + $0x160] sm:$0xff] %v3390
    %4029 = vst [vmem:[#allocation7 + $0x168] sm:$0xff] %v3392
    %4030 = vst [vmem:[#allocation7 + $0x170] sm:$0xff] %v3532
    %4031 = vst [vmem:[#allocation7 + $0x178] sm:$0xff] %v3534
    %4032 = vst [vmem:[#allocation7 + $0x180] sm:$0xff] %v3674
    %4033 = vst [vmem:[#allocation7 + $0x188] sm:$0xff] %v3676
    %4034 = vst [vmem:[#allocation7 + $0x190] sm:$0xff] %v3816
    %4035 = vst [vmem:[#allocation7 + $0x198] sm:$0xff] %v3818
    %4036 = vst [vmem:[#allocation7 + $0x1a0] sm:$0xff] %v3958
    %4037 = vst [vmem:[#allocation7 + $0x1a8] sm:$0xff] %v3960
    %4038 = vst [vmem:[#allocation7 + $0x1b0] sm:$0xff] %v2826
    %4039 = vst [vmem:[#allocation7 + $0x1b8] sm:$0xff] %v2828
    %4040 = vst [vmem:[#allocation7 + $0x1c0] sm:$0xff] %v2968
    %4041 = vst [vmem:[#allocation7 + $0x1c8] sm:$0xff] %v2970
    %4042 = vst [vmem:[#allocation7 + $0x1d0] sm:$0xff] %v3110
    %4043 = vst [vmem:[#allocation7 + $0x1d8] sm:$0xff] %v3112
    %4044 = vst [vmem:[#allocation7 + $0x1e0] sm:$0xff] %v3252
    %4045 = vst [vmem:[#allocation7 + $0x1e8] sm:$0xff] %v3254
    %4046 = vst [vmem:[#allocation7 + $0x1f0] sm:$0xff] %v3394
    %4047 = vst [vmem:[#allocation7 + $0x1f8] sm:$0xff] %v3396
    %4048 = vst [vmem:[#allocation7 + $0x200] sm:$0xff] %v3536
    %4049 = vst [vmem:[#allocation7 + $0x208] sm:$0xff] %v3538
    %4050 = vst [vmem:[#allocation7 + $0x210] sm:$0xff] %v3678
    %4051 = vst [vmem:[#allocation7 + $0x218] sm:$0xff] %v3680
    %4052 = vst [vmem:[#allocation7 + $0x220] sm:$0xff] %v3820
    %4053 = vst [vmem:[#allocation7 + $0x228] sm:$0xff] %v3822
    %4054 = vst [vmem:[#allocation7 + $0x230] sm:$0xff] %v3962
    %4055 = vst [vmem:[#allocation7 + $0x238] sm:$0xff] %v3964
    %4056 = vst [vmem:[#allocation7 + $0x240] sm:$0xff] %v2832
    %4057 = vst [vmem:[#allocation7 + $0x248] sm:$0xff] %v2834
    %4058 = vst [vmem:[#allocation7 + $0x250] sm:$0xff] %v2974
    %4059 = vst [vmem:[#allocation7 + $0x258] sm:$0xff] %v2976
    %4060 = vst [vmem:[#allocation7 + $0x260] sm:$0xff] %v3116
    %4061 = vst [vmem:[#allocation7 + $0x268] sm:$0xff] %v3118
    %4062 = vst [vmem:[#allocation7 + $0x270] sm:$0xff] %v3258
    %4063 = vst [vmem:[#allocation7 + $0x278] sm:$0xff] %v3260
    %4064 = vst [vmem:[#allocation7 + $0x280] sm:$0xff] %v3400
    %4065 = vst [vmem:[#allocation7 + $0x288] sm:$0xff] %v3402
    %4066 = vst [vmem:[#allocation7 + $0x290] sm:$0xff] %v3542
    %4067 = vst [vmem:[#allocation7 + $0x298] sm:$0xff] %v3544
    %4068 = vst [vmem:[#allocation7 + $0x2a0] sm:$0xff] %v3684
    %4069 = vst [vmem:[#allocation7 + $0x2a8] sm:$0xff] %v3686
    %4070 = vst [vmem:[#allocation7 + $0x2b0] sm:$0xff] %v3826
    %4071 = vst [vmem:[#allocation7 + $0x2b8] sm:$0xff] %v3828
    %4072 = vst [vmem:[#allocation7 + $0x2c0] sm:$0xff] %v3968
    %4073 = vst [vmem:[#allocation7 + $0x2c8] sm:$0xff] %v3970
    %4074 = vst [vmem:[#allocation7 + $0x2d0] sm:$0xff] %v2836
    %4075 = vst [vmem:[#allocation7 + $0x2d8] sm:$0xff] %v2838
    %4076 = vst [vmem:[#allocation7 + $0x2e0] sm:$0xff] %v2978
    %4077 = vst [vmem:[#allocation7 + $0x2e8] sm:$0xff] %v2980
    %4078 = vst [vmem:[#allocation7 + $0x2f0] sm:$0xff] %v3120
    %4079 = vst [vmem:[#allocation7 + $0x2f8] sm:$0xff] %v3122
    %4080 = vst [vmem:[#allocation7 + $0x300] sm:$0xff] %v3262
    %4081 = vst [vmem:[#allocation7 + $0x308] sm:$0xff] %v3264
    %4082 = vst [vmem:[#allocation7 + $0x310] sm:$0xff] %v3404
    %4083 = vst [vmem:[#allocation7 + $0x318] sm:$0xff] %v3406
    %4084 = vst [vmem:[#allocation7 + $0x320] sm:$0xff] %v3546
    %4085 = vst [vmem:[#allocation7 + $0x328] sm:$0xff] %v3548
    %4086 = vst [vmem:[#allocation7 + $0x330] sm:$0xff] %v3688
    %4087 = vst [vmem:[#allocation7 + $0x338] sm:$0xff] %v3690
    %4088 = vst [vmem:[#allocation7 + $0x340] sm:$0xff] %v3830
    %4089 = vst [vmem:[#allocation7 + $0x348] sm:$0xff] %v3832
    %4090 = vst [vmem:[#allocation7 + $0x350] sm:$0xff] %v3972
    %4091 = vst [vmem:[#allocation7 + $0x358] sm:$0xff] %v3974
    %4092 = vst [vmem:[#allocation7 + $0x360] sm:$0xff] %v2842
    %4093 = vst [vmem:[#allocation7 + $0x368] sm:$0xff] %v2844
    %4094 = vst [vmem:[#allocation7 + $0x370] sm:$0xff] %v2984
    %4095 = vst [vmem:[#allocation7 + $0x378] sm:$0xff] %v2986
    %4096 = vst [vmem:[#allocation7 + $0x380] sm:$0xff] %v3126
    %4097 = vst [vmem:[#allocation7 + $0x388] sm:$0xff] %v3128
    %4098 = vst [vmem:[#allocation7 + $0x390] sm:$0xff] %v3268
    %4099 = vst [vmem:[#allocation7 + $0x398] sm:$0xff] %v3270
    %4100 = vst [vmem:[#allocation7 + $0x3a0] sm:$0xff] %v3410
    %4101 = vst [vmem:[#allocation7 + $0x3a8] sm:$0xff] %v3412
    %4102 = vst [vmem:[#allocation7 + $0x3b0] sm:$0xff] %v3552
    %4103 = vst [vmem:[#allocation7 + $0x3b8] sm:$0xff] %v3554
    %4104 = vst [vmem:[#allocation7 + $0x3c0] sm:$0xff] %v3694
    %4105 = vst [vmem:[#allocation7 + $0x3c8] sm:$0xff] %v3696
    %4106 = vst [vmem:[#allocation7 + $0x3d0] sm:$0xff] %v3836
    %4107 = vst [vmem:[#allocation7 + $0x3d8] sm:$0xff] %v3838
    %4108 = vst [vmem:[#allocation7 + $0x3e0] sm:$0xff] %v3978
    %4109 = vst [vmem:[#allocation7 + $0x3e8] sm:$0xff] %v3980
    // Predicated region
    $region18: #{tpu_custom_call.1} parent=1 // pred_check
      _
    $region19: #{tpu_custom_call.1} parent=1 // pred_check_branch
      %4111 = sbr.rel (0) target = $region21
    $region20: #{tpu_custom_call.1} parent=1 // pred_region
      %s4113 = ssub.s32 16128, 16128
      %4114 = vsyncadd [#allocation4], %s4113
      %s4115 = sshll.u32 [#allocation7], 4
      %s4116 = int_to_ptr.vmem [resolvable:$true] %s4115
      %4121 = dma.vmem_to_hbm [thread:$0]  %s4116, 16128, %s2, [#allocation4], 2304, 2304, 144
    $region21: #{tpu_custom_call.1} parent=1 // pred_fallthru
      _
    // Predicated region
    $region22: #{tpu_custom_call.1} parent=1 // pred_check
      _
    $region23: #{tpu_custom_call.1} parent=1 // pred_check_branch
      %4123 = sbr.rel (0) target = $region25
    $region24: #{tpu_custom_call.1} parent=1 // pred_region
      %4124 = dma.done [#allocation4], 16128
    $region25: #{tpu_custom_call.1} parent=1 // pred_fallthru
      _
    %4125 = vsyncpa [#allocation3], 1
    %4126 = vsyncpa [#allocation6], 1
    %4127 = vsyncpa [#allocation4], 1

</llo_original>
